<compile_context>
chip_gen: v7x
topology: tpu7x:2x2x1
jax: 0.10.0
libtpu: 0.0.40
codegen_flags: <defaults>
</compile_context>

<pallas_src>
import functools

import jax
import jax.numpy as jnp
from jax import lax
from jax.experimental import pallas as pl
from jax.experimental.pallas import tpu as pltpu

LANE = 128
SUBLANE = 8


def _round_up(x, m):
    return (x + m - 1) // m * m


# ----------------------------------------------------------------------------
# Pallas kernels
# ----------------------------------------------------------------------------
def _conv1_bn_relu_pool_kernel(x_ref, w_ref, shift_ref, o_ref, *,
                               tn, ho, wo, h_ext, w_ext, cin, c1p):
    """Conv(k3,s1,p1) + folded-BN + ReLU + AvgPool(k2,s1,p1) for one batch tile.

    x_ref:     [tn, h_ext+2, w_ext+2, cin] f32 input, padded so the conv can be
               evaluated on an extended (h_ext, w_ext) grid that already
               contains the pool's zero ring.
    w_ref:     [9, cin, c1p]  bf16, BN scale folded in, Cout zero-padded to c1p.
    shift_ref: [1, c1p]       f32,  beta + scale * (conv_bias - running_mean).
    o_ref:     [tn, ho+1, wo+1, c1p] f32 pooled output.
    """
    x = x_ref[...]
    m = tn * h_ext * w_ext
    acc = jnp.zeros((m, c1p), jnp.float32)
    for i in range(3):
        for j in range(3):
            xs = x[:, i:i + h_ext, j:j + w_ext, :]
            xs = xs.reshape(m, cin).astype(jnp.bfloat16)
            acc = acc + jnp.dot(xs, w_ref[i * 3 + j],
                                preferred_element_type=jnp.float32)
    y = jnp.maximum(acc + shift_ref[...], 0.0).reshape(tn, h_ext, w_ext, c1p)
    # Extended position (a, b) holds conv output (a-1, b-1); zero everything
    # outside the valid conv output -> realises the AvgPool zero padding.
    ia = lax.broadcasted_iota(jnp.int32, (tn, h_ext, w_ext, c1p), 1)
    ib = lax.broadcasted_iota(jnp.int32, (tn, h_ext, w_ext, c1p), 2)
    valid = (ia >= 1) & (ia <= ho) & (ib >= 1) & (ib <= wo)
    y = jnp.where(valid, y, 0.0)
    # AvgPool2d(k=2, s=1, p=1, count_include_pad=True): 4-tap sum / 4.
    s = (y[:, 0:ho + 1, 0:wo + 1, :] + y[:, 1:ho + 2, 0:wo + 1, :]
         + y[:, 0:ho + 1, 1:wo + 2, :] + y[:, 1:ho + 2, 1:wo + 2, :])
    o_ref[...] = s * 0.25


def _conv2_bn_relu_kernel(p_ref, w_ref, shift_ref, o_ref, *,
                          tn, ho2, wo2, wo2p, c1p, c2p):
    """Conv(k3,s2,p1) + folded-BN + ReLU for one batch tile.

    p_ref:     [4, tn, ho2+1, wo2p+1, c1p] f32 - the 4 (row,col)-parity planes of
               the zero-padded Block1 output (plane (pi,pj) = padded[pi::2, pj::2]),
               so the stride-2 conv only needs contiguous in-kernel slices.
    w_ref:     [9, c1p, c2p] bf16 (BN scale folded, channels zero-padded).
    shift_ref: [1, c2p]      f32.
    o_ref:     [tn, ho2, wo2, c2p] f32.
    """
    m = tn * ho2 * wo2p
    acc = jnp.zeros((m, c2p), jnp.float32)
    for i in range(3):
        for j in range(3):
            plane = p_ref[(i % 2) * 2 + (j % 2)]
            xs = plane[:, i // 2:i // 2 + ho2, j // 2:j // 2 + wo2p, :]
            xs = xs.reshape(m, c1p).astype(jnp.bfloat16)
            acc = acc + jnp.dot(xs, w_ref[i * 3 + j],
                                preferred_element_type=jnp.float32)
    y = jnp.maximum(acc + shift_ref[...], 0.0).reshape(tn, ho2, wo2p, c2p)
    o_ref[...] = y[:, :, :wo2, :]


def _fc_kernel(x_ref, w_ref, o_ref):
    # Linear (no bias); flatten permutation already folded into the weight.
    o_ref[...] = jnp.dot(x_ref[...].astype(jnp.bfloat16), w_ref[...],
                         preferred_element_type=jnp.float32)


# ----------------------------------------------------------------------------
# One-time parameter preparation (fold, pad, permute, cast)
# ----------------------------------------------------------------------------
def prepare_inference_params(params, h, w, n_classes, eps=1e-5):
    n1 = params["w1"].shape[0]
    n2 = params["w2"].shape[0]
    c1p = _round_up(n1, LANE)
    c2p = _round_up(n2, LANE)
    nclsp = _round_up(n_classes, LANE)

    def fold(w_oihw, b, g, beta, mean, var, cin_pad, cout_pad):
        cout, cin, kh, kw = w_oihw.shape
        scale = g / jnp.sqrt(var + eps)
        shift = beta + scale * (b - mean)
        wm = jnp.transpose(w_oihw, (2, 3, 1, 0)) * scale       # [kh,kw,cin,cout]
        wm = wm.reshape(kh * kw, cin, cout)
        wm = jnp.pad(wm, ((0, 0), (0, cin_pad - cin), (0, cout_pad - cout)))
        shift = jnp.pad(shift, (0, cout_pad - cout)).reshape(1, cout_pad)
        return wm.astype(jnp.bfloat16), shift.astype(jnp.float32)

    w1, s1 = fold(params["w1"], params["b1"], params["g1"], params["be1"],
                  params["m1"], params["v1"], params["w1"].shape[1], c1p)
    w2, s2 = fold(params["w2"], params["b2"], params["g2"], params["be2"],
                  params["m2"], params["v2"], c1p, c2p)

    # Output spatial sizes implied by the module for an (h, w) input.
    hp1, wp1 = h + 1, w + 1                     # Block1: conv k3 s1 p1 -> pool k2 s1 p1
    ho2 = (hp1 + 2 - 3) // 2 + 1                # Block2: conv k3 s2 p1
    wo2 = (wp1 + 2 - 3) // 2 + 1

    # PyTorch fc weight is [n_classes, n2*ho2*wo2] over NCHW flatten order.
    # Re-permute it once to the padded-NHWC flatten order used by the kernels.
    wfc = params["w_fc"].T.reshape(n2, ho2, wo2, n_classes)    # [c, h, w, cls]
    wfc = jnp.transpose(wfc, (1, 2, 0, 3))                     # [h, w, c, cls]
    wfc = jnp.pad(wfc, ((0, 0), (0, 0), (0, c2p - n2), (0, nclsp - n_classes)))
    wfc = wfc.reshape(ho2 * wo2 * c2p, nclsp).astype(jnp.bfloat16)

    return {"w1": w1, "s1": s1, "w2": w2, "s2": s2, "wfc": wfc}


# ----------------------------------------------------------------------------
# Forward pass
# ----------------------------------------------------------------------------
def cnn_2layer_fc_forward(x_nchw, prep, n_classes):
    """Inference forward of cnn_2layer_fc_model.  x_nchw: [N, 3, H, W] float32."""
    n, cin, h, w = x_nchw.shape
    c1p = prep["s1"].shape[1]
    c2p = prep["s2"].shape[1]
    nclsp = prep["wfc"].shape[1]

    cparams = pltpu.CompilerParams(dimension_semantics=("parallel",),
                                   vmem_limit_bytes=32 * 1024 * 1024)

    # Batch tile: each grid step processes `tn` images (one MXU-friendly M tile).
    tn = 1
    if n >= 8:
        for cand in (8, 4, 2):
            if n % cand == 0:
                tn = cand
                break

    x = jnp.transpose(x_nchw, (0, 2, 3, 1))              # NCHW -> NHWC

    # ---- Block1: Conv(3->n1, k3 s1 p1) + BN + ReLU + AvgPool(k2 s1 p1) -------
    ho1, wo1 = h, w                                      # conv1 output spatial
    h_ext = ho1 + 2                                      # + pool zero ring
    w_ext = _round_up(wo1 + 2, SUBLANE)                  # keep reshapes 8-aligned
    xp = jnp.pad(x, ((0, 0), (2, 2), (2, w_ext - wo1), (0, 0)))
    hp1, wp1 = ho1 + 1, wo1 + 1                          # pooled spatial size
    k1 = functools.partial(_conv1_bn_relu_pool_kernel, tn=tn, ho=ho1, wo=wo1,
                           h_ext=h_ext, w_ext=w_ext, cin=cin, c1p=c1p)
    pooled = pl.pallas_call(
        k1,
        out_shape=jax.ShapeDtypeStruct((n, hp1, wp1, c1p), jnp.float32),
        grid=(n // tn,),
        in_specs=[
            pl.BlockSpec((tn, h_ext + 2, w_ext + 2, cin),
                         lambda b: (b, 0, 0, 0)),
            pl.BlockSpec((9, cin, c1p), lambda b: (0, 0, 0)),
            pl.BlockSpec((1, c1p), lambda b: (0, 0)),
        ],
        out_specs=pl.BlockSpec((tn, hp1, wp1, c1p), lambda b: (b, 0, 0, 0)),
        compiler_params=cparams,
    )(xp, prep["w1"], prep["s1"])

    # ---- Block2: Conv(n1->n2, k3 s2 p1) + BN + ReLU (no pool) ----------------
    ho2 = (hp1 + 2 - 3) // 2 + 1
    wo2 = (wp1 + 2 - 3) // 2 + 1
    wo2p = _round_up(wo2, SUBLANE)
    hh, wh = ho2 + 1, wo2p + 1
    pp = jnp.pad(pooled, ((0, 0), (1, 1), (1, 1), (0, 0)))   # conv2's own pad=1
    planes = []
    for pi in range(2):
        for pj in range(2):
            pln = pp[:, pi::2, pj::2, :]
            planes.append(jnp.pad(
                pln, ((0, 0), (0, hh - pln.shape[1]),
                      (0, wh - pln.shape[2]), (0, 0))))
    planes = jnp.stack(planes, axis=0)                       # [4, n, hh, wh, c1p]

    k2 = functools.partial(_conv2_bn_relu_kernel, tn=tn, ho2=ho2, wo2=wo2,
                           wo2p=wo2p, c1p=c1p, c2p=c2p)
    y2 = pl.pallas_call(
        k2,
        out_shape=jax.ShapeDtypeStruct((n, ho2, wo2, c2p), jnp.float32),
        grid=(n // tn,),
        in_specs=[
            pl.BlockSpec((4, tn, hh, wh, c1p), lambda b: (0, b, 0, 0, 0)),
            pl.BlockSpec((9, c1p, c2p), lambda b: (0, 0, 0)),
            pl.BlockSpec((1, c2p), lambda b: (0, 0)),
        ],
        out_specs=pl.BlockSpec((tn, ho2, wo2, c2p), lambda b: (b, 0, 0, 0)),
        compiler_params=cparams,
    )(planes, prep["w2"], prep["s2"])

    # ---- FC (bias=False); flatten permutation already folded into the weight -
    kfc = ho2 * wo2 * c2p
    x_flat = y2.reshape(n, kfc)                              # pure reshape, no transpose
    tm = n if n <= 256 else 256
    logits_p = pl.pallas_call(
        _fc_kernel,
        out_shape=jax.ShapeDtypeStruct((n, nclsp), jnp.float32),
        grid=(pl.cdiv(n, tm),),
        in_specs=[
            pl.BlockSpec((tm, kfc), lambda i: (i, 0)),
            pl.BlockSpec((kfc, nclsp), lambda i: (0, 0)),
        ],
        out_specs=pl.BlockSpec((tm, nclsp), lambda i: (i, 0)),
        compiler_params=cparams,
    )(x_flat, prep["wfc"])
    return logits_p[:, :n_classes]


# ----------------------------------------------------------------------------
# Deterministic parameter init + demo
# ----------------------------------------------------------------------------
def make_params(key, n1, n2, fc_spatial, n_classes):
    ks = jax.random.split(key, 16)
    f32 = jnp.float32
    params = {
        # Block1 conv/bn
        "w1": jax.random.normal(ks[0], (n1, 3, 3, 3), f32) * 0.1,
        "b1": jax.random.normal(ks[1], (n1,), f32) * 0.1,
        "g1": jax.random.uniform(ks[2], (n1,), f32, 0.5, 1.5),
        "be1": jax.random.normal(ks[3], (n1,), f32) * 0.1,
        "m1": jax.random.normal(ks[4], (n1,), f32) * 0.1,
        "v1": jax.random.uniform(ks[5], (n1,), f32, 0.5, 1.5),
        # Block2 conv/bn
        "w2": jax.random.normal(ks[6], (n2, n1, 3, 3), f32) * 0.1,
        "b2": jax.random.normal(ks[7], (n2,), f32) * 0.1,
        "g2": jax.random.uniform(ks[8], (n2,), f32, 0.5, 1.5),
        "be2": jax.random.normal(ks[9], (n2,), f32) * 0.1,
        "m2": jax.random.normal(ks[10], (n2,), f32) * 0.1,
        "v2": jax.random.uniform(ks[11], (n2,), f32, 0.5, 1.5),
        # FC (PyTorch Linear weight layout: [n_classes, fc*n2], bias=False)
        "w_fc": jax.random.normal(ks[12], (n_classes, fc_spatial * n2), f32) * 0.05,
    }
    return params


if __name__ == "__main__":
    # Small shapes consistent with the module:
    #   input [2, 3, 8, 8]; n1=8, n2=16
    #   Block1: conv -> 8x8, pool(k2,s1,p1) -> 9x9
    #   Block2: conv(s2,p1) -> 5x5  =>  fc = 5*5 = 25, fc.in_features = 25*16 = 400
    N, H, W = 2, 8, 8
    n1, n2, n_classes = 8, 16, 10
    fc_spatial = 25

    key = jax.random.PRNGKey(0)
    kx, kp = jax.random.split(key)
    x = jax.random.normal(kx, (N, 3, H, W), jnp.float32)
    params = make_params(kp, n1, n2, fc_spatial, n_classes)

    prep = prepare_inference_params(params, H, W, n_classes)
    fwd = jax.jit(cnn_2layer_fc_forward, static_argnames=("n_classes",))

    # TODO(synk): Dropout2d is identity in eval mode; training-mode channel
    # dropout (RNG-dependent) is intentionally not implemented.
    logits = fwd(x, prep, n_classes=n_classes)
    logits = jax.block_until_ready(logits)

    assert logits.shape == (N, n_classes), logits.shape
    assert bool(jnp.all(jnp.isfinite(logits)))
    print("KERNEL_OK")
</pallas_src>

<mosaic_0001>
module attributes {stable_mosaic.version = 11 : i64} {
  func.func @_conv1_bn_relu_pool_kernel(%arg0: i32, %arg1: memref<1x12x18x3xf32, #tpu.memory_space<vmem>>, %arg2: memref<9x3x128xbf16, #tpu.memory_space<vmem>>, %arg3: memref<1x128xf32, #tpu.memory_space<vmem>>, %arg4: memref<1x9x9x128xf32, #tpu.memory_space<vmem>>) attributes {dimension_semantics = [#tpu.dimension_semantics<parallel>], iteration_bounds = array<i64: 2>, scalar_prefetch = 0 : i64, scratch_operands = 0 : i64, tpu.core_type = #tpu.core_type<tc>, window_params = [{transform_indices = @transform_0, window_bounds = array<i64: 1, 12, 18, 3>}, {pipeline_mode = #tpu.pipeline_mode<synchronous>, transform_indices = @transform_1, window_bounds = array<i64: 9, 3, 128>}, {pipeline_mode = #tpu.pipeline_mode<synchronous>, transform_indices = @transform_2, window_bounds = array<i64: 1, 128>}, {transform_indices = @transform_3, window_bounds = array<i64: 1, 9, 9, 128>}]} {
    %c0 = arith.constant 0 : index
    %c0_0 = arith.constant 0 : index
    %c0_1 = arith.constant 0 : index
    %c0_2 = arith.constant 0 : index
    %0 = vector.load %arg1[%c0, %c0_0, %c0_1, %c0_2] : memref<1x12x18x3xf32, #tpu.memory_space<vmem>>, vector<1x12x18x3xf32>
    %cst = arith.constant 0.000000e+00 : f32
    %1 = vector.broadcast %cst : f32 to vector<160x128xf32>
    %2 = vector.extract_strided_slice %0 {offsets = [0, 0, 0, 0], sizes = [1, 10, 16, 3], strides = [1, 1, 1, 1]} : vector<1x12x18x3xf32> to vector<1x10x16x3xf32>
    %3 = vector.shape_cast %2 : vector<1x10x16x3xf32> to vector<160x3xf32>
    %4 = arith.truncf %3 : vector<160x3xf32> to vector<160x3xbf16>
    %c0_3 = arith.constant 0 : index
    %c0_4 = arith.constant 0 : index
    %c0_5 = arith.constant 0 : index
    %5 = vector.load %arg2[%c0_3, %c0_4, %c0_5] : memref<9x3x128xbf16, #tpu.memory_space<vmem>>, vector<1x3x128xbf16>
    %6 = vector.shape_cast %5 : vector<1x3x128xbf16> to vector<3x128xbf16>
    %cst_6 = arith.constant dense<0.000000e+00> : vector<160x128xf32>
    %7 = tpu.matmul %4, %6, %cst_6 {dimension_numbers = #tpu.dot_dimension_numbers<[1], [0], [0], [1], [0, 0, 1, 1], [], []>} : vector<160x3xbf16>, vector<3x128xbf16>, vector<160x128xf32> -> vector<160x128xf32>
    %8 = arith.addf %1, %7 : vector<160x128xf32>
    %9 = vector.extract_strided_slice %0 {offsets = [0, 0, 1, 0], sizes = [1, 10, 16, 3], strides = [1, 1, 1, 1]} : vector<1x12x18x3xf32> to vector<1x10x16x3xf32>
    %10 = vector.shape_cast %9 : vector<1x10x16x3xf32> to vector<160x3xf32>
    %11 = arith.truncf %10 : vector<160x3xf32> to vector<160x3xbf16>
    %c1 = arith.constant 1 : index
    %c0_7 = arith.constant 0 : index
    %c0_8 = arith.constant 0 : index
    %12 = vector.load %arg2[%c1, %c0_7, %c0_8] : memref<9x3x128xbf16, #tpu.memory_space<vmem>>, vector<1x3x128xbf16>
    %13 = vector.shape_cast %12 : vector<1x3x128xbf16> to vector<3x128xbf16>
    %cst_9 = arith.constant dense<0.000000e+00> : vector<160x128xf32>
    %14 = tpu.matmul %11, %13, %cst_9 {dimension_numbers = #tpu.dot_dimension_numbers<[1], [0], [0], [1], [0, 0, 1, 1], [], []>} : vector<160x3xbf16>, vector<3x128xbf16>, vector<160x128xf32> -> vector<160x128xf32>
    %15 = arith.addf %8, %14 : vector<160x128xf32>
    %16 = vector.extract_strided_slice %0 {offsets = [0, 0, 2, 0], sizes = [1, 10, 16, 3], strides = [1, 1, 1, 1]} : vector<1x12x18x3xf32> to vector<1x10x16x3xf32>
    %17 = vector.shape_cast %16 : vector<1x10x16x3xf32> to vector<160x3xf32>
    %18 = arith.truncf %17 : vector<160x3xf32> to vector<160x3xbf16>
    %c2 = arith.constant 2 : index
    %c0_10 = arith.constant 0 : index
    %c0_11 = arith.constant 0 : index
    %19 = vector.load %arg2[%c2, %c0_10, %c0_11] : memref<9x3x128xbf16, #tpu.memory_space<vmem>>, vector<1x3x128xbf16>
    %20 = vector.shape_cast %19 : vector<1x3x128xbf16> to vector<3x128xbf16>
    %cst_12 = arith.constant dense<0.000000e+00> : vector<160x128xf32>
    %21 = tpu.matmul %18, %20, %cst_12 {dimension_numbers = #tpu.dot_dimension_numbers<[1], [0], [0], [1], [0, 0, 1, 1], [], []>} : vector<160x3xbf16>, vector<3x128xbf16>, vector<160x128xf32> -> vector<160x128xf32>
    %22 = arith.addf %15, %21 : vector<160x128xf32>
    %23 = vector.extract_strided_slice %0 {offsets = [0, 1, 0, 0], sizes = [1, 10, 16, 3], strides = [1, 1, 1, 1]} : vector<1x12x18x3xf32> to vector<1x10x16x3xf32>
    %24 = vector.shape_cast %23 : vector<1x10x16x3xf32> to vector<160x3xf32>
    %25 = arith.truncf %24 : vector<160x3xf32> to vector<160x3xbf16>
    %c3 = arith.constant 3 : index
    %c0_13 = arith.constant 0 : index
    %c0_14 = arith.constant 0 : index
    %26 = vector.load %arg2[%c3, %c0_13, %c0_14] : memref<9x3x128xbf16, #tpu.memory_space<vmem>>, vector<1x3x128xbf16>
    %27 = vector.shape_cast %26 : vector<1x3x128xbf16> to vector<3x128xbf16>
    %cst_15 = arith.constant dense<0.000000e+00> : vector<160x128xf32>
    %28 = tpu.matmul %25, %27, %cst_15 {dimension_numbers = #tpu.dot_dimension_numbers<[1], [0], [0], [1], [0, 0, 1, 1], [], []>} : vector<160x3xbf16>, vector<3x128xbf16>, vector<160x128xf32> -> vector<160x128xf32>
    %29 = arith.addf %22, %28 : vector<160x128xf32>
    %30 = vector.extract_strided_slice %0 {offsets = [0, 1, 1, 0], sizes = [1, 10, 16, 3], strides = [1, 1, 1, 1]} : vector<1x12x18x3xf32> to vector<1x10x16x3xf32>
    %31 = vector.shape_cast %30 : vector<1x10x16x3xf32> to vector<160x3xf32>
    %32 = arith.truncf %31 : vector<160x3xf32> to vector<160x3xbf16>
    %c4 = arith.constant 4 : index
    %c0_16 = arith.constant 0 : index
    %c0_17 = arith.constant 0 : index
    %33 = vector.load %arg2[%c4, %c0_16, %c0_17] : memref<9x3x128xbf16, #tpu.memory_space<vmem>>, vector<1x3x128xbf16>
    %34 = vector.shape_cast %33 : vector<1x3x128xbf16> to vector<3x128xbf16>
    %cst_18 = arith.constant dense<0.000000e+00> : vector<160x128xf32>
    %35 = tpu.matmul %32, %34, %cst_18 {dimension_numbers = #tpu.dot_dimension_numbers<[1], [0], [0], [1], [0, 0, 1, 1], [], []>} : vector<160x3xbf16>, vector<3x128xbf16>, vector<160x128xf32> -> vector<160x128xf32>
    %36 = arith.addf %29, %35 : vector<160x128xf32>
    %37 = vector.extract_strided_slice %0 {offsets = [0, 1, 2, 0], sizes = [1, 10, 16, 3], strides = [1, 1, 1, 1]} : vector<1x12x18x3xf32> to vector<1x10x16x3xf32>
    %38 = vector.shape_cast %37 : vector<1x10x16x3xf32> to vector<160x3xf32>
    %39 = arith.truncf %38 : vector<160x3xf32> to vector<160x3xbf16>
    %c5 = arith.constant 5 : index
    %c0_19 = arith.constant 0 : index
    %c0_20 = arith.constant 0 : index
    %40 = vector.load %arg2[%c5, %c0_19, %c0_20] : memref<9x3x128xbf16, #tpu.memory_space<vmem>>, vector<1x3x128xbf16>
    %41 = vector.shape_cast %40 : vector<1x3x128xbf16> to vector<3x128xbf16>
    %cst_21 = arith.constant dense<0.000000e+00> : vector<160x128xf32>
    %42 = tpu.matmul %39, %41, %cst_21 {dimension_numbers = #tpu.dot_dimension_numbers<[1], [0], [0], [1], [0, 0, 1, 1], [], []>} : vector<160x3xbf16>, vector<3x128xbf16>, vector<160x128xf32> -> vector<160x128xf32>
    %43 = arith.addf %36, %42 : vector<160x128xf32>
    %44 = vector.extract_strided_slice %0 {offsets = [0, 2, 0, 0], sizes = [1, 10, 16, 3], strides = [1, 1, 1, 1]} : vector<1x12x18x3xf32> to vector<1x10x16x3xf32>
    %45 = vector.shape_cast %44 : vector<1x10x16x3xf32> to vector<160x3xf32>
    %46 = arith.truncf %45 : vector<160x3xf32> to vector<160x3xbf16>
    %c6 = arith.constant 6 : index
    %c0_22 = arith.constant 0 : index
    %c0_23 = arith.constant 0 : index
    %47 = vector.load %arg2[%c6, %c0_22, %c0_23] : memref<9x3x128xbf16, #tpu.memory_space<vmem>>, vector<1x3x128xbf16>
    %48 = vector.shape_cast %47 : vector<1x3x128xbf16> to vector<3x128xbf16>
    %cst_24 = arith.constant dense<0.000000e+00> : vector<160x128xf32>
    %49 = tpu.matmul %46, %48, %cst_24 {dimension_numbers = #tpu.dot_dimension_numbers<[1], [0], [0], [1], [0, 0, 1, 1], [], []>} : vector<160x3xbf16>, vector<3x128xbf16>, vector<160x128xf32> -> vector<160x128xf32>
    %50 = arith.addf %43, %49 : vector<160x128xf32>
    %51 = vector.extract_strided_slice %0 {offsets = [0, 2, 1, 0], sizes = [1, 10, 16, 3], strides = [1, 1, 1, 1]} : vector<1x12x18x3xf32> to vector<1x10x16x3xf32>
    %52 = vector.shape_cast %51 : vector<1x10x16x3xf32> to vector<160x3xf32>
    %53 = arith.truncf %52 : vector<160x3xf32> to vector<160x3xbf16>
    %c7 = arith.constant 7 : index
    %c0_25 = arith.constant 0 : index
    %c0_26 = arith.constant 0 : index
    %54 = vector.load %arg2[%c7, %c0_25, %c0_26] : memref<9x3x128xbf16, #tpu.memory_space<vmem>>, vector<1x3x128xbf16>
    %55 = vector.shape_cast %54 : vector<1x3x128xbf16> to vector<3x128xbf16>
    %cst_27 = arith.constant dense<0.000000e+00> : vector<160x128xf32>
    %56 = tpu.matmul %53, %55, %cst_27 {dimension_numbers = #tpu.dot_dimension_numbers<[1], [0], [0], [1], [0, 0, 1, 1], [], []>} : vector<160x3xbf16>, vector<3x128xbf16>, vector<160x128xf32> -> vector<160x128xf32>
    %57 = arith.addf %50, %56 : vector<160x128xf32>
    %58 = vector.extract_strided_slice %0 {offsets = [0, 2, 2, 0], sizes = [1, 10, 16, 3], strides = [1, 1, 1, 1]} : vector<1x12x18x3xf32> to vector<1x10x16x3xf32>
    %59 = vector.shape_cast %58 : vector<1x10x16x3xf32> to vector<160x3xf32>
    %60 = arith.truncf %59 : vector<160x3xf32> to vector<160x3xbf16>
    %c8 = arith.constant 8 : index
    %c0_28 = arith.constant 0 : index
    %c0_29 = arith.constant 0 : index
    %61 = vector.load %arg2[%c8, %c0_28, %c0_29] : memref<9x3x128xbf16, #tpu.memory_space<vmem>>, vector<1x3x128xbf16>
    %62 = vector.shape_cast %61 : vector<1x3x128xbf16> to vector<3x128xbf16>
    %cst_30 = arith.constant dense<0.000000e+00> : vector<160x128xf32>
    %63 = tpu.matmul %60, %62, %cst_30 {dimension_numbers = #tpu.dot_dimension_numbers<[1], [0], [0], [1], [0, 0, 1, 1], [], []>} : vector<160x3xbf16>, vector<3x128xbf16>, vector<160x128xf32> -> vector<160x128xf32>
    %64 = arith.addf %57, %63 : vector<160x128xf32>
    %c0_31 = arith.constant 0 : index
    %c0_32 = arith.constant 0 : index
    %65 = vector.load %arg3[%c0_31, %c0_32] : memref<1x128xf32, #tpu.memory_space<vmem>>, vector<1x128xf32>
    %66 = vector.broadcast %65 : vector<1x128xf32> to vector<160x128xf32>
    %67 = arith.addf %64, %66 : vector<160x128xf32>
    %cst_33 = arith.constant 0.000000e+00 : f32
    %68 = vector.broadcast %cst_33 : f32 to vector<160x128xf32>
    %69 = arith.maximumf %67, %68 : vector<160x128xf32>
    %70 = vector.shape_cast %69 : vector<160x128xf32> to vector<1x10x16x128xf32>
    %71 = tpu.iota {dimensions = array<i32: 1>} : vector<1x10x16x128xi32>
    %72 = tpu.iota {dimensions = array<i32: 2>} : vector<1x10x16x128xi32>
    %c1_i32 = arith.constant 1 : i32
    %73 = vector.broadcast %c1_i32 : i32 to vector<1x10x16x128xi32>
    %74 = arith.cmpi sge, %71, %73 : vector<1x10x16x128xi32>
    %c8_i32 = arith.constant 8 : i32
    %75 = vector.broadcast %c8_i32 : i32 to vector<1x10x16x128xi32>
    %76 = arith.cmpi sle, %71, %75 : vector<1x10x16x128xi32>
    %77 = arith.andi %74, %76 : vector<1x10x16x128xi1>
    %c1_i32_34 = arith.constant 1 : i32
    %78 = vector.broadcast %c1_i32_34 : i32 to vector<1x10x16x128xi32>
    %79 = arith.cmpi sge, %72, %78 : vector<1x10x16x128xi32>
    %80 = arith.andi %77, %79 : vector<1x10x16x128xi1>
    %c8_i32_35 = arith.constant 8 : i32
    %81 = vector.broadcast %c8_i32_35 : i32 to vector<1x10x16x128xi32>
    %82 = arith.cmpi sle, %72, %81 : vector<1x10x16x128xi32>
    %83 = arith.andi %80, %82 : vector<1x10x16x128xi1>
    %cst_36 = arith.constant 0.000000e+00 : f32
    %84 = vector.broadcast %cst_36 : f32 to vector<1x10x16x128xf32>
    %85 = arith.select %83, %70, %84 : vector<1x10x16x128xi1>, vector<1x10x16x128xf32>
    %86 = vector.extract_strided_slice %85 {offsets = [0, 0, 0, 0], sizes = [1, 9, 9, 128], strides = [1, 1, 1, 1]} : vector<1x10x16x128xf32> to vector<1x9x9x128xf32>
    %87 = vector.extract_strided_slice %85 {offsets = [0, 1, 0, 0], sizes = [1, 9, 9, 128], strides = [1, 1, 1, 1]} : vector<1x10x16x128xf32> to vector<1x9x9x128xf32>
    %88 = arith.addf %86, %87 : vector<1x9x9x128xf32>
    %89 = vector.extract_strided_slice %85 {offsets = [0, 0, 1, 0], sizes = [1, 9, 9, 128], strides = [1, 1, 1, 1]} : vector<1x10x16x128xf32> to vector<1x9x9x128xf32>
    %90 = arith.addf %88, %89 : vector<1x9x9x128xf32>
    %91 = vector.extract_strided_slice %85 {offsets = [0, 1, 1, 0], sizes = [1, 9, 9, 128], strides = [1, 1, 1, 1]} : vector<1x10x16x128xf32> to vector<1x9x9x128xf32>
    %92 = arith.addf %90, %91 : vector<1x9x9x128xf32>
    %cst_37 = arith.constant 2.500000e-01 : f32
    %93 = vector.broadcast %cst_37 : f32 to vector<1x9x9x128xf32>
    %94 = arith.mulf %92, %93 : vector<1x9x9x128xf32>
    %c0_38 = arith.constant 0 : index
    %c0_39 = arith.constant 0 : index
    %c0_40 = arith.constant 0 : index
    %c0_41 = arith.constant 0 : index
    %95 = vector.load %arg4[%c0_38, %c0_39, %c0_40, %c0_41] : memref<1x9x9x128xf32, #tpu.memory_space<vmem>>, vector<1x9x9x128xf32>
    tpu.vector_store %arg4[%c0_38, %c0_39, %c0_40, %c0_41], %94 {strides = array<i32>} : memref<1x9x9x128xf32, #tpu.memory_space<vmem>>, vector<1x9x9x128xf32>,
    return
  }
  func.func @transform_0(%arg0: i32) -> (i32, i32, i32, i32) {
    %c0_i32 = arith.constant 0 : i32
    %c0_i32_0 = arith.constant 0 : i32
    %c0_i32_1 = arith.constant 0 : i32
    %c0_i32_2 = arith.constant 0 : i32
    return %arg0, %c0_i32, %c0_i32_0, %c0_i32_1 : i32, i32, i32, i32
  }
  func.func @transform_1(%arg0: i32) -> (i32, i32, i32) {
    %c0_i32 = arith.constant 0 : i32
    %c0_i32_0 = arith.constant 0 : i32
    %c0_i32_1 = arith.constant 0 : i32
    %c0_i32_2 = arith.constant 0 : i32
    return %c0_i32, %c0_i32_0, %c0_i32_1 : i32, i32, i32
  }
  func.func @transform_2(%arg0: i32) -> (i32, i32) {
    %c0_i32 = arith.constant 0 : i32
    %c0_i32_0 = arith.constant 0 : i32
    %c0_i32_1 = arith.constant 0 : i32
    return %c0_i32, %c0_i32_0 : i32, i32
  }
  func.func @transform_3(%arg0: i32) -> (i32, i32, i32, i32) {
    %c0_i32 = arith.constant 0 : i32
    %c0_i32_0 = arith.constant 0 : i32
    %c0_i32_1 = arith.constant 0 : i32
    %c0_i32_2 = arith.constant 0 : i32
    return %arg0, %c0_i32, %c0_i32_0, %c0_i32_1 : i32, i32, i32, i32
  }
}

module attributes {stable_mosaic.version = 11 : i64} {
  func.func @_conv2_bn_relu_kernel(%arg0: i32, %arg1: memref<4x1x6x9x128xf32, #tpu.memory_space<vmem>>, %arg2: memref<9x128x128xbf16, #tpu.memory_space<vmem>>, %arg3: memref<1x128xf32, #tpu.memory_space<vmem>>, %arg4: memref<1x5x5x128xf32, #tpu.memory_space<vmem>>) attributes {dimension_semantics = [#tpu.dimension_semantics<parallel>], iteration_bounds = array<i64: 2>, scalar_prefetch = 0 : i64, scratch_operands = 0 : i64, tpu.core_type = #tpu.core_type<tc>, window_params = [{transform_indices = @transform_0, window_bounds = array<i64: 4, 1, 6, 9, 128>}, {pipeline_mode = #tpu.pipeline_mode<synchronous>, transform_indices = @transform_1, window_bounds = array<i64: 9, 128, 128>}, {pipeline_mode = #tpu.pipeline_mode<synchronous>, transform_indices = @transform_2, window_bounds = array<i64: 1, 128>}, {transform_indices = @transform_3, window_bounds = array<i64: 1, 5, 5, 128>}]} {
    %cst = arith.constant 0.000000e+00 : f32
    %0 = vector.broadcast %cst : f32 to vector<40x128xf32>
    %c0 = arith.constant 0 : index
    %c0_0 = arith.constant 0 : index
    %c0_1 = arith.constant 0 : index
    %c0_2 = arith.constant 0 : index
    %c0_3 = arith.constant 0 : index
    %1 = vector.load %arg1[%c0, %c0_0, %c0_1, %c0_2, %c0_3] : memref<4x1x6x9x128xf32, #tpu.memory_space<vmem>>, vector<1x1x6x9x128xf32>
    %2 = vector.shape_cast %1 : vector<1x1x6x9x128xf32> to vector<1x6x9x128xf32>
    %3 = vector.extract_strided_slice %2 {offsets = [0, 0, 0, 0], sizes = [1, 5, 8, 128], strides = [1, 1, 1, 1]} : vector<1x6x9x128xf32> to vector<1x5x8x128xf32>
    %4 = vector.shape_cast %3 : vector<1x5x8x128xf32> to vector<40x128xf32>
    %5 = arith.truncf %4 : vector<40x128xf32> to vector<40x128xbf16>
    %c0_4 = arith.constant 0 : index
    %c0_5 = arith.constant 0 : index
    %c0_6 = arith.constant 0 : index
    %6 = vector.load %arg2[%c0_4, %c0_5, %c0_6] : memref<9x128x128xbf16, #tpu.memory_space<vmem>>, vector<1x128x128xbf16>
    %7 = vector.shape_cast %6 : vector<1x128x128xbf16> to vector<128x128xbf16>
    %cst_7 = arith.constant dense<0.000000e+00> : vector<40x128xf32>
    %8 = tpu.matmul %5, %7, %cst_7 {dimension_numbers = #tpu.dot_dimension_numbers<[1], [0], [0], [1], [0, 0, 1, 1], [], []>} : vector<40x128xbf16>, vector<128x128xbf16>, vector<40x128xf32> -> vector<40x128xf32>
    %9 = arith.addf %0, %8 : vector<40x128xf32>
    %c1 = arith.constant 1 : index
    %c0_8 = arith.constant 0 : index
    %c0_9 = arith.constant 0 : index
    %c0_10 = arith.constant 0 : index
    %c0_11 = arith.constant 0 : index
    %10 = vector.load %arg1[%c1, %c0_8, %c0_9, %c0_10, %c0_11] : memref<4x1x6x9x128xf32, #tpu.memory_space<vmem>>, vector<1x1x6x9x128xf32>
    %11 = vector.shape_cast %10 : vector<1x1x6x9x128xf32> to vector<1x6x9x128xf32>
    %12 = vector.extract_strided_slice %11 {offsets = [0, 0, 0, 0], sizes = [1, 5, 8, 128], strides = [1, 1, 1, 1]} : vector<1x6x9x128xf32> to vector<1x5x8x128xf32>
    %13 = vector.shape_cast %12 : vector<1x5x8x128xf32> to vector<40x128xf32>
    %14 = arith.truncf %13 : vector<40x128xf32> to vector<40x128xbf16>
    %c1_12 = arith.constant 1 : index
    %c0_13 = arith.constant 0 : index
    %c0_14 = arith.constant 0 : index
    %15 = vector.load %arg2[%c1_12, %c0_13, %c0_14] : memref<9x128x128xbf16, #tpu.memory_space<vmem>>, vector<1x128x128xbf16>
    %16 = vector.shape_cast %15 : vector<1x128x128xbf16> to vector<128x128xbf16>
    %cst_15 = arith.constant dense<0.000000e+00> : vector<40x128xf32>
    %17 = tpu.matmul %14, %16, %cst_15 {dimension_numbers = #tpu.dot_dimension_numbers<[1], [0], [0], [1], [0, 0, 1, 1], [], []>} : vector<40x128xbf16>, vector<128x128xbf16>, vector<40x128xf32> -> vector<40x128xf32>
    %18 = arith.addf %9, %17 : vector<40x128xf32>
    %c0_16 = arith.constant 0 : index
    %c0_17 = arith.constant 0 : index
    %c0_18 = arith.constant 0 : index
    %c0_19 = arith.constant 0 : index
    %c0_20 = arith.constant 0 : index
    %19 = vector.load %arg1[%c0_16, %c0_17, %c0_18, %c0_19, %c0_20] : memref<4x1x6x9x128xf32, #tpu.memory_space<vmem>>, vector<1x1x6x9x128xf32>
    %20 = vector.shape_cast %19 : vector<1x1x6x9x128xf32> to vector<1x6x9x128xf32>
    %21 = vector.extract_strided_slice %20 {offsets = [0, 0, 1, 0], sizes = [1, 5, 8, 128], strides = [1, 1, 1, 1]} : vector<1x6x9x128xf32> to vector<1x5x8x128xf32>
    %22 = vector.shape_cast %21 : vector<1x5x8x128xf32> to vector<40x128xf32>
    %23 = arith.truncf %22 : vector<40x128xf32> to vector<40x128xbf16>
    %c2 = arith.constant 2 : index
    %c0_21 = arith.constant 0 : index
    %c0_22 = arith.constant 0 : index
    %24 = vector.load %arg2[%c2, %c0_21, %c0_22] : memref<9x128x128xbf16, #tpu.memory_space<vmem>>, vector<1x128x128xbf16>
    %25 = vector.shape_cast %24 : vector<1x128x128xbf16> to vector<128x128xbf16>
    %cst_23 = arith.constant dense<0.000000e+00> : vector<40x128xf32>
    %26 = tpu.matmul %23, %25, %cst_23 {dimension_numbers = #tpu.dot_dimension_numbers<[1], [0], [0], [1], [0, 0, 1, 1], [], []>} : vector<40x128xbf16>, vector<128x128xbf16>, vector<40x128xf32> -> vector<40x128xf32>
    %27 = arith.addf %18, %26 : vector<40x128xf32>
    %c2_24 = arith.constant 2 : index
    %c0_25 = arith.constant 0 : index
    %c0_26 = arith.constant 0 : index
    %c0_27 = arith.constant 0 : index
    %c0_28 = arith.constant 0 : index
    %28 = vector.load %arg1[%c2_24, %c0_25, %c0_26, %c0_27, %c0_28] : memref<4x1x6x9x128xf32, #tpu.memory_space<vmem>>, vector<1x1x6x9x128xf32>
    %29 = vector.shape_cast %28 : vector<1x1x6x9x128xf32> to vector<1x6x9x128xf32>
    %30 = vector.extract_strided_slice %29 {offsets = [0, 0, 0, 0], sizes = [1, 5, 8, 128], strides = [1, 1, 1, 1]} : vector<1x6x9x128xf32> to vector<1x5x8x128xf32>
    %31 = vector.shape_cast %30 : vector<1x5x8x128xf32> to vector<40x128xf32>
    %32 = arith.truncf %31 : vector<40x128xf32> to vector<40x128xbf16>
    %c3 = arith.constant 3 : index
    %c0_29 = arith.constant 0 : index
    %c0_30 = arith.constant 0 : index
    %33 = vector.load %arg2[%c3, %c0_29, %c0_30] : memref<9x128x128xbf16, #tpu.memory_space<vmem>>, vector<1x128x128xbf16>
    %34 = vector.shape_cast %33 : vector<1x128x128xbf16> to vector<128x128xbf16>
    %cst_31 = arith.constant dense<0.000000e+00> : vector<40x128xf32>
    %35 = tpu.matmul %32, %34, %cst_31 {dimension_numbers = #tpu.dot_dimension_numbers<[1], [0], [0], [1], [0, 0, 1, 1], [], []>} : vector<40x128xbf16>, vector<128x128xbf16>, vector<40x128xf32> -> vector<40x128xf32>
    %36 = arith.addf %27, %35 : vector<40x128xf32>
    %c3_32 = arith.constant 3 : index
    %c0_33 = arith.constant 0 : index
    %c0_34 = arith.constant 0 : index
    %c0_35 = arith.constant 0 : index
    %c0_36 = arith.constant 0 : index
    %37 = vector.load %arg1[%c3_32, %c0_33, %c0_34, %c0_35, %c0_36] : memref<4x1x6x9x128xf32, #tpu.memory_space<vmem>>, vector<1x1x6x9x128xf32>
    %38 = vector.shape_cast %37 : vector<1x1x6x9x128xf32> to vector<1x6x9x128xf32>
    %39 = vector.extract_strided_slice %38 {offsets = [0, 0, 0, 0], sizes = [1, 5, 8, 128], strides = [1, 1, 1, 1]} : vector<1x6x9x128xf32> to vector<1x5x8x128xf32>
    %40 = vector.shape_cast %39 : vector<1x5x8x128xf32> to vector<40x128xf32>
    %41 = arith.truncf %40 : vector<40x128xf32> to vector<40x128xbf16>
    %c4 = arith.constant 4 : index
    %c0_37 = arith.constant 0 : index
    %c0_38 = arith.constant 0 : index
    %42 = vector.load %arg2[%c4, %c0_37, %c0_38] : memref<9x128x128xbf16, #tpu.memory_space<vmem>>, vector<1x128x128xbf16>
    %43 = vector.shape_cast %42 : vector<1x128x128xbf16> to vector<128x128xbf16>
    %cst_39 = arith.constant dense<0.000000e+00> : vector<40x128xf32>
    %44 = tpu.matmul %41, %43, %cst_39 {dimension_numbers = #tpu.dot_dimension_numbers<[1], [0], [0], [1], [0, 0, 1, 1], [], []>} : vector<40x128xbf16>, vector<128x128xbf16>, vector<40x128xf32> -> vector<40x128xf32>
    %45 = arith.addf %36, %44 : vector<40x128xf32>
    %c2_40 = arith.constant 2 : index
    %c0_41 = arith.constant 0 : index
    %c0_42 = arith.constant 0 : index
    %c0_43 = arith.constant 0 : index
    %c0_44 = arith.constant 0 : index
    %46 = vector.load %arg1[%c2_40, %c0_41, %c0_42, %c0_43, %c0_44] : memref<4x1x6x9x128xf32, #tpu.memory_space<vmem>>, vector<1x1x6x9x128xf32>
    %47 = vector.shape_cast %46 : vector<1x1x6x9x128xf32> to vector<1x6x9x128xf32>
    %48 = vector.extract_strided_slice %47 {offsets = [0, 0, 1, 0], sizes = [1, 5, 8, 128], strides = [1, 1, 1, 1]} : vector<1x6x9x128xf32> to vector<1x5x8x128xf32>
    %49 = vector.shape_cast %48 : vector<1x5x8x128xf32> to vector<40x128xf32>
    %50 = arith.truncf %49 : vector<40x128xf32> to vector<40x128xbf16>
    %c5 = arith.constant 5 : index
    %c0_45 = arith.constant 0 : index
    %c0_46 = arith.constant 0 : index
    %51 = vector.load %arg2[%c5, %c0_45, %c0_46] : memref<9x128x128xbf16, #tpu.memory_space<vmem>>, vector<1x128x128xbf16>
    %52 = vector.shape_cast %51 : vector<1x128x128xbf16> to vector<128x128xbf16>
    %cst_47 = arith.constant dense<0.000000e+00> : vector<40x128xf32>
    %53 = tpu.matmul %50, %52, %cst_47 {dimension_numbers = #tpu.dot_dimension_numbers<[1], [0], [0], [1], [0, 0, 1, 1], [], []>} : vector<40x128xbf16>, vector<128x128xbf16>, vector<40x128xf32> -> vector<40x128xf32>
    %54 = arith.addf %45, %53 : vector<40x128xf32>
    %c0_48 = arith.constant 0 : index
    %c0_49 = arith.constant 0 : index
    %c0_50 = arith.constant 0 : index
    %c0_51 = arith.constant 0 : index
    %c0_52 = arith.constant 0 : index
    %55 = vector.load %arg1[%c0_48, %c0_49, %c0_50, %c0_51, %c0_52] : memref<4x1x6x9x128xf32, #tpu.memory_space<vmem>>, vector<1x1x6x9x128xf32>
    %56 = vector.shape_cast %55 : vector<1x1x6x9x128xf32> to vector<1x6x9x128xf32>
    %57 = vector.extract_strided_slice %56 {offsets = [0, 1, 0, 0], sizes = [1, 5, 8, 128], strides = [1, 1, 1, 1]} : vector<1x6x9x128xf32> to vector<1x5x8x128xf32>
    %58 = vector.shape_cast %57 : vector<1x5x8x128xf32> to vector<40x128xf32>
    %59 = arith.truncf %58 : vector<40x128xf32> to vector<40x128xbf16>
    %c6 = arith.constant 6 : index
    %c0_53 = arith.constant 0 : index
    %c0_54 = arith.constant 0 : index
    %60 = vector.load %arg2[%c6, %c0_53, %c0_54] : memref<9x128x128xbf16, #tpu.memory_space<vmem>>, vector<1x128x128xbf16>
    %61 = vector.shape_cast %60 : vector<1x128x128xbf16> to vector<128x128xbf16>
    %cst_55 = arith.constant dense<0.000000e+00> : vector<40x128xf32>
    %62 = tpu.matmul %59, %61, %cst_55 {dimension_numbers = #tpu.dot_dimension_numbers<[1], [0], [0], [1], [0, 0, 1, 1], [], []>} : vector<40x128xbf16>, vector<128x128xbf16>, vector<40x128xf32> -> vector<40x128xf32>
    %63 = arith.addf %54, %62 : vector<40x128xf32>
    %c1_56 = arith.constant 1 : index
    %c0_57 = arith.constant 0 : index
    %c0_58 = arith.constant 0 : index
    %c0_59 = arith.constant 0 : index
    %c0_60 = arith.constant 0 : index
    %64 = vector.load %arg1[%c1_56, %c0_57, %c0_58, %c0_59, %c0_60] : memref<4x1x6x9x128xf32, #tpu.memory_space<vmem>>, vector<1x1x6x9x128xf32>
    %65 = vector.shape_cast %64 : vector<1x1x6x9x128xf32> to vector<1x6x9x128xf32>
    %66 = vector.extract_strided_slice %65 {offsets = [0, 1, 0, 0], sizes = [1, 5, 8, 128], strides = [1, 1, 1, 1]} : vector<1x6x9x128xf32> to vector<1x5x8x128xf32>
    %67 = vector.shape_cast %66 : vector<1x5x8x128xf32> to vector<40x128xf32>
    %68 = arith.truncf %67 : vector<40x128xf32> to vector<40x128xbf16>
    %c7 = arith.constant 7 : index
    %c0_61 = arith.constant 0 : index
    %c0_62 = arith.constant 0 : index
    %69 = vector.load %arg2[%c7, %c0_61, %c0_62] : memref<9x128x128xbf16, #tpu.memory_space<vmem>>, vector<1x128x128xbf16>
    %70 = vector.shape_cast %69 : vector<1x128x128xbf16> to vector<128x128xbf16>
    %cst_63 = arith.constant dense<0.000000e+00> : vector<40x128xf32>
    %71 = tpu.matmul %68, %70, %cst_63 {dimension_numbers = #tpu.dot_dimension_numbers<[1], [0], [0], [1], [0, 0, 1, 1], [], []>} : vector<40x128xbf16>, vector<128x128xbf16>, vector<40x128xf32> -> vector<40x128xf32>
    %72 = arith.addf %63, %71 : vector<40x128xf32>
    %c0_64 = arith.constant 0 : index
    %c0_65 = arith.constant 0 : index
    %c0_66 = arith.constant 0 : index
    %c0_67 = arith.constant 0 : index
    %c0_68 = arith.constant 0 : index
    %73 = vector.load %arg1[%c0_64, %c0_65, %c0_66, %c0_67, %c0_68] : memref<4x1x6x9x128xf32, #tpu.memory_space<vmem>>, vector<1x1x6x9x128xf32>
    %74 = vector.shape_cast %73 : vector<1x1x6x9x128xf32> to vector<1x6x9x128xf32>
    %75 = vector.extract_strided_slice %74 {offsets = [0, 1, 1, 0], sizes = [1, 5, 8, 128], strides = [1, 1, 1, 1]} : vector<1x6x9x128xf32> to vector<1x5x8x128xf32>
    %76 = vector.shape_cast %75 : vector<1x5x8x128xf32> to vector<40x128xf32>
    %77 = arith.truncf %76 : vector<40x128xf32> to vector<40x128xbf16>
    %c8 = arith.constant 8 : index
    %c0_69 = arith.constant 0 : index
    %c0_70 = arith.constant 0 : index
    %78 = vector.load %arg2[%c8, %c0_69, %c0_70] : memref<9x128x128xbf16, #tpu.memory_space<vmem>>, vector<1x128x128xbf16>
    %79 = vector.shape_cast %78 : vector<1x128x128xbf16> to vector<128x128xbf16>
    %cst_71 = arith.constant dense<0.000000e+00> : vector<40x128xf32>
    %80 = tpu.matmul %77, %79, %cst_71 {dimension_numbers = #tpu.dot_dimension_numbers<[1], [0], [0], [1], [0, 0, 1, 1], [], []>} : vector<40x128xbf16>, vector<128x128xbf16>, vector<40x128xf32> -> vector<40x128xf32>
    %81 = arith.addf %72, %80 : vector<40x128xf32>
    %c0_72 = arith.constant 0 : index
    %c0_73 = arith.constant 0 : index
    %82 = vector.load %arg3[%c0_72, %c0_73] : memref<1x128xf32, #tpu.memory_space<vmem>>, vector<1x128xf32>
    %83 = vector.broadcast %82 : vector<1x128xf32> to vector<40x128xf32>
    %84 = arith.addf %81, %83 : vector<40x128xf32>
    %cst_74 = arith.constant 0.000000e+00 : f32
    %85 = vector.broadcast %cst_74 : f32 to vector<40x128xf32>
    %86 = arith.maximumf %84, %85 : vector<40x128xf32>
    %87 = vector.shape_cast %86 : vector<40x128xf32> to vector<1x5x8x128xf32>
    %88 = vector.extract_strided_slice %87 {offsets = [0, 0, 0, 0], sizes = [1, 5, 5, 128], strides = [1, 1, 1, 1]} : vector<1x5x8x128xf32> to vector<1x5x5x128xf32>
    %c0_75 = arith.constant 0 : index
    %c0_76 = arith.constant 0 : index
    %c0_77 = arith.constant 0 : index
    %c0_78 = arith.constant 0 : index
    %89 = vector.load %arg4[%c0_75, %c0_76, %c0_77, %c0_78] : memref<1x5x5x128xf32, #tpu.memory_space<vmem>>, vector<1x5x5x128xf32>
    tpu.vector_store %arg4[%c0_75, %c0_76, %c0_77, %c0_78], %88 {strides = array<i32>} : memref<1x5x5x128xf32, #tpu.memory_space<vmem>>, vector<1x5x5x128xf32>,
    return
  }
  func.func @transform_0(%arg0: i32) -> (i32, i32, i32, i32, i32) {
    %c0_i32 = arith.constant 0 : i32
    %c0_i32_0 = arith.constant 0 : i32
    %c0_i32_1 = arith.constant 0 : i32
    %c0_i32_2 = arith.constant 0 : i32
    %c0_i32_3 = arith.constant 0 : i32
    return %c0_i32, %arg0, %c0_i32_0, %c0_i32_1, %c0_i32_2 : i32, i32, i32, i32, i32
  }
  func.func @transform_1(%arg0: i32) -> (i32, i32, i32) {
    %c0_i32 = arith.constant 0 : i32
    %c0_i32_0 = arith.constant 0 : i32
    %c0_i32_1 = arith.constant 0 : i32
    %c0_i32_2 = arith.constant 0 : i32
    return %c0_i32, %c0_i32_0, %c0_i32_1 : i32, i32, i32
  }
  func.func @transform_2(%arg0: i32) -> (i32, i32) {
    %c0_i32 = arith.constant 0 : i32
    %c0_i32_0 = arith.constant 0 : i32
    %c0_i32_1 = arith.constant 0 : i32
    return %c0_i32, %c0_i32_0 : i32, i32
  }
  func.func @transform_3(%arg0: i32) -> (i32, i32, i32, i32) {
    %c0_i32 = arith.constant 0 : i32
    %c0_i32_0 = arith.constant 0 : i32
    %c0_i32_1 = arith.constant 0 : i32
    %c0_i32_2 = arith.constant 0 : i32
    return %arg0, %c0_i32, %c0_i32_0, %c0_i32_1 : i32, i32, i32, i32
  }
}

module attributes {stable_mosaic.version = 11 : i64} {
  func.func @_fc_kernel(%arg0: i32, %arg1: memref<2x3200xf32, #tpu.memory_space<vmem>>, %arg2: memref<3200x128xbf16, #tpu.memory_space<vmem>>, %arg3: memref<2x128xf32, #tpu.memory_space<vmem>>) attributes {dimension_semantics = [#tpu.dimension_semantics<parallel>], iteration_bounds = array<i64: 1>, scalar_prefetch = 0 : i64, scratch_operands = 0 : i64, tpu.core_type = #tpu.core_type<tc>, window_params = [{transform_indices = @transform_0, window_bounds = array<i64: 2, 3200>}, {pipeline_mode = #tpu.pipeline_mode<synchronous>, transform_indices = @transform_1, window_bounds = array<i64: 3200, 128>}, {transform_indices = @transform_2, window_bounds = array<i64: 2, 128>}]} {
    %c0 = arith.constant 0 : index
    %c0_0 = arith.constant 0 : index
    %0 = vector.load %arg1[%c0, %c0_0] : memref<2x3200xf32, #tpu.memory_space<vmem>>, vector<2x3200xf32>
    %1 = arith.truncf %0 : vector<2x3200xf32> to vector<2x3200xbf16>
    %c0_1 = arith.constant 0 : index
    %c0_2 = arith.constant 0 : index
    %2 = vector.load %arg2[%c0_1, %c0_2] : memref<3200x128xbf16, #tpu.memory_space<vmem>>, vector<3200x128xbf16>
    %cst = arith.constant dense<0.000000e+00> : vector<2x128xf32>
    %3 = tpu.matmul %1, %2, %cst {dimension_numbers = #tpu.dot_dimension_numbers<[1], [0], [0], [1], [0, 0, 1, 1], [], []>} : vector<2x3200xbf16>, vector<3200x128xbf16>, vector<2x128xf32> -> vector<2x128xf32>
    %c0_3 = arith.constant 0 : index
    %c0_4 = arith.constant 0 : index
    %4 = vector.load %arg3[%c0_3, %c0_4] : memref<2x128xf32, #tpu.memory_space<vmem>>, vector<2x128xf32>
    tpu.vector_store %arg3[%c0_3, %c0_4], %3 {strides = array<i32>} : memref<2x128xf32, #tpu.memory_space<vmem>>, vector<2x128xf32>,
    return
  }
  func.func @transform_0(%arg0: i32) -> (i32, i32) {
    %c0_i32 = arith.constant 0 : i32
    %c0_i32_0 = arith.constant 0 : i32
    return %arg0, %c0_i32 : i32, i32
  }
  func.func @transform_1(%arg0: i32) -> (i32, i32) {
    %c0_i32 = arith.constant 0 : i32
    %c0_i32_0 = arith.constant 0 : i32
    %c0_i32_1 = arith.constant 0 : i32
    return %c0_i32, %c0_i32_0 : i32, i32
  }
  func.func @transform_2(%arg0: i32) -> (i32, i32) {
    %c0_i32 = arith.constant 0 : i32
    %c0_i32_0 = arith.constant 0 : i32
    return %arg0, %c0_i32 : i32, i32
  }
}

</mosaic_0001>

<llo_original>
// kernel: cnn_2layer_fc_forward.4
$region0: #{cnn_2layer_fc_forward.4}
  #allocation0 [shape = 'u32[]', space=smem, size = 0x4, offset = 0x4, fixed_abs, tag = 'smem constant byte address 0x4 - core index']
  #allocation1 [shape = 'u32[144,128]{1,0:T(1,128)}', space=vmem, size = 0x12000, scoped, tag = 'internal scratch']
  %s0 = inlined_call_operand.vmem [shape: f32[4,2,6,9,128], index: 0, kind: input, shape index: {}]
  %s1 = inlined_call_operand.vmem [shape: bf16[9,128,128], index: 1, kind: input, shape index: {}]
  %s2 = inlined_call_operand.vmem [shape: f32[1,128], index: 2, kind: input, shape index: {}]
  %s3 = inlined_call_operand.vmem [shape: f32[2,5,5,128], index: 3, kind: output, shape index: {}]
  %s4 = sld [smem:[#allocation0]]
  $region83: #{cnn_2layer_fc_forward.4} parent=0
    _
  %s6 = ssub.s32 1, %s4
  %s7 = scalar_select 0, %s6, %s4
  $region1: #{cnn_2layer_fc_forward.4} parent=0
    #allocation2 [shape = 'u8[393216]{0}', space=vmem, size = 0x60000, scoped, tag = 'input window, operand 0']
    loop: start=0, step=1, limit=4
    $region2: #{cnn_2layer_fc_forward.4} parent=1 // loop_pre_header
      _
    $region3: #{cnn_2layer_fc_forward.4} parent=1 // loop_header
      %s9 = sphi 0, %s13
      %p10 = scmp.ge.s32.totalorder %s9, 4
      %s19 = sphi 0, %s21
      %s22 = sphi 0, %s19
      %s23 = sphi 0, %s22
      %s39 = sphi 0, %s23
      %s43 = sphi 0, %s43
      %s45 = sphi 0, %s43
      %s46 = sphi 0, %s45
      %s60 = sphi 0, %s46
      %s64 = sphi 0, %s64
      %s66 = sphi 0, %s64
      %s67 = sphi 0, %s66
      %s81 = sphi 0, %s67
      %s87 = sphi 0, %s89
      %s90 = sphi 0, %s87
      %s91 = sphi 0, %s90
      %s107 = sphi 0, %s91
    $region4: #{cnn_2layer_fc_forward.4} parent=1 // loop_header_branch
      %12 = sbr.rel (%p10) target = $region8
    $region5: #{cnn_2layer_fc_forward.4} parent=1 // loop_body
      %s14 = ssub.s32 %s9, 1
      %s15 = ssub.s32 %s9, 2
      %s16 = sadd.s32 %s9, 1
      %s17 = ssub.s32 %s9, %s16
      %p18 = scmp.eq.s32.totalorder %s17, 0
      %s20 = sadd.s32 %s19, 1
      %s21 = scalar_select %p18, %s19, %s20
      %p24 = pneg %p18
      %p25 = scmp.eq.s32.totalorder %s9, 1
      %p26 = por %p24, %p25
      %p27 = scmp.ne.s32.totalorder %s19, %s22
      %p28 = scmp.eq.s32.totalorder %s9, 0
      %p29 = por %p27, %p28
      %p30 = scmp.ne.s32.totalorder %s19, %s22
      %p31 = scmp.eq.s32.totalorder %s14, 1
      %p32 = por %p30, %p31
      %p33 = scmp.ne.s32.totalorder %s22, %s23
      %p34 = scmp.eq.s32.totalorder %s14, 0
      %p35 = por %p33, %p34
      %p36 = scmp.ne.s32.totalorder %s22, %s23
      %p37 = scmp.eq.s32.totalorder %s15, 1
      %p38 = por %p36, %p37
      %p40 = scmp.ne.s32.totalorder %s23, %s39
      %p41 = scmp.eq.s32.totalorder %s15, 0
      %p42 = por %p40, %p41
      %s44 = sadd.s32 %s43, 1
      %p47 = scmp.eq.s32.totalorder %s9, 1
      %p48 = scmp.ne.s32.totalorder %s43, %s45
      %p49 = scmp.eq.s32.totalorder %s9, 0
      %p50 = por %p48, %p49
      %p51 = scmp.ne.s32.totalorder %s43, %s45
      %p52 = scmp.eq.s32.totalorder %s14, 1
      %p53 = por %p51, %p52
      %p54 = scmp.ne.s32.totalorder %s45, %s46
      %p55 = scmp.eq.s32.totalorder %s14, 0
      %p56 = por %p54, %p55
      %p57 = scmp.ne.s32.totalorder %s45, %s46
      %p58 = scmp.eq.s32.totalorder %s15, 1
      %p59 = por %p57, %p58
      %p61 = scmp.ne.s32.totalorder %s46, %s60
      %p62 = scmp.eq.s32.totalorder %s15, 0
      %p63 = por %p61, %p62
      %s65 = sadd.s32 %s64, 1
      %p68 = scmp.eq.s32.totalorder %s9, 1
      %p69 = scmp.ne.s32.totalorder %s64, %s66
      %p70 = scmp.eq.s32.totalorder %s9, 0
      %p71 = por %p69, %p70
      %p72 = scmp.ne.s32.totalorder %s64, %s66
      %p73 = scmp.eq.s32.totalorder %s14, 1
      %p74 = por %p72, %p73
      %p75 = scmp.ne.s32.totalorder %s66, %s67
      %p76 = scmp.eq.s32.totalorder %s14, 0
      %p77 = por %p75, %p76
      %p78 = scmp.ne.s32.totalorder %s66, %s67
      %p79 = scmp.eq.s32.totalorder %s15, 1
      %p80 = por %p78, %p79
      %p82 = scmp.ne.s32.totalorder %s67, %s81
      %p83 = scmp.eq.s32.totalorder %s15, 0
      %p84 = por %p82, %p83
      %s85 = ssub.s32 %s9, %s16
      %p86 = scmp.eq.s32.totalorder %s85, 0
      %s88 = sadd.s32 %s87, 1
      %s89 = scalar_select %p86, %s87, %s88
      %p92 = pneg %p86
      %p93 = scmp.eq.s32.totalorder %s9, 1
      %p94 = por %p92, %p93
      %p95 = scmp.ne.s32.totalorder %s87, %s90
      %p96 = scmp.eq.s32.totalorder %s9, 0
      %p97 = por %p95, %p96
      %p98 = scmp.ne.s32.totalorder %s87, %s90
      %p99 = scmp.eq.s32.totalorder %s14, 1
      %p100 = por %p98, %p99
      %p101 = scmp.ne.s32.totalorder %s90, %s91
      %p102 = scmp.eq.s32.totalorder %s14, 0
      %p103 = por %p101, %p102
      %p104 = scmp.ne.s32.totalorder %s90, %s91
      %p105 = scmp.eq.s32.totalorder %s15, 1
      %p106 = por %p104, %p105
      %p108 = scmp.ne.s32.totalorder %s91, %s107
      %p109 = scmp.eq.s32.totalorder %s15, 0
      %p110 = por %p108, %p109
      %p111 = scmp.le.s32.totalorder 1, %s9
      %p112 = scmp.lt.s32.totalorder %s9, 3
      %p113 = pnand %p111, %p112
      %p114 = pneg %p113
      // Predicated region
      $region9: #{cnn_2layer_fc_forward.4} parent=5 // pred_check
        _
      $region10: #{cnn_2layer_fc_forward.4} parent=5 // pred_check_branch
        %116 = sbr.rel (%p113) target = $region12
      $region11: #{cnn_2layer_fc_forward.4} parent=5 // pred_region
        %s117 = ssub.s32 %s9, 1
        // Predicated region
        $region13: #{cnn_2layer_fc_forward.4} parent=11 // pred_check
          %p118 = pneg %p56
        $region14: #{cnn_2layer_fc_forward.4} parent=11 // pred_check_branch
          %120 = sbr.rel (%p118) target = $region16
        $region15: #{cnn_2layer_fc_forward.4} parent=11 // pred_region
          _
        $region16: #{cnn_2layer_fc_forward.4} parent=11 // pred_fallthru
          _
        // Predicated region
        $region17: #{cnn_2layer_fc_forward.4} parent=11 // pred_check
          %p121 = pneg %p77
        $region18: #{cnn_2layer_fc_forward.4} parent=11 // pred_check_branch
          %123 = sbr.rel (%p121) target = $region20
        $region19: #{cnn_2layer_fc_forward.4} parent=11 // pred_region
          _
        $region20: #{cnn_2layer_fc_forward.4} parent=11 // pred_fallthru
          _
      $region12: #{cnn_2layer_fc_forward.4} parent=5 // pred_fallthru
        _
      %p124 = scmp.lt.s32.totalorder %s9, 2
      // Predicated region
      $region21: #{cnn_2layer_fc_forward.4} parent=5 // pred_check
        %p125 = pneg %p124
      $region22: #{cnn_2layer_fc_forward.4} parent=5 // pred_check_branch
        %127 = sbr.rel (%p125) target = $region24
      $region23: #{cnn_2layer_fc_forward.4} parent=5 // pred_region
        // Predicated region
        $region25: #{cnn_2layer_fc_forward.4} parent=23 // pred_check
          %p128 = pneg %p29
        $region26: #{cnn_2layer_fc_forward.4} parent=23 // pred_check_branch
          %130 = sbr.rel (%p128) target = $region28
        $region27: #{cnn_2layer_fc_forward.4} parent=23 // pred_region
          %s131 = sand.u32 %s19, 1
          %s132 = sand.u32 %s19, 1
          %s133 = smul.addr %s132, 384
          %s134 = scalar_lea.vmem [#allocation2], %s133
          %s135 = smul.addr %s9, 12
          %s136 = smul.addr %s135, 8
          %s137 = scalar_lea.vmem %s0, %s136
          // Predicated region
          $region29: #{cnn_2layer_fc_forward.4} parent=27 // pred_check
            _
          $region30: #{cnn_2layer_fc_forward.4} parent=27 // pred_check_branch
            %139 = sbr.rel (0) target = $region32
          $region31: #{cnn_2layer_fc_forward.4} parent=27 // pred_region
            // Predicated region
            $region33: #{cnn_2layer_fc_forward.4} parent=31 // pred_check
              _
            $region34: #{cnn_2layer_fc_forward.4} parent=31 // pred_check_branch
              %141 = sbr.rel (0) target = $region36
            $region35: #{cnn_2layer_fc_forward.4} parent=31 // pred_region
              // Predicated region
              $region48: #{cnn_2layer_fc_forward.4} parent=35 // pred_check
                _
              $region49: #{cnn_2layer_fc_forward.4} parent=35 // pred_check_branch
                %250 = sbr.rel (0) target = $region51
              $region50: #{cnn_2layer_fc_forward.4} parent=35 // pred_region
                loop: start=0, step=1, limit=1
                $region52: #{cnn_2layer_fc_forward.4} parent=50 // loop_pre_header
                  _
                $region53: #{cnn_2layer_fc_forward.4} parent=50 // loop_header
                  %s252 = sphi 0, %s256
                  %p253 = scmp.ge.s32.totalorder %s252, 1
                  %s257 = sphi %s137, %s137
                  %s258 = sphi %s134, %s134
                $region54: #{cnn_2layer_fc_forward.4} parent=50 // loop_header_branch
                  %255 = sbr.rel (%p253) target = $region58
                $region55: #{cnn_2layer_fc_forward.4} parent=50 // loop_body
                  %v259 = vld [vmem:[%s257] sm:$0xff]
                  %260 = vst [vmem:[%s258] sm:$0xff] %v259
                  %v261 = vld [vmem:[%s257 + $0x8] sm:$0xff]
                  %262 = vst [vmem:[%s258 + $0x8] sm:$0xff] %v261
                  %v263 = vld [vmem:[%s257 + $0x10] sm:$0xff]
                  %264 = vst [vmem:[%s258 + $0x10] sm:$0xff] %v263
                  %v265 = vld [vmem:[%s257 + $0x18] sm:$0xff]
                  %266 = vst [vmem:[%s258 + $0x18] sm:$0xff] %v265
                  %v267 = vld [vmem:[%s257 + $0x20] sm:$0xff]
                  %268 = vst [vmem:[%s258 + $0x20] sm:$0xff] %v267
                  %v269 = vld [vmem:[%s257 + $0x28] sm:$0xff]
                  %270 = vst [vmem:[%s258 + $0x28] sm:$0xff] %v269
                  %v271 = vld [vmem:[%s257 + $0x30] sm:$0xff]
                  %272 = vst [vmem:[%s258 + $0x30] sm:$0xff] %v271
                  %v273 = vld [vmem:[%s257 + $0x38] sm:$0xff]
                  %274 = vst [vmem:[%s258 + $0x38] sm:$0xff] %v273
                  %v275 = vld [vmem:[%s257 + $0x40] sm:$0xff]
                  %276 = vst [vmem:[%s258 + $0x40] sm:$0xff] %v275
                  %v277 = vld [vmem:[%s257 + $0x48] sm:$0xff]
                  %278 = vst [vmem:[%s258 + $0x48] sm:$0xff] %v277
                  %v279 = vld [vmem:[%s257 + $0x50] sm:$0xff]
                  %280 = vst [vmem:[%s258 + $0x50] sm:$0xff] %v279
                  %v281 = vld [vmem:[%s257 + $0x58] sm:$0xff]
                  %282 = vst [vmem:[%s258 + $0x58] sm:$0xff] %v281
                  %v283 = vld [vmem:[%s257 + $0xc0] sm:$0xff]
                  %284 = vst [vmem:[%s258 + $0x60] sm:$0xff] %v283
                  %v285 = vld [vmem:[%s257 + $0xc8] sm:$0xff]
                  %286 = vst [vmem:[%s258 + $0x68] sm:$0xff] %v285
                  %v287 = vld [vmem:[%s257 + $0xd0] sm:$0xff]
                  %288 = vst [vmem:[%s258 + $0x70] sm:$0xff] %v287
                  %v289 = vld [vmem:[%s257 + $0xd8] sm:$0xff]
                  %290 = vst [vmem:[%s258 + $0x78] sm:$0xff] %v289
                  %v291 = vld [vmem:[%s257 + $0xe0] sm:$0xff]
                  %292 = vst [vmem:[%s258 + $0x80] sm:$0xff] %v291
                  %v293 = vld [vmem:[%s257 + $0xe8] sm:$0xff]
                  %294 = vst [vmem:[%s258 + $0x88] sm:$0xff] %v293
                  %v295 = vld [vmem:[%s257 + $0xf0] sm:$0xff]
                  %296 = vst [vmem:[%s258 + $0x90] sm:$0xff] %v295
                  %v297 = vld [vmem:[%s257 + $0xf8] sm:$0xff]
                  %298 = vst [vmem:[%s258 + $0x98] sm:$0xff] %v297
                  %v299 = vld [vmem:[%s257 + $0x100] sm:$0xff]
                  %300 = vst [vmem:[%s258 + $0xa0] sm:$0xff] %v299
                  %v301 = vld [vmem:[%s257 + $0x108] sm:$0xff]
                  %302 = vst [vmem:[%s258 + $0xa8] sm:$0xff] %v301
                  %v303 = vld [vmem:[%s257 + $0x110] sm:$0xff]
                  %304 = vst [vmem:[%s258 + $0xb0] sm:$0xff] %v303
                  %v305 = vld [vmem:[%s257 + $0x118] sm:$0xff]
                  %306 = vst [vmem:[%s258 + $0xb8] sm:$0xff] %v305
                  %v307 = vld [vmem:[%s257 + $0x180] sm:$0xff]
                  %308 = vst [vmem:[%s258 + $0xc0] sm:$0xff] %v307
                  %v309 = vld [vmem:[%s257 + $0x188] sm:$0xff]
                  %310 = vst [vmem:[%s258 + $0xc8] sm:$0xff] %v309
                  %v311 = vld [vmem:[%s257 + $0x190] sm:$0xff]
                  %312 = vst [vmem:[%s258 + $0xd0] sm:$0xff] %v311
                  %v313 = vld [vmem:[%s257 + $0x198] sm:$0xff]
                  %314 = vst [vmem:[%s258 + $0xd8] sm:$0xff] %v313
                  %v315 = vld [vmem:[%s257 + $0x1a0] sm:$0xff]
                  %316 = vst [vmem:[%s258 + $0xe0] sm:$0xff] %v315
                  %v317 = vld [vmem:[%s257 + $0x1a8] sm:$0xff]
                  %318 = vst [vmem:[%s258 + $0xe8] sm:$0xff] %v317
                  %v319 = vld [vmem:[%s257 + $0x1b0] sm:$0xff]
                  %320 = vst [vmem:[%s258 + $0xf0] sm:$0xff] %v319
                  %v321 = vld [vmem:[%s257 + $0x1b8] sm:$0xff]
                  %322 = vst [vmem:[%s258 + $0xf8] sm:$0xff] %v321
                  %v323 = vld [vmem:[%s257 + $0x1c0] sm:$0xff]
                  %324 = vst [vmem:[%s258 + $0x100] sm:$0xff] %v323
                  %v325 = vld [vmem:[%s257 + $0x1c8] sm:$0xff]
                  %326 = vst [vmem:[%s258 + $0x108] sm:$0xff] %v325
                  %v327 = vld [vmem:[%s257 + $0x1d0] sm:$0xff]
                  %328 = vst [vmem:[%s258 + $0x110] sm:$0xff] %v327
                  %v329 = vld [vmem:[%s257 + $0x1d8] sm:$0xff]
                  %330 = vst [vmem:[%s258 + $0x118] sm:$0xff] %v329
                  %v331 = vld [vmem:[%s257 + $0x240] sm:$0xff]
                  %332 = vst [vmem:[%s258 + $0x120] sm:$0xff] %v331
                  %v333 = vld [vmem:[%s257 + $0x248] sm:$0xff]
                  %334 = vst [vmem:[%s258 + $0x128] sm:$0xff] %v333
                  %v335 = vld [vmem:[%s257 + $0x250] sm:$0xff]
                  %336 = vst [vmem:[%s258 + $0x130] sm:$0xff] %v335
                  %v337 = vld [vmem:[%s257 + $0x258] sm:$0xff]
                  %338 = vst [vmem:[%s258 + $0x138] sm:$0xff] %v337
                  %v339 = vld [vmem:[%s257 + $0x260] sm:$0xff]
                  %340 = vst [vmem:[%s258 + $0x140] sm:$0xff] %v339
                  %v341 = vld [vmem:[%s257 + $0x268] sm:$0xff]
                  %342 = vst [vmem:[%s258 + $0x148] sm:$0xff] %v341
                  %v343 = vld [vmem:[%s257 + $0x270] sm:$0xff]
                  %344 = vst [vmem:[%s258 + $0x150] sm:$0xff] %v343
                  %v345 = vld [vmem:[%s257 + $0x278] sm:$0xff]
                  %346 = vst [vmem:[%s258 + $0x158] sm:$0xff] %v345
                  %v347 = vld [vmem:[%s257 + $0x280] sm:$0xff]
                  %348 = vst [vmem:[%s258 + $0x160] sm:$0xff] %v347
                  %v349 = vld [vmem:[%s257 + $0x288] sm:$0xff]
                  %350 = vst [vmem:[%s258 + $0x168] sm:$0xff] %v349
                  %v351 = vld [vmem:[%s257 + $0x290] sm:$0xff]
                  %352 = vst [vmem:[%s258 + $0x170] sm:$0xff] %v351
                  %v353 = vld [vmem:[%s257 + $0x298] sm:$0xff]
                  %354 = vst [vmem:[%s258 + $0x178] sm:$0xff] %v353
                $region56: #{cnn_2layer_fc_forward.4} parent=50 // loop_footer
                  %s256 = sadd.s32 1, %s252
                $region57: #{cnn_2layer_fc_forward.4} parent=50 // loop_footer_branch
                  %251 = sbr.rel target = $region53
                $region58: #{cnn_2layer_fc_forward.4} parent=50 // loop_exit
                  _
              $region51: #{cnn_2layer_fc_forward.4} parent=35 // pred_fallthru
                _
              // Predicated region
              $region59: #{cnn_2layer_fc_forward.4} parent=35 // pred_check
                _
              $region60: #{cnn_2layer_fc_forward.4} parent=35 // pred_check_branch
                %356 = sbr.rel target = $region62
              $region61: #{cnn_2layer_fc_forward.4} parent=35 // pred_region
                _
              $region62: #{cnn_2layer_fc_forward.4} parent=35 // pred_fallthru
                _
            $region36: #{cnn_2layer_fc_forward.4} parent=31 // pred_fallthru
              _
            // Predicated region
            $region37: #{cnn_2layer_fc_forward.4} parent=31 // pred_check
              _
            $region38: #{cnn_2layer_fc_forward.4} parent=31 // pred_check_branch
              %143 = sbr.rel target = $region40
            $region39: #{cnn_2layer_fc_forward.4} parent=31 // pred_region
              loop: start=0, step=1, limit=1
              $region41: #{cnn_2layer_fc_forward.4} parent=39 // loop_pre_header
                _
              $region42: #{cnn_2layer_fc_forward.4} parent=39 // loop_header
                %s146 = sphi 0, %s150
                %p147 = scmp.ge.s32.totalorder %s146, 1
                %s151 = sphi %s137, %s137
                %s152 = sphi %s134, %s134
              $region43: #{cnn_2layer_fc_forward.4} parent=39 // loop_header_branch
                %149 = sbr.rel (%p147) target = $region47
              $region44: #{cnn_2layer_fc_forward.4} parent=39 // loop_body
                %v153 = vld [vmem:[%s151] sm:$0xff]
                %154 = vst [vmem:[%s152] sm:$0xff] %v153
                %v155 = vld [vmem:[%s151 + $0x8] sm:$0xff]
                %156 = vst [vmem:[%s152 + $0x8] sm:$0xff] %v155
                %v157 = vld [vmem:[%s151 + $0x10] sm:$0xff]
                %158 = vst [vmem:[%s152 + $0x10] sm:$0xff] %v157
                %v159 = vld [vmem:[%s151 + $0x18] sm:$0xff]
                %160 = vst [vmem:[%s152 + $0x18] sm:$0xff] %v159
                %v161 = vld [vmem:[%s151 + $0x20] sm:$0xff]
                %162 = vst [vmem:[%s152 + $0x20] sm:$0xff] %v161
                %v163 = vld [vmem:[%s151 + $0x28] sm:$0xff]
                %164 = vst [vmem:[%s152 + $0x28] sm:$0xff] %v163
                %v165 = vld [vmem:[%s151 + $0x30] sm:$0xff]
                %166 = vst [vmem:[%s152 + $0x30] sm:$0xff] %v165
                %v167 = vld [vmem:[%s151 + $0x38] sm:$0xff]
                %168 = vst [vmem:[%s152 + $0x38] sm:$0xff] %v167
                %v169 = vld [vmem:[%s151 + $0x40] sm:$0xff]
                %170 = vst [vmem:[%s152 + $0x40] sm:$0xff] %v169
                %v171 = vld [vmem:[%s151 + $0x48] sm:$0xff]
                %172 = vst [vmem:[%s152 + $0x48] sm:$0xff] %v171
                %v173 = vld [vmem:[%s151 + $0x50] sm:$0xff]
                %174 = vst [vmem:[%s152 + $0x50] sm:$0xff] %v173
                %v175 = vld [vmem:[%s151 + $0x58] sm:$0xff]
                %176 = vst [vmem:[%s152 + $0x58] sm:$0xff] %v175
                %v177 = vld [vmem:[%s151 + $0xc0] sm:$0xff]
                %178 = vst [vmem:[%s152 + $0x60] sm:$0xff] %v177
                %v179 = vld [vmem:[%s151 + $0xc8] sm:$0xff]
                %180 = vst [vmem:[%s152 + $0x68] sm:$0xff] %v179
                %v181 = vld [vmem:[%s151 + $0xd0] sm:$0xff]
                %182 = vst [vmem:[%s152 + $0x70] sm:$0xff] %v181
                %v183 = vld [vmem:[%s151 + $0xd8] sm:$0xff]
                %184 = vst [vmem:[%s152 + $0x78] sm:$0xff] %v183
                %v185 = vld [vmem:[%s151 + $0xe0] sm:$0xff]
                %186 = vst [vmem:[%s152 + $0x80] sm:$0xff] %v185
                %v187 = vld [vmem:[%s151 + $0xe8] sm:$0xff]
                %188 = vst [vmem:[%s152 + $0x88] sm:$0xff] %v187
                %v189 = vld [vmem:[%s151 + $0xf0] sm:$0xff]
                %190 = vst [vmem:[%s152 + $0x90] sm:$0xff] %v189
                %v191 = vld [vmem:[%s151 + $0xf8] sm:$0xff]
                %192 = vst [vmem:[%s152 + $0x98] sm:$0xff] %v191
                %v193 = vld [vmem:[%s151 + $0x100] sm:$0xff]
                %194 = vst [vmem:[%s152 + $0xa0] sm:$0xff] %v193
                %v195 = vld [vmem:[%s151 + $0x108] sm:$0xff]
                %196 = vst [vmem:[%s152 + $0xa8] sm:$0xff] %v195
                %v197 = vld [vmem:[%s151 + $0x110] sm:$0xff]
                %198 = vst [vmem:[%s152 + $0xb0] sm:$0xff] %v197
                %v199 = vld [vmem:[%s151 + $0x118] sm:$0xff]
                %200 = vst [vmem:[%s152 + $0xb8] sm:$0xff] %v199
                %v201 = vld [vmem:[%s151 + $0x180] sm:$0xff]
                %202 = vst [vmem:[%s152 + $0xc0] sm:$0xff] %v201
                %v203 = vld [vmem:[%s151 + $0x188] sm:$0xff]
                %204 = vst [vmem:[%s152 + $0xc8] sm:$0xff] %v203
                %v205 = vld [vmem:[%s151 + $0x190] sm:$0xff]
                %206 = vst [vmem:[%s152 + $0xd0] sm:$0xff] %v205
                %v207 = vld [vmem:[%s151 + $0x198] sm:$0xff]
                %208 = vst [vmem:[%s152 + $0xd8] sm:$0xff] %v207
                %v209 = vld [vmem:[%s151 + $0x1a0] sm:$0xff]
                %210 = vst [vmem:[%s152 + $0xe0] sm:$0xff] %v209
                %v211 = vld [vmem:[%s151 + $0x1a8] sm:$0xff]
                %212 = vst [vmem:[%s152 + $0xe8] sm:$0xff] %v211
                %v213 = vld [vmem:[%s151 + $0x1b0] sm:$0xff]
                %214 = vst [vmem:[%s152 + $0xf0] sm:$0xff] %v213
                %v215 = vld [vmem:[%s151 + $0x1b8] sm:$0xff]
                %216 = vst [vmem:[%s152 + $0xf8] sm:$0xff] %v215
                %v217 = vld [vmem:[%s151 + $0x1c0] sm:$0xff]
                %218 = vst [vmem:[%s152 + $0x100] sm:$0xff] %v217
                %v219 = vld [vmem:[%s151 + $0x1c8] sm:$0xff]
                %220 = vst [vmem:[%s152 + $0x108] sm:$0xff] %v219
                %v221 = vld [vmem:[%s151 + $0x1d0] sm:$0xff]
                %222 = vst [vmem:[%s152 + $0x110] sm:$0xff] %v221
                %v223 = vld [vmem:[%s151 + $0x1d8] sm:$0xff]
                %224 = vst [vmem:[%s152 + $0x118] sm:$0xff] %v223
                %v225 = vld [vmem:[%s151 + $0x240] sm:$0xff]
                %226 = vst [vmem:[%s152 + $0x120] sm:$0xff] %v225
                %v227 = vld [vmem:[%s151 + $0x248] sm:$0xff]
                %228 = vst [vmem:[%s152 + $0x128] sm:$0xff] %v227
                %v229 = vld [vmem:[%s151 + $0x250] sm:$0xff]
                %230 = vst [vmem:[%s152 + $0x130] sm:$0xff] %v229
                %v231 = vld [vmem:[%s151 + $0x258] sm:$0xff]
                %232 = vst [vmem:[%s152 + $0x138] sm:$0xff] %v231
                %v233 = vld [vmem:[%s151 + $0x260] sm:$0xff]
                %234 = vst [vmem:[%s152 + $0x140] sm:$0xff] %v233
                %v235 = vld [vmem:[%s151 + $0x268] sm:$0xff]
                %236 = vst [vmem:[%s152 + $0x148] sm:$0xff] %v235
                %v237 = vld [vmem:[%s151 + $0x270] sm:$0xff]
                %238 = vst [vmem:[%s152 + $0x150] sm:$0xff] %v237
                %v239 = vld [vmem:[%s151 + $0x278] sm:$0xff]
                %240 = vst [vmem:[%s152 + $0x158] sm:$0xff] %v239
                %v241 = vld [vmem:[%s151 + $0x280] sm:$0xff]
                %242 = vst [vmem:[%s152 + $0x160] sm:$0xff] %v241
                %v243 = vld [vmem:[%s151 + $0x288] sm:$0xff]
                %244 = vst [vmem:[%s152 + $0x168] sm:$0xff] %v243
                %v245 = vld [vmem:[%s151 + $0x290] sm:$0xff]
                %246 = vst [vmem:[%s152 + $0x170] sm:$0xff] %v245
                %v247 = vld [vmem:[%s151 + $0x298] sm:$0xff]
                %248 = vst [vmem:[%s152 + $0x178] sm:$0xff] %v247
              $region45: #{cnn_2layer_fc_forward.4} parent=39 // loop_footer
                %s150 = sadd.s32 1, %s146
              $region46: #{cnn_2layer_fc_forward.4} parent=39 // loop_footer_branch
                %145 = sbr.rel target = $region42
              $region47: #{cnn_2layer_fc_forward.4} parent=39 // loop_exit
                _
            $region40: #{cnn_2layer_fc_forward.4} parent=31 // pred_fallthru
              _
          $region32: #{cnn_2layer_fc_forward.4} parent=27 // pred_fallthru
            _
          %357 = vnop
        $region28: #{cnn_2layer_fc_forward.4} parent=23 // pred_fallthru
          _
      $region24: #{cnn_2layer_fc_forward.4} parent=5 // pred_fallthru
        _
      %p358 = scmp.le.s32.totalorder 1, %s9
      %p359 = scmp.lt.s32.totalorder %s9, 3
      %p360 = pnand %p358, %p359
      %p361 = pneg %p360
      // Predicated region
      $region63: #{cnn_2layer_fc_forward.4} parent=5 // pred_check
        _
      $region64: #{cnn_2layer_fc_forward.4} parent=5 // pred_check_branch
        %363 = sbr.rel (%p360) target = $region66
      $region65: #{cnn_2layer_fc_forward.4} parent=5 // pred_region
        %s364 = ssub.s32 %s9, 1
        %s365 = sand.u32 %s22, 1
        %s366 = sand.u32 %s22, 1
        %s367 = smul.addr %s366, 384
        %s368 = scalar_lea.vmem [#allocation2], %s367
        // Predicated region
        $region67: #{cnn_2layer_fc_forward.4} parent=65 // pred_check
          %p369 = pneg %p35
        $region68: #{cnn_2layer_fc_forward.4} parent=65 // pred_check_branch
          %371 = sbr.rel (%p369) target = $region70
        $region69: #{cnn_2layer_fc_forward.4} parent=65 // pred_region
          _
        $region70: #{cnn_2layer_fc_forward.4} parent=65 // pred_fallthru
          _
        %s372 = sand.u32 %s22, 1
        %s373 = sand.u32 %s22, 1
        %s374 = smul.addr %s373, 384
        %s375 = scalar_lea.vmem [#allocation2], %s374
        %p376 = pneg %p35
        %p377 = pneg %p32
        %p378 = pneg %p56
        %p379 = pneg %p53
        %p380 = pneg %p77
        %p381 = pneg %p74
        %p382 = pneg %p103
        %p383 = pneg %p100
        %p384 = scmp.lt.s32.totalorder %s14, 1
        %s385 = scalar_select %p384, %s14, 1
        %s386 = smul.addr %s385, 5
        %s387 = smul.addr %s386, 8
        %s388 = scalar_lea.vmem %s3, %s387
        %p389 = scmp.lt.s32.totalorder %s14, 1
        %s390 = scalar_select %p389, %s14, 1
        %s391 = smul.addr %s390, 5
        %s392 = smul.addr %s391, 8
        %s393 = scalar_lea.vmem %s3, %s392
        %v395 = vld [vmem:[%s368] sm:$0xff]
        %v396 = vld [vmem:[%s368 + $0x8] sm:$0x1]
        %v397 = vld [vmem:[%s368 + $0x10] sm:$0xff]
        %v398 = vld [vmem:[%s368 + $0x18] sm:$0x1]
        %v399 = vld [vmem:[%s368 + $0x20] sm:$0xff]
        %v400 = vld [vmem:[%s368 + $0x28] sm:$0x1]
        %v401 = vld [vmem:[%s368 + $0x30] sm:$0xff]
        %v402 = vld [vmem:[%s368 + $0x38] sm:$0x1]
        %v403 = vld [vmem:[%s368 + $0x40] sm:$0xff]
        %v404 = vld [vmem:[%s368 + $0x48] sm:$0x1]
        %v405 = vld [vmem:[%s368 + $0x50] sm:$0xff]
        %v406 = vld [vmem:[%s368 + $0x58] sm:$0x1]
        %v407 = vpack.c.bf16 %v397, %v395
        %v408 = vpack.c.bf16 %v401, %v399
        %v409 = vpack.c.bf16 %v403, %v403
        %v410 = vld [vmem:[%s1] sm:$0xf]
        %v411 = vld [vmem:[%s1 + $0x4] sm:$0xf]
        %v412 = vld [vmem:[%s1 + $0x8] sm:$0xf]
        %v413 = vld [vmem:[%s1 + $0xc] sm:$0xf]
        %v414 = vld [vmem:[%s1 + $0x10] sm:$0xf]
        %v415 = vld [vmem:[%s1 + $0x14] sm:$0xf]
        %v416 = vld [vmem:[%s1 + $0x18] sm:$0xf]
        %v417 = vld [vmem:[%s1 + $0x1c] sm:$0xf]
        %v418 = vld [vmem:[%s1 + $0x20] sm:$0xf]
        %v419 = vld [vmem:[%s1 + $0x24] sm:$0xf]
        %v420 = vld [vmem:[%s1 + $0x28] sm:$0xf]
        %v421 = vld [vmem:[%s1 + $0x2c] sm:$0xf]
        %v422 = vld [vmem:[%s1 + $0x30] sm:$0xf]
        %v423 = vld [vmem:[%s1 + $0x34] sm:$0xf]
        %v424 = vld [vmem:[%s1 + $0x38] sm:$0xf]
        %v425 = vld [vmem:[%s1 + $0x3c] sm:$0xf]
        %s426 = scalar_lea.vmem %s368, 96 [#allocation2]
        %v427 = vld [vmem:[%s426] sm:$0xff]
        %v428 = vld [vmem:[%s426 + $0x10] sm:$0xff]
        %v429 = vld [vmem:[%s426 + $0x20] sm:$0xff]
        %v430 = vld [vmem:[%s426 + $0x30] sm:$0xff]
        %v431 = vld [vmem:[%s426 + $0x40] sm:$0xff]
        %v432 = vld [vmem:[%s426 + $0x50] sm:$0xff]
        %v433 = vpack.c.bf16 %v428, %v427
        %v434 = vpack.c.bf16 %v430, %v429
        %v435 = vpack.c.bf16 %v431, %v431
        %s436 = scalar_lea.vmem %s1, 64
        %v437 = vld [vmem:[%s436] sm:$0xf]
        %v438 = vld [vmem:[%s436 + $0x4] sm:$0xf]
        %v439 = vld [vmem:[%s436 + $0x8] sm:$0xf]
        %v440 = vld [vmem:[%s436 + $0xc] sm:$0xf]
        %v441 = vld [vmem:[%s436 + $0x10] sm:$0xf]
        %v442 = vld [vmem:[%s436 + $0x14] sm:$0xf]
        %v443 = vld [vmem:[%s436 + $0x18] sm:$0xf]
        %v444 = vld [vmem:[%s436 + $0x1c] sm:$0xf]
        %v445 = vld [vmem:[%s436 + $0x20] sm:$0xf]
        %v446 = vld [vmem:[%s436 + $0x24] sm:$0xf]
        %v447 = vld [vmem:[%s436 + $0x28] sm:$0xf]
        %v448 = vld [vmem:[%s436 + $0x2c] sm:$0xf]
        %v449 = vld [vmem:[%s436 + $0x30] sm:$0xf]
        %v450 = vld [vmem:[%s436 + $0x34] sm:$0xf]
        %v451 = vld [vmem:[%s436 + $0x38] sm:$0xf]
        %v452 = vld [vmem:[%s436 + $0x3c] sm:$0xf]
        %v469 = vunpack.c.l.b16 %v437
        %v470 = vunpack.c.l.b16 %v438
        %v471 = vunpack.c.l.b16 %v439
        %v472 = vunpack.c.l.b16 %v440
        %v473 = vunpack.c.l.b16 %v441
        %v474 = vunpack.c.l.b16 %v442
        %v475 = vunpack.c.l.b16 %v443
        %v476 = vunpack.c.l.b16 %v444
        %v477 = vunpack.c.l.b16 %v445
        %v478 = vunpack.c.l.b16 %v446
        %v479 = vunpack.c.l.b16 %v447
        %v480 = vunpack.c.l.b16 %v448
        %v481 = vunpack.c.l.b16 %v449
        %v482 = vunpack.c.l.b16 %v450
        %v483 = vunpack.c.l.b16 %v451
        %v484 = vunpack.c.l.b16 %v452
        %v485 = vpack.c.b16 %v470, %v469
        %v486 = vpack.c.b16 %v472, %v471
        %v487 = vpack.c.b16 %v474, %v473
        %v488 = vpack.c.b16 %v476, %v475
        %v489 = vpack.c.b16 %v478, %v477
        %v490 = vpack.c.b16 %v480, %v479
        %v491 = vpack.c.b16 %v482, %v481
        %v492 = vpack.c.b16 %v484, %v483
        %501 = vmatprep.subr.bf16.mxu0 0
        %502 = vmatpush1.bf16.msra.mxu0 %v485
        %503 = vmatprep.subr.bf16.mxu0 0
        %504 = vmatpush1.bf16.msra.mxu0 %v486
        %505 = vmatprep.subr.bf16.mxu0 0
        %506 = vmatpush1.bf16.msra.mxu0 %v487
        %507 = vmatprep.subr.bf16.mxu0 0
        %508 = vmatpush1.bf16.msra.mxu0 %v488
        %509 = vmatprep.subr.bf16.mxu0 0
        %510 = vmatpush1.bf16.msra.mxu0 %v489
        %511 = vmatprep.subr.bf16.mxu0 0
        %512 = vmatpush1.bf16.msra.mxu0 %v490
        %513 = vmatprep.subr.bf16.mxu0 0
        %514 = vmatpush1.bf16.msra.mxu0 %v491
        %515 = vmatprep.subr.bf16.mxu0 0
        %516 = vmatpush1.bf16.msra.mxu0 %v492
        %517 = vmatprep.subr.bf16.mxu0 0
        %518 = vmatpush1.bf16.msra.mxu0 0
        %519 = vmatprep.subr.bf16.mxu0 0
        %520 = vmatpush1.bf16.msra.mxu0 0
        %521 = vmatprep.subr.bf16.mxu0 0
        %522 = vmatpush1.bf16.msra.mxu0 0
        %523 = vmatprep.subr.bf16.mxu0 0
        %524 = vmatpush1.bf16.msra.mxu0 0
        %525 = vmatprep.subr.bf16.mxu0 0
        %526 = vmatpush1.bf16.msra.mxu0 0
        %527 = vmatprep.subr.bf16.mxu0 0
        %528 = vmatpush1.bf16.msra.mxu0 0
        %529 = vmatprep.subr.bf16.mxu0 0
        %530 = vmatpush1.bf16.msra.mxu0 0
        %531 = vmatprep.subr.bf16.mxu0 0
        %532 = vmatpush1.bf16.msra.mxu0 0
        %533 = vmatprep.mubr.bf16.mxu0 0
        %534 = vmatmul.mubr.bf16.gmra.mrb[0].mxu0 %v433
        %v535 = vpop.f32.mrb[0].mxu0
        %v536 = vadd.f32 0.0, %v535
        %v537 = vpop.f32.mrb[0].mxu0
        %v538 = vpop.f32.mrb[0].mxu0
        %v539 = vadd.f32 0.0, %v538
        %v540 = vpop.f32.mrb[0].mxu0
        %541 = vmatprep.mubr.bf16.mxu0 0
        %542 = vmatmul.mubr.bf16.gmra.mrb[0].mxu0 %v434
        %v543 = vpop.f32.mrb[0].mxu0
        %v544 = vadd.f32 0.0, %v543
        %v545 = vpop.f32.mrb[0].mxu0
        %v546 = vpop.f32.mrb[0].mxu0
        %v547 = vadd.f32 0.0, %v546
        %v548 = vpop.f32.mrb[0].mxu0
        %549 = vmatprep.mubr.bf16.mxu0 0
        %550 = vmatmul.mubr.bf16.gmra.mrb[0].mxu0 %v435
        %v551 = vpop.f32.mrb[0].mxu0
        %v552 = vadd.f32 0.0, %v551
        %v553 = vpop.f32.mrb[0].mxu0
        %v554 = vpop.f32.mrb[0].mxu0
        %v555 = vpop.f32.mrb[0].mxu0
        %556 = vdwg.mxu0
        %v573 = vunpack.c.l.b16 %v410
        %v574 = vunpack.c.l.b16 %v411
        %v575 = vunpack.c.l.b16 %v412
        %v576 = vunpack.c.l.b16 %v413
        %v577 = vunpack.c.l.b16 %v414
        %v578 = vunpack.c.l.b16 %v415
        %v579 = vunpack.c.l.b16 %v416
        %v580 = vunpack.c.l.b16 %v417
        %v581 = vunpack.c.l.b16 %v418
        %v582 = vunpack.c.l.b16 %v419
        %v583 = vunpack.c.l.b16 %v420
        %v584 = vunpack.c.l.b16 %v421
        %v585 = vunpack.c.l.b16 %v422
        %v586 = vunpack.c.l.b16 %v423
        %v587 = vunpack.c.l.b16 %v424
        %v588 = vunpack.c.l.b16 %v425
        %v589 = vpack.c.b16 %v574, %v573
        %v590 = vpack.c.b16 %v576, %v575
        %v591 = vpack.c.b16 %v578, %v577
        %v592 = vpack.c.b16 %v580, %v579
        %v593 = vpack.c.b16 %v582, %v581
        %v594 = vpack.c.b16 %v584, %v583
        %v595 = vpack.c.b16 %v586, %v585
        %v596 = vpack.c.b16 %v588, %v587
        %605 = vmatprep.subr.bf16.mxu0 0
        %606 = vmatpush1.bf16.msra.mxu0 %v589
        %607 = vmatprep.subr.bf16.mxu0 0
        %608 = vmatpush1.bf16.msra.mxu0 %v590
        %609 = vmatprep.subr.bf16.mxu0 0
        %610 = vmatpush1.bf16.msra.mxu0 %v591
        %611 = vmatprep.subr.bf16.mxu0 0
        %612 = vmatpush1.bf16.msra.mxu0 %v592
        %613 = vmatprep.subr.bf16.mxu0 0
        %614 = vmatpush1.bf16.msra.mxu0 %v593
        %615 = vmatprep.subr.bf16.mxu0 0
        %616 = vmatpush1.bf16.msra.mxu0 %v594
        %617 = vmatprep.subr.bf16.mxu0 0
        %618 = vmatpush1.bf16.msra.mxu0 %v595
        %619 = vmatprep.subr.bf16.mxu0 0
        %620 = vmatpush1.bf16.msra.mxu0 %v596
        %621 = vmatprep.subr.bf16.mxu0 0
        %622 = vmatpush1.bf16.msra.mxu0 0
        %623 = vmatprep.subr.bf16.mxu0 0
        %624 = vmatpush1.bf16.msra.mxu0 0
        %625 = vmatprep.subr.bf16.mxu0 0
        %626 = vmatpush1.bf16.msra.mxu0 0
        %627 = vmatprep.subr.bf16.mxu0 0
        %628 = vmatpush1.bf16.msra.mxu0 0
        %629 = vmatprep.subr.bf16.mxu0 0
        %630 = vmatpush1.bf16.msra.mxu0 0
        %631 = vmatprep.subr.bf16.mxu0 0
        %632 = vmatpush1.bf16.msra.mxu0 0
        %633 = vmatprep.subr.bf16.mxu0 0
        %634 = vmatpush1.bf16.msra.mxu0 0
        %635 = vmatprep.subr.bf16.mxu0 0
        %636 = vmatpush1.bf16.msra.mxu0 0
        %637 = vmatprep.mubr.bf16.mxu0 0
        %638 = vmatmul.mubr.bf16.gmra.mrb[0].mxu0 %v407
        %v639 = vpop.f32.mrb[0].mxu0
        %v640 = vadd.f32 %v536, %v639
        %v641 = vpop.f32.mrb[0].mxu0
        %v642 = vpop.f32.mrb[0].mxu0
        %v643 = vadd.f32 %v539, %v642
        %v644 = vpop.f32.mrb[0].mxu0
        %645 = vmatprep.mubr.bf16.mxu0 0
        %646 = vmatmul.mubr.bf16.gmra.mrb[0].mxu0 %v408
        %v647 = vpop.f32.mrb[0].mxu0
        %v648 = vadd.f32 %v544, %v647
        %v649 = vpop.f32.mrb[0].mxu0
        %v650 = vpop.f32.mrb[0].mxu0
        %v651 = vadd.f32 %v547, %v650
        %v652 = vpop.f32.mrb[0].mxu0
        %653 = vmatprep.mubr.bf16.mxu0 0
        %654 = vmatmul.mubr.bf16.gmra.mrb[0].mxu0 %v409
        %v655 = vpop.f32.mrb[0].mxu0
        %v656 = vadd.f32 %v552, %v655
        %v657 = vpop.f32.mrb[0].mxu0
        %v658 = vpop.f32.mrb[0].mxu0
        %v659 = vpop.f32.mrb[0].mxu0
        %660 = vdwg.mxu0
        %vm671 = vcmask 1046528
        %v672 = vrot.slane %v395, 1
        %v673 = vrot.slane %v396, 1
        %v674 = vsel %vm671, %v672, %v673
        %v675 = vrot.slane %v397, 1
        %v676 = vrot.slane %v398, 1
        %v677 = vsel %vm671, %v675, %v676
        %v678 = vrot.slane %v399, 1
        %v679 = vrot.slane %v400, 1
        %v680 = vsel %vm671, %v678, %v679
        %v681 = vrot.slane %v401, 1
        %v682 = vrot.slane %v402, 1
        %v683 = vsel %vm671, %v681, %v682
        %v684 = vrot.slane %v403, 1
        %v685 = vrot.slane %v404, 1
        %v686 = vsel %vm671, %v684, %v685
        %v692 = vpack.c.bf16 %v677, %v674
        %v693 = vpack.c.bf16 %v683, %v680
        %v694 = vpack.c.bf16 %v686, %v686
        %s695 = scalar_lea.vmem %s1, 128
        %v696 = vld [vmem:[%s695] sm:$0xf]
        %v697 = vld [vmem:[%s695 + $0x4] sm:$0xf]
        %v698 = vld [vmem:[%s695 + $0x8] sm:$0xf]
        %v699 = vld [vmem:[%s695 + $0xc] sm:$0xf]
        %v700 = vld [vmem:[%s695 + $0x10] sm:$0xf]
        %v701 = vld [vmem:[%s695 + $0x14] sm:$0xf]
        %v702 = vld [vmem:[%s695 + $0x18] sm:$0xf]
        %v703 = vld [vmem:[%s695 + $0x1c] sm:$0xf]
        %v704 = vld [vmem:[%s695 + $0x20] sm:$0xf]
        %v705 = vld [vmem:[%s695 + $0x24] sm:$0xf]
        %v706 = vld [vmem:[%s695 + $0x28] sm:$0xf]
        %v707 = vld [vmem:[%s695 + $0x2c] sm:$0xf]
        %v708 = vld [vmem:[%s695 + $0x30] sm:$0xf]
        %v709 = vld [vmem:[%s695 + $0x34] sm:$0xf]
        %v710 = vld [vmem:[%s695 + $0x38] sm:$0xf]
        %v711 = vld [vmem:[%s695 + $0x3c] sm:$0xf]
        %v728 = vunpack.c.l.b16 %v696
        %v729 = vunpack.c.l.b16 %v697
        %v730 = vunpack.c.l.b16 %v698
        %v731 = vunpack.c.l.b16 %v699
        %v732 = vunpack.c.l.b16 %v700
        %v733 = vunpack.c.l.b16 %v701
        %v734 = vunpack.c.l.b16 %v702
        %v735 = vunpack.c.l.b16 %v703
        %v736 = vunpack.c.l.b16 %v704
        %v737 = vunpack.c.l.b16 %v705
        %v738 = vunpack.c.l.b16 %v706
        %v739 = vunpack.c.l.b16 %v707
        %v740 = vunpack.c.l.b16 %v708
        %v741 = vunpack.c.l.b16 %v709
        %v742 = vunpack.c.l.b16 %v710
        %v743 = vunpack.c.l.b16 %v711
        %v744 = vpack.c.b16 %v729, %v728
        %v745 = vpack.c.b16 %v731, %v730
        %v746 = vpack.c.b16 %v733, %v732
        %v747 = vpack.c.b16 %v735, %v734
        %v748 = vpack.c.b16 %v737, %v736
        %v749 = vpack.c.b16 %v739, %v738
        %v750 = vpack.c.b16 %v741, %v740
        %v751 = vpack.c.b16 %v743, %v742
        %760 = vmatprep.subr.bf16.mxu0 0
        %761 = vmatpush1.bf16.msra.mxu0 %v744
        %762 = vmatprep.subr.bf16.mxu0 0
        %763 = vmatpush1.bf16.msra.mxu0 %v745
        %764 = vmatprep.subr.bf16.mxu0 0
        %765 = vmatpush1.bf16.msra.mxu0 %v746
        %766 = vmatprep.subr.bf16.mxu0 0
        %767 = vmatpush1.bf16.msra.mxu0 %v747
        %768 = vmatprep.subr.bf16.mxu0 0
        %769 = vmatpush1.bf16.msra.mxu0 %v748
        %770 = vmatprep.subr.bf16.mxu0 0
        %771 = vmatpush1.bf16.msra.mxu0 %v749
        %772 = vmatprep.subr.bf16.mxu0 0
        %773 = vmatpush1.bf16.msra.mxu0 %v750
        %774 = vmatprep.subr.bf16.mxu0 0
        %775 = vmatpush1.bf16.msra.mxu0 %v751
        %776 = vmatprep.subr.bf16.mxu0 0
        %777 = vmatpush1.bf16.msra.mxu0 0
        %778 = vmatprep.subr.bf16.mxu0 0
        %779 = vmatpush1.bf16.msra.mxu0 0
        %780 = vmatprep.subr.bf16.mxu0 0
        %781 = vmatpush1.bf16.msra.mxu0 0
        %782 = vmatprep.subr.bf16.mxu0 0
        %783 = vmatpush1.bf16.msra.mxu0 0
        %784 = vmatprep.subr.bf16.mxu0 0
        %785 = vmatpush1.bf16.msra.mxu0 0
        %786 = vmatprep.subr.bf16.mxu0 0
        %787 = vmatpush1.bf16.msra.mxu0 0
        %788 = vmatprep.subr.bf16.mxu0 0
        %789 = vmatpush1.bf16.msra.mxu0 0
        %790 = vmatprep.subr.bf16.mxu0 0
        %791 = vmatpush1.bf16.msra.mxu0 0
        %792 = vmatprep.mubr.bf16.mxu0 0
        %793 = vmatmul.mubr.bf16.gmra.mrb[0].mxu0 %v692
        %v794 = vpop.f32.mrb[0].mxu0
        %v795 = vadd.f32 0.0, %v794
        %v796 = vpop.f32.mrb[0].mxu0
        %v797 = vpop.f32.mrb[0].mxu0
        %v798 = vadd.f32 0.0, %v797
        %v799 = vpop.f32.mrb[0].mxu0
        %800 = vmatprep.mubr.bf16.mxu0 0
        %801 = vmatmul.mubr.bf16.gmra.mrb[0].mxu0 %v693
        %v802 = vpop.f32.mrb[0].mxu0
        %v803 = vadd.f32 0.0, %v802
        %v804 = vpop.f32.mrb[0].mxu0
        %v805 = vpop.f32.mrb[0].mxu0
        %v806 = vadd.f32 0.0, %v805
        %v807 = vpop.f32.mrb[0].mxu0
        %808 = vmatprep.mubr.bf16.mxu0 0
        %809 = vmatmul.mubr.bf16.gmra.mrb[0].mxu0 %v694
        %v810 = vpop.f32.mrb[0].mxu0
        %v811 = vadd.f32 0.0, %v810
        %v812 = vpop.f32.mrb[0].mxu0
        %v813 = vpop.f32.mrb[0].mxu0
        %v814 = vpop.f32.mrb[0].mxu0
        %815 = vdwg.mxu0
        %v816 = vadd.f32 %v640, %v795
        %v817 = vadd.f32 %v643, %v798
        %v818 = vadd.f32 %v648, %v803
        %v819 = vadd.f32 %v651, %v806
        %v820 = vadd.f32 %v656, %v811
        %s821 = scalar_lea.vmem %s368, 192 [#allocation2]
        %v822 = vld [vmem:[%s821] sm:$0xff]
        %v823 = vld [vmem:[%s821 + $0x8] sm:$0x1]
        %v824 = vld [vmem:[%s821 + $0x10] sm:$0xff]
        %v825 = vld [vmem:[%s821 + $0x18] sm:$0x1]
        %v826 = vld [vmem:[%s821 + $0x20] sm:$0xff]
        %v827 = vld [vmem:[%s821 + $0x28] sm:$0x1]
        %v828 = vld [vmem:[%s821 + $0x30] sm:$0xff]
        %v829 = vld [vmem:[%s821 + $0x38] sm:$0x1]
        %v830 = vld [vmem:[%s821 + $0x40] sm:$0xff]
        %v831 = vld [vmem:[%s821 + $0x48] sm:$0x1]
        %v832 = vpack.c.bf16 %v824, %v822
        %v833 = vpack.c.bf16 %v828, %v826
        %v834 = vpack.c.bf16 %v830, %v830
        %s835 = scalar_lea.vmem %s1, 192
        %v836 = vld [vmem:[%s835] sm:$0xf]
        %v837 = vld [vmem:[%s835 + $0x4] sm:$0xf]
        %v838 = vld [vmem:[%s835 + $0x8] sm:$0xf]
        %v839 = vld [vmem:[%s835 + $0xc] sm:$0xf]
        %v840 = vld [vmem:[%s835 + $0x10] sm:$0xf]
        %v841 = vld [vmem:[%s835 + $0x14] sm:$0xf]
        %v842 = vld [vmem:[%s835 + $0x18] sm:$0xf]
        %v843 = vld [vmem:[%s835 + $0x1c] sm:$0xf]
        %v844 = vld [vmem:[%s835 + $0x20] sm:$0xf]
        %v845 = vld [vmem:[%s835 + $0x24] sm:$0xf]
        %v846 = vld [vmem:[%s835 + $0x28] sm:$0xf]
        %v847 = vld [vmem:[%s835 + $0x2c] sm:$0xf]
        %v848 = vld [vmem:[%s835 + $0x30] sm:$0xf]
        %v849 = vld [vmem:[%s835 + $0x34] sm:$0xf]
        %v850 = vld [vmem:[%s835 + $0x38] sm:$0xf]
        %v851 = vld [vmem:[%s835 + $0x3c] sm:$0xf]
        %v868 = vunpack.c.l.b16 %v836
        %v869 = vunpack.c.l.b16 %v837
        %v870 = vunpack.c.l.b16 %v838
        %v871 = vunpack.c.l.b16 %v839
        %v872 = vunpack.c.l.b16 %v840
        %v873 = vunpack.c.l.b16 %v841
        %v874 = vunpack.c.l.b16 %v842
        %v875 = vunpack.c.l.b16 %v843
        %v876 = vunpack.c.l.b16 %v844
        %v877 = vunpack.c.l.b16 %v845
        %v878 = vunpack.c.l.b16 %v846
        %v879 = vunpack.c.l.b16 %v847
        %v880 = vunpack.c.l.b16 %v848
        %v881 = vunpack.c.l.b16 %v849
        %v882 = vunpack.c.l.b16 %v850
        %v883 = vunpack.c.l.b16 %v851
        %v884 = vpack.c.b16 %v869, %v868
        %v885 = vpack.c.b16 %v871, %v870
        %v886 = vpack.c.b16 %v873, %v872
        %v887 = vpack.c.b16 %v875, %v874
        %v888 = vpack.c.b16 %v877, %v876
        %v889 = vpack.c.b16 %v879, %v878
        %v890 = vpack.c.b16 %v881, %v880
        %v891 = vpack.c.b16 %v883, %v882
        %900 = vmatprep.subr.bf16.mxu0 0
        %901 = vmatpush1.bf16.msra.mxu0 %v884
        %902 = vmatprep.subr.bf16.mxu0 0
        %903 = vmatpush1.bf16.msra.mxu0 %v885
        %904 = vmatprep.subr.bf16.mxu0 0
        %905 = vmatpush1.bf16.msra.mxu0 %v886
        %906 = vmatprep.subr.bf16.mxu0 0
        %907 = vmatpush1.bf16.msra.mxu0 %v887
        %908 = vmatprep.subr.bf16.mxu0 0
        %909 = vmatpush1.bf16.msra.mxu0 %v888
        %910 = vmatprep.subr.bf16.mxu0 0
        %911 = vmatpush1.bf16.msra.mxu0 %v889
        %912 = vmatprep.subr.bf16.mxu0 0
        %913 = vmatpush1.bf16.msra.mxu0 %v890
        %914 = vmatprep.subr.bf16.mxu0 0
        %915 = vmatpush1.bf16.msra.mxu0 %v891
        %916 = vmatprep.subr.bf16.mxu0 0
        %917 = vmatpush1.bf16.msra.mxu0 0
        %918 = vmatprep.subr.bf16.mxu0 0
        %919 = vmatpush1.bf16.msra.mxu0 0
        %920 = vmatprep.subr.bf16.mxu0 0
        %921 = vmatpush1.bf16.msra.mxu0 0
        %922 = vmatprep.subr.bf16.mxu0 0
        %923 = vmatpush1.bf16.msra.mxu0 0
        %924 = vmatprep.subr.bf16.mxu0 0
        %925 = vmatpush1.bf16.msra.mxu0 0
        %926 = vmatprep.subr.bf16.mxu0 0
        %927 = vmatpush1.bf16.msra.mxu0 0
        %928 = vmatprep.subr.bf16.mxu0 0
        %929 = vmatpush1.bf16.msra.mxu0 0
        %930 = vmatprep.subr.bf16.mxu0 0
        %931 = vmatpush1.bf16.msra.mxu0 0
        %932 = vmatprep.mubr.bf16.mxu0 0
        %933 = vmatmul.mubr.bf16.gmra.mrb[0].mxu0 %v832
        %v934 = vpop.f32.mrb[0].mxu0
        %v935 = vadd.f32 0.0, %v934
        %v936 = vpop.f32.mrb[0].mxu0
        %v937 = vpop.f32.mrb[0].mxu0
        %v938 = vadd.f32 0.0, %v937
        %v939 = vpop.f32.mrb[0].mxu0
        %940 = vmatprep.mubr.bf16.mxu0 0
        %941 = vmatmul.mubr.bf16.gmra.mrb[0].mxu0 %v833
        %v942 = vpop.f32.mrb[0].mxu0
        %v943 = vadd.f32 0.0, %v942
        %v944 = vpop.f32.mrb[0].mxu0
        %v945 = vpop.f32.mrb[0].mxu0
        %v946 = vadd.f32 0.0, %v945
        %v947 = vpop.f32.mrb[0].mxu0
        %948 = vmatprep.mubr.bf16.mxu0 0
        %949 = vmatmul.mubr.bf16.gmra.mrb[0].mxu0 %v834
        %v950 = vpop.f32.mrb[0].mxu0
        %v951 = vadd.f32 0.0, %v950
        %v952 = vpop.f32.mrb[0].mxu0
        %v953 = vpop.f32.mrb[0].mxu0
        %v954 = vpop.f32.mrb[0].mxu0
        %955 = vdwg.mxu0
        %v956 = vadd.f32 %v816, %v935
        %v957 = vadd.f32 %v817, %v938
        %v958 = vadd.f32 %v818, %v943
        %v959 = vadd.f32 %v819, %v946
        %v960 = vadd.f32 %v820, %v951
        %s961 = scalar_lea.vmem %s368, 288 [#allocation2]
        %v962 = vld [vmem:[%s961] sm:$0xff]
        %v963 = vld [vmem:[%s961 + $0x10] sm:$0xff]
        %v964 = vld [vmem:[%s961 + $0x20] sm:$0xff]
        %v965 = vld [vmem:[%s961 + $0x30] sm:$0xff]
        %v966 = vld [vmem:[%s961 + $0x40] sm:$0xff]
        %v967 = vpack.c.bf16 %v963, %v962
        %v968 = vpack.c.bf16 %v965, %v964
        %v969 = vpack.c.bf16 %v966, %v966
        %s970 = scalar_lea.vmem %s1, 256
        %v971 = vld [vmem:[%s970] sm:$0xf]
        %v972 = vld [vmem:[%s970 + $0x4] sm:$0xf]
        %v973 = vld [vmem:[%s970 + $0x8] sm:$0xf]
        %v974 = vld [vmem:[%s970 + $0xc] sm:$0xf]
        %v975 = vld [vmem:[%s970 + $0x10] sm:$0xf]
        %v976 = vld [vmem:[%s970 + $0x14] sm:$0xf]
        %v977 = vld [vmem:[%s970 + $0x18] sm:$0xf]
        %v978 = vld [vmem:[%s970 + $0x1c] sm:$0xf]
        %v979 = vld [vmem:[%s970 + $0x20] sm:$0xf]
        %v980 = vld [vmem:[%s970 + $0x24] sm:$0xf]
        %v981 = vld [vmem:[%s970 + $0x28] sm:$0xf]
        %v982 = vld [vmem:[%s970 + $0x2c] sm:$0xf]
        %v983 = vld [vmem:[%s970 + $0x30] sm:$0xf]
        %v984 = vld [vmem:[%s970 + $0x34] sm:$0xf]
        %v985 = vld [vmem:[%s970 + $0x38] sm:$0xf]
        %v986 = vld [vmem:[%s970 + $0x3c] sm:$0xf]
        %v1003 = vunpack.c.l.b16 %v971
        %v1004 = vunpack.c.l.b16 %v972
        %v1005 = vunpack.c.l.b16 %v973
        %v1006 = vunpack.c.l.b16 %v974
        %v1007 = vunpack.c.l.b16 %v975
        %v1008 = vunpack.c.l.b16 %v976
        %v1009 = vunpack.c.l.b16 %v977
        %v1010 = vunpack.c.l.b16 %v978
        %v1011 = vunpack.c.l.b16 %v979
        %v1012 = vunpack.c.l.b16 %v980
        %v1013 = vunpack.c.l.b16 %v981
        %v1014 = vunpack.c.l.b16 %v982
        %v1015 = vunpack.c.l.b16 %v983
        %v1016 = vunpack.c.l.b16 %v984
        %v1017 = vunpack.c.l.b16 %v985
        %v1018 = vunpack.c.l.b16 %v986
        %v1019 = vpack.c.b16 %v1004, %v1003
        %v1020 = vpack.c.b16 %v1006, %v1005
        %v1021 = vpack.c.b16 %v1008, %v1007
        %v1022 = vpack.c.b16 %v1010, %v1009
        %v1023 = vpack.c.b16 %v1012, %v1011
        %v1024 = vpack.c.b16 %v1014, %v1013
        %v1025 = vpack.c.b16 %v1016, %v1015
        %v1026 = vpack.c.b16 %v1018, %v1017
        %1035 = vmatprep.subr.bf16.mxu0 0
        %1036 = vmatpush1.bf16.msra.mxu0 %v1019
        %1037 = vmatprep.subr.bf16.mxu0 0
        %1038 = vmatpush1.bf16.msra.mxu0 %v1020
        %1039 = vmatprep.subr.bf16.mxu0 0
        %1040 = vmatpush1.bf16.msra.mxu0 %v1021
        %1041 = vmatprep.subr.bf16.mxu0 0
        %1042 = vmatpush1.bf16.msra.mxu0 %v1022
        %1043 = vmatprep.subr.bf16.mxu0 0
        %1044 = vmatpush1.bf16.msra.mxu0 %v1023
        %1045 = vmatprep.subr.bf16.mxu0 0
        %1046 = vmatpush1.bf16.msra.mxu0 %v1024
        %1047 = vmatprep.subr.bf16.mxu0 0
        %1048 = vmatpush1.bf16.msra.mxu0 %v1025
        %1049 = vmatprep.subr.bf16.mxu0 0
        %1050 = vmatpush1.bf16.msra.mxu0 %v1026
        %1051 = vmatprep.subr.bf16.mxu0 0
        %1052 = vmatpush1.bf16.msra.mxu0 0
        %1053 = vmatprep.subr.bf16.mxu0 0
        %1054 = vmatpush1.bf16.msra.mxu0 0
        %1055 = vmatprep.subr.bf16.mxu0 0
        %1056 = vmatpush1.bf16.msra.mxu0 0
        %1057 = vmatprep.subr.bf16.mxu0 0
        %1058 = vmatpush1.bf16.msra.mxu0 0
        %1059 = vmatprep.subr.bf16.mxu0 0
        %1060 = vmatpush1.bf16.msra.mxu0 0
        %1061 = vmatprep.subr.bf16.mxu0 0
        %1062 = vmatpush1.bf16.msra.mxu0 0
        %1063 = vmatprep.subr.bf16.mxu0 0
        %1064 = vmatpush1.bf16.msra.mxu0 0
        %1065 = vmatprep.subr.bf16.mxu0 0
        %1066 = vmatpush1.bf16.msra.mxu0 0
        %1067 = vmatprep.mubr.bf16.mxu0 0
        %1068 = vmatmul.mubr.bf16.gmra.mrb[0].mxu0 %v967
        %v1069 = vpop.f32.mrb[0].mxu0
        %v1070 = vadd.f32 0.0, %v1069
        %v1071 = vpop.f32.mrb[0].mxu0
        %v1072 = vpop.f32.mrb[0].mxu0
        %v1073 = vadd.f32 0.0, %v1072
        %v1074 = vpop.f32.mrb[0].mxu0
        %1075 = vmatprep.mubr.bf16.mxu0 0
        %1076 = vmatmul.mubr.bf16.gmra.mrb[0].mxu0 %v968
        %v1077 = vpop.f32.mrb[0].mxu0
        %v1078 = vadd.f32 0.0, %v1077
        %v1079 = vpop.f32.mrb[0].mxu0
        %v1080 = vpop.f32.mrb[0].mxu0
        %v1081 = vadd.f32 0.0, %v1080
        %v1082 = vpop.f32.mrb[0].mxu0
        %1083 = vmatprep.mubr.bf16.mxu0 0
        %1084 = vmatmul.mubr.bf16.gmra.mrb[0].mxu0 %v969
        %v1085 = vpop.f32.mrb[0].mxu0
        %v1086 = vadd.f32 0.0, %v1085
        %v1087 = vpop.f32.mrb[0].mxu0
        %v1088 = vpop.f32.mrb[0].mxu0
        %v1089 = vpop.f32.mrb[0].mxu0
        %1090 = vdwg.mxu0
        %v1091 = vadd.f32 %v956, %v1070
        %v1092 = vadd.f32 %v957, %v1073
        %v1093 = vadd.f32 %v958, %v1078
        %v1094 = vadd.f32 %v959, %v1081
        %v1095 = vadd.f32 %v960, %v1086
        %v1106 = vrot.slane %v822, 1
        %v1107 = vrot.slane %v823, 1
        %v1108 = vsel %vm671, %v1106, %v1107
        %v1109 = vrot.slane %v824, 1
        %v1110 = vrot.slane %v825, 1
        %v1111 = vsel %vm671, %v1109, %v1110
        %v1112 = vrot.slane %v826, 1
        %v1113 = vrot.slane %v827, 1
        %v1114 = vsel %vm671, %v1112, %v1113
        %v1115 = vrot.slane %v828, 1
        %v1116 = vrot.slane %v829, 1
        %v1117 = vsel %vm671, %v1115, %v1116
        %v1118 = vrot.slane %v830, 1
        %v1119 = vrot.slane %v831, 1
        %v1120 = vsel %vm671, %v1118, %v1119
        %v1126 = vpack.c.bf16 %v1111, %v1108
        %v1127 = vpack.c.bf16 %v1117, %v1114
        %v1128 = vpack.c.bf16 %v1120, %v1120
        %s1129 = scalar_lea.vmem %s1, 320
        %v1130 = vld [vmem:[%s1129] sm:$0xf]
        %v1131 = vld [vmem:[%s1129 + $0x4] sm:$0xf]
        %v1132 = vld [vmem:[%s1129 + $0x8] sm:$0xf]
        %v1133 = vld [vmem:[%s1129 + $0xc] sm:$0xf]
        %v1134 = vld [vmem:[%s1129 + $0x10] sm:$0xf]
        %v1135 = vld [vmem:[%s1129 + $0x14] sm:$0xf]
        %v1136 = vld [vmem:[%s1129 + $0x18] sm:$0xf]
        %v1137 = vld [vmem:[%s1129 + $0x1c] sm:$0xf]
        %v1138 = vld [vmem:[%s1129 + $0x20] sm:$0xf]
        %v1139 = vld [vmem:[%s1129 + $0x24] sm:$0xf]
        %v1140 = vld [vmem:[%s1129 + $0x28] sm:$0xf]
        %v1141 = vld [vmem:[%s1129 + $0x2c] sm:$0xf]
        %v1142 = vld [vmem:[%s1129 + $0x30] sm:$0xf]
        %v1143 = vld [vmem:[%s1129 + $0x34] sm:$0xf]
        %v1144 = vld [vmem:[%s1129 + $0x38] sm:$0xf]
        %v1145 = vld [vmem:[%s1129 + $0x3c] sm:$0xf]
        %v1162 = vunpack.c.l.b16 %v1130
        %v1163 = vunpack.c.l.b16 %v1131
        %v1164 = vunpack.c.l.b16 %v1132
        %v1165 = vunpack.c.l.b16 %v1133
        %v1166 = vunpack.c.l.b16 %v1134
        %v1167 = vunpack.c.l.b16 %v1135
        %v1168 = vunpack.c.l.b16 %v1136
        %v1169 = vunpack.c.l.b16 %v1137
        %v1170 = vunpack.c.l.b16 %v1138
        %v1171 = vunpack.c.l.b16 %v1139
        %v1172 = vunpack.c.l.b16 %v1140
        %v1173 = vunpack.c.l.b16 %v1141
        %v1174 = vunpack.c.l.b16 %v1142
        %v1175 = vunpack.c.l.b16 %v1143
        %v1176 = vunpack.c.l.b16 %v1144
        %v1177 = vunpack.c.l.b16 %v1145
        %v1178 = vpack.c.b16 %v1163, %v1162
        %v1179 = vpack.c.b16 %v1165, %v1164
        %v1180 = vpack.c.b16 %v1167, %v1166
        %v1181 = vpack.c.b16 %v1169, %v1168
        %v1182 = vpack.c.b16 %v1171, %v1170
        %v1183 = vpack.c.b16 %v1173, %v1172
        %v1184 = vpack.c.b16 %v1175, %v1174
        %v1185 = vpack.c.b16 %v1177, %v1176
        %1194 = vmatprep.subr.bf16.mxu0 0
        %1195 = vmatpush1.bf16.msra.mxu0 %v1178
        %1196 = vmatprep.subr.bf16.mxu0 0
        %1197 = vmatpush1.bf16.msra.mxu0 %v1179
        %1198 = vmatprep.subr.bf16.mxu0 0
        %1199 = vmatpush1.bf16.msra.mxu0 %v1180
        %1200 = vmatprep.subr.bf16.mxu0 0
        %1201 = vmatpush1.bf16.msra.mxu0 %v1181
        %1202 = vmatprep.subr.bf16.mxu0 0
        %1203 = vmatpush1.bf16.msra.mxu0 %v1182
        %1204 = vmatprep.subr.bf16.mxu0 0
        %1205 = vmatpush1.bf16.msra.mxu0 %v1183
        %1206 = vmatprep.subr.bf16.mxu0 0
        %1207 = vmatpush1.bf16.msra.mxu0 %v1184
        %1208 = vmatprep.subr.bf16.mxu0 0
        %1209 = vmatpush1.bf16.msra.mxu0 %v1185
        %1210 = vmatprep.subr.bf16.mxu0 0
        %1211 = vmatpush1.bf16.msra.mxu0 0
        %1212 = vmatprep.subr.bf16.mxu0 0
        %1213 = vmatpush1.bf16.msra.mxu0 0
        %1214 = vmatprep.subr.bf16.mxu0 0
        %1215 = vmatpush1.bf16.msra.mxu0 0
        %1216 = vmatprep.subr.bf16.mxu0 0
        %1217 = vmatpush1.bf16.msra.mxu0 0
        %1218 = vmatprep.subr.bf16.mxu0 0
        %1219 = vmatpush1.bf16.msra.mxu0 0
        %1220 = vmatprep.subr.bf16.mxu0 0
        %1221 = vmatpush1.bf16.msra.mxu0 0
        %1222 = vmatprep.subr.bf16.mxu0 0
        %1223 = vmatpush1.bf16.msra.mxu0 0
        %1224 = vmatprep.subr.bf16.mxu0 0
        %1225 = vmatpush1.bf16.msra.mxu0 0
        %1226 = vmatprep.mubr.bf16.mxu0 0
        %1227 = vmatmul.mubr.bf16.gmra.mrb[0].mxu0 %v1126
        %v1228 = vpop.f32.mrb[0].mxu0
        %v1229 = vadd.f32 0.0, %v1228
        %v1230 = vpop.f32.mrb[0].mxu0
        %v1231 = vpop.f32.mrb[0].mxu0
        %v1232 = vadd.f32 0.0, %v1231
        %v1233 = vpop.f32.mrb[0].mxu0
        %1234 = vmatprep.mubr.bf16.mxu0 0
        %1235 = vmatmul.mubr.bf16.gmra.mrb[0].mxu0 %v1127
        %v1236 = vpop.f32.mrb[0].mxu0
        %v1237 = vadd.f32 0.0, %v1236
        %v1238 = vpop.f32.mrb[0].mxu0
        %v1239 = vpop.f32.mrb[0].mxu0
        %v1240 = vadd.f32 0.0, %v1239
        %v1241 = vpop.f32.mrb[0].mxu0
        %1242 = vmatprep.mubr.bf16.mxu0 0
        %1243 = vmatmul.mubr.bf16.gmra.mrb[0].mxu0 %v1128
        %v1244 = vpop.f32.mrb[0].mxu0
        %v1245 = vadd.f32 0.0, %v1244
        %v1246 = vpop.f32.mrb[0].mxu0
        %v1247 = vpop.f32.mrb[0].mxu0
        %v1248 = vpop.f32.mrb[0].mxu0
        %1249 = vdwg.mxu0
        %v1250 = vadd.f32 %v1091, %v1229
        %v1251 = vadd.f32 %v1092, %v1232
        %v1252 = vadd.f32 %v1093, %v1237
        %v1253 = vadd.f32 %v1094, %v1240
        %v1254 = vadd.f32 %v1095, %v1245
        %v1255 = vpack.c.bf16 %v399, %v397
        %v1256 = vpack.c.bf16 %v403, %v401
        %v1257 = vpack.c.bf16 %v405, %v405
        %s1258 = scalar_lea.vmem %s1, 384
        %v1259 = vld [vmem:[%s1258] sm:$0xf]
        %v1260 = vld [vmem:[%s1258 + $0x4] sm:$0xf]
        %v1261 = vld [vmem:[%s1258 + $0x8] sm:$0xf]
        %v1262 = vld [vmem:[%s1258 + $0xc] sm:$0xf]
        %v1263 = vld [vmem:[%s1258 + $0x10] sm:$0xf]
        %v1264 = vld [vmem:[%s1258 + $0x14] sm:$0xf]
        %v1265 = vld [vmem:[%s1258 + $0x18] sm:$0xf]
        %v1266 = vld [vmem:[%s1258 + $0x1c] sm:$0xf]
        %v1267 = vld [vmem:[%s1258 + $0x20] sm:$0xf]
        %v1268 = vld [vmem:[%s1258 + $0x24] sm:$0xf]
        %v1269 = vld [vmem:[%s1258 + $0x28] sm:$0xf]
        %v1270 = vld [vmem:[%s1258 + $0x2c] sm:$0xf]
        %v1271 = vld [vmem:[%s1258 + $0x30] sm:$0xf]
        %v1272 = vld [vmem:[%s1258 + $0x34] sm:$0xf]
        %v1273 = vld [vmem:[%s1258 + $0x38] sm:$0xf]
        %v1274 = vld [vmem:[%s1258 + $0x3c] sm:$0xf]
        %v1291 = vunpack.c.l.b16 %v1259
        %v1292 = vunpack.c.l.b16 %v1260
        %v1293 = vunpack.c.l.b16 %v1261
        %v1294 = vunpack.c.l.b16 %v1262
        %v1295 = vunpack.c.l.b16 %v1263
        %v1296 = vunpack.c.l.b16 %v1264
        %v1297 = vunpack.c.l.b16 %v1265
        %v1298 = vunpack.c.l.b16 %v1266
        %v1299 = vunpack.c.l.b16 %v1267
        %v1300 = vunpack.c.l.b16 %v1268
        %v1301 = vunpack.c.l.b16 %v1269
        %v1302 = vunpack.c.l.b16 %v1270
        %v1303 = vunpack.c.l.b16 %v1271
        %v1304 = vunpack.c.l.b16 %v1272
        %v1305 = vunpack.c.l.b16 %v1273
        %v1306 = vunpack.c.l.b16 %v1274
        %v1307 = vpack.c.b16 %v1292, %v1291
        %v1308 = vpack.c.b16 %v1294, %v1293
        %v1309 = vpack.c.b16 %v1296, %v1295
        %v1310 = vpack.c.b16 %v1298, %v1297
        %v1311 = vpack.c.b16 %v1300, %v1299
        %v1312 = vpack.c.b16 %v1302, %v1301
        %v1313 = vpack.c.b16 %v1304, %v1303
        %v1314 = vpack.c.b16 %v1306, %v1305
        %1323 = vmatprep.subr.bf16.mxu0 0
        %1324 = vmatpush1.bf16.msra.mxu0 %v1307
        %1325 = vmatprep.subr.bf16.mxu0 0
        %1326 = vmatpush1.bf16.msra.mxu0 %v1308
        %1327 = vmatprep.subr.bf16.mxu0 0
        %1328 = vmatpush1.bf16.msra.mxu0 %v1309
        %1329 = vmatprep.subr.bf16.mxu0 0
        %1330 = vmatpush1.bf16.msra.mxu0 %v1310
        %1331 = vmatprep.subr.bf16.mxu0 0
        %1332 = vmatpush1.bf16.msra.mxu0 %v1311
        %1333 = vmatprep.subr.bf16.mxu0 0
        %1334 = vmatpush1.bf16.msra.mxu0 %v1312
        %1335 = vmatprep.subr.bf16.mxu0 0
        %1336 = vmatpush1.bf16.msra.mxu0 %v1313
        %1337 = vmatprep.subr.bf16.mxu0 0
        %1338 = vmatpush1.bf16.msra.mxu0 %v1314
        %1339 = vmatprep.subr.bf16.mxu0 0
        %1340 = vmatpush1.bf16.msra.mxu0 0
        %1341 = vmatprep.subr.bf16.mxu0 0
        %1342 = vmatpush1.bf16.msra.mxu0 0
        %1343 = vmatprep.subr.bf16.mxu0 0
        %1344 = vmatpush1.bf16.msra.mxu0 0
        %1345 = vmatprep.subr.bf16.mxu0 0
        %1346 = vmatpush1.bf16.msra.mxu0 0
        %1347 = vmatprep.subr.bf16.mxu0 0
        %1348 = vmatpush1.bf16.msra.mxu0 0
        %1349 = vmatprep.subr.bf16.mxu0 0
        %1350 = vmatpush1.bf16.msra.mxu0 0
        %1351 = vmatprep.subr.bf16.mxu0 0
        %1352 = vmatpush1.bf16.msra.mxu0 0
        %1353 = vmatprep.subr.bf16.mxu0 0
        %1354 = vmatpush1.bf16.msra.mxu0 0
        %1355 = vmatprep.mubr.bf16.mxu0 0
        %1356 = vmatmul.mubr.bf16.gmra.mrb[0].mxu0 %v1255
        %v1357 = vpop.f32.mrb[0].mxu0
        %v1358 = vadd.f32 0.0, %v1357
        %v1359 = vpop.f32.mrb[0].mxu0
        %v1360 = vpop.f32.mrb[0].mxu0
        %v1361 = vadd.f32 0.0, %v1360
        %v1362 = vpop.f32.mrb[0].mxu0
        %1363 = vmatprep.mubr.bf16.mxu0 0
        %1364 = vmatmul.mubr.bf16.gmra.mrb[0].mxu0 %v1256
        %v1365 = vpop.f32.mrb[0].mxu0
        %v1366 = vadd.f32 0.0, %v1365
        %v1367 = vpop.f32.mrb[0].mxu0
        %v1368 = vpop.f32.mrb[0].mxu0
        %v1369 = vadd.f32 0.0, %v1368
        %v1370 = vpop.f32.mrb[0].mxu0
        %1371 = vmatprep.mubr.bf16.mxu0 0
        %1372 = vmatmul.mubr.bf16.gmra.mrb[0].mxu0 %v1257
        %v1373 = vpop.f32.mrb[0].mxu0
        %v1374 = vadd.f32 0.0, %v1373
        %v1375 = vpop.f32.mrb[0].mxu0
        %v1376 = vpop.f32.mrb[0].mxu0
        %v1377 = vpop.f32.mrb[0].mxu0
        %1378 = vdwg.mxu0
        %v1379 = vadd.f32 %v1250, %v1358
        %v1380 = vadd.f32 %v1251, %v1361
        %v1381 = vadd.f32 %v1252, %v1366
        %v1382 = vadd.f32 %v1253, %v1369
        %v1383 = vadd.f32 %v1254, %v1374
        %v1384 = vpack.c.bf16 %v429, %v428
        %v1385 = vpack.c.bf16 %v431, %v430
        %v1386 = vpack.c.bf16 %v432, %v432
        %s1387 = scalar_lea.vmem %s1, 448
        %v1388 = vld [vmem:[%s1387] sm:$0xf]
        %v1389 = vld [vmem:[%s1387 + $0x4] sm:$0xf]
        %v1390 = vld [vmem:[%s1387 + $0x8] sm:$0xf]
        %v1391 = vld [vmem:[%s1387 + $0xc] sm:$0xf]
        %v1392 = vld [vmem:[%s1387 + $0x10] sm:$0xf]
        %v1393 = vld [vmem:[%s1387 + $0x14] sm:$0xf]
        %v1394 = vld [vmem:[%s1387 + $0x18] sm:$0xf]
        %v1395 = vld [vmem:[%s1387 + $0x1c] sm:$0xf]
        %v1396 = vld [vmem:[%s1387 + $0x20] sm:$0xf]
        %v1397 = vld [vmem:[%s1387 + $0x24] sm:$0xf]
        %v1398 = vld [vmem:[%s1387 + $0x28] sm:$0xf]
        %v1399 = vld [vmem:[%s1387 + $0x2c] sm:$0xf]
        %v1400 = vld [vmem:[%s1387 + $0x30] sm:$0xf]
        %v1401 = vld [vmem:[%s1387 + $0x34] sm:$0xf]
        %v1402 = vld [vmem:[%s1387 + $0x38] sm:$0xf]
        %v1403 = vld [vmem:[%s1387 + $0x3c] sm:$0xf]
        %v1420 = vunpack.c.l.b16 %v1388
        %v1421 = vunpack.c.l.b16 %v1389
        %v1422 = vunpack.c.l.b16 %v1390
        %v1423 = vunpack.c.l.b16 %v1391
        %v1424 = vunpack.c.l.b16 %v1392
        %v1425 = vunpack.c.l.b16 %v1393
        %v1426 = vunpack.c.l.b16 %v1394
        %v1427 = vunpack.c.l.b16 %v1395
        %v1428 = vunpack.c.l.b16 %v1396
        %v1429 = vunpack.c.l.b16 %v1397
        %v1430 = vunpack.c.l.b16 %v1398
        %v1431 = vunpack.c.l.b16 %v1399
        %v1432 = vunpack.c.l.b16 %v1400
        %v1433 = vunpack.c.l.b16 %v1401
        %v1434 = vunpack.c.l.b16 %v1402
        %v1435 = vunpack.c.l.b16 %v1403
        %v1436 = vpack.c.b16 %v1421, %v1420
        %v1437 = vpack.c.b16 %v1423, %v1422
        %v1438 = vpack.c.b16 %v1425, %v1424
        %v1439 = vpack.c.b16 %v1427, %v1426
        %v1440 = vpack.c.b16 %v1429, %v1428
        %v1441 = vpack.c.b16 %v1431, %v1430
        %v1442 = vpack.c.b16 %v1433, %v1432
        %v1443 = vpack.c.b16 %v1435, %v1434
        %1452 = vmatprep.subr.bf16.mxu0 0
        %1453 = vmatpush1.bf16.msra.mxu0 %v1436
        %1454 = vmatprep.subr.bf16.mxu0 0
        %1455 = vmatpush1.bf16.msra.mxu0 %v1437
        %1456 = vmatprep.subr.bf16.mxu0 0
        %1457 = vmatpush1.bf16.msra.mxu0 %v1438
        %1458 = vmatprep.subr.bf16.mxu0 0
        %1459 = vmatpush1.bf16.msra.mxu0 %v1439
        %1460 = vmatprep.subr.bf16.mxu0 0
        %1461 = vmatpush1.bf16.msra.mxu0 %v1440
        %1462 = vmatprep.subr.bf16.mxu0 0
        %1463 = vmatpush1.bf16.msra.mxu0 %v1441
        %1464 = vmatprep.subr.bf16.mxu0 0
        %1465 = vmatpush1.bf16.msra.mxu0 %v1442
        %1466 = vmatprep.subr.bf16.mxu0 0
        %1467 = vmatpush1.bf16.msra.mxu0 %v1443
        %1468 = vmatprep.subr.bf16.mxu0 0
        %1469 = vmatpush1.bf16.msra.mxu0 0
        %1470 = vmatprep.subr.bf16.mxu0 0
        %1471 = vmatpush1.bf16.msra.mxu0 0
        %1472 = vmatprep.subr.bf16.mxu0 0
        %1473 = vmatpush1.bf16.msra.mxu0 0
        %1474 = vmatprep.subr.bf16.mxu0 0
        %1475 = vmatpush1.bf16.msra.mxu0 0
        %1476 = vmatprep.subr.bf16.mxu0 0
        %1477 = vmatpush1.bf16.msra.mxu0 0
        %1478 = vmatprep.subr.bf16.mxu0 0
        %1479 = vmatpush1.bf16.msra.mxu0 0
        %1480 = vmatprep.subr.bf16.mxu0 0
        %1481 = vmatpush1.bf16.msra.mxu0 0
        %1482 = vmatprep.subr.bf16.mxu0 0
        %1483 = vmatpush1.bf16.msra.mxu0 0
        %1484 = vmatprep.mubr.bf16.mxu0 0
        %1485 = vmatmul.mubr.bf16.gmra.mrb[0].mxu0 %v1384
        %v1486 = vpop.f32.mrb[0].mxu0
        %v1487 = vadd.f32 0.0, %v1486
        %v1488 = vpop.f32.mrb[0].mxu0
        %v1489 = vpop.f32.mrb[0].mxu0
        %v1490 = vadd.f32 0.0, %v1489
        %v1491 = vpop.f32.mrb[0].mxu0
        %1492 = vmatprep.mubr.bf16.mxu0 0
        %1493 = vmatmul.mubr.bf16.gmra.mrb[0].mxu0 %v1385
        %v1494 = vpop.f32.mrb[0].mxu0
        %v1495 = vadd.f32 0.0, %v1494
        %v1496 = vpop.f32.mrb[0].mxu0
        %v1497 = vpop.f32.mrb[0].mxu0
        %v1498 = vadd.f32 0.0, %v1497
        %v1499 = vpop.f32.mrb[0].mxu0
        %1500 = vmatprep.mubr.bf16.mxu0 0
        %1501 = vmatmul.mubr.bf16.gmra.mrb[0].mxu0 %v1386
        %v1502 = vpop.f32.mrb[0].mxu0
        %v1503 = vadd.f32 0.0, %v1502
        %v1504 = vpop.f32.mrb[0].mxu0
        %v1505 = vpop.f32.mrb[0].mxu0
        %v1506 = vpop.f32.mrb[0].mxu0
        %1507 = vdwg.mxu0
        %v1508 = vadd.f32 %v1379, %v1487
        %v1509 = vadd.f32 %v1380, %v1490
        %v1510 = vadd.f32 %v1381, %v1495
        %v1511 = vadd.f32 %v1382, %v1498
        %v1512 = vadd.f32 %v1383, %v1503
        %v1515 = vrot.slane %v405, 1
        %v1516 = vrot.slane %v406, 1
        %v1517 = vsel %vm671, %v1515, %v1516
        %v1519 = vpack.c.bf16 %v680, %v677
        %v1520 = vpack.c.bf16 %v686, %v683
        %v1521 = vpack.c.bf16 %v1517, %v1517
        %s1522 = scalar_lea.vmem %s1, 512
        %v1523 = vld [vmem:[%s1522] sm:$0xf]
        %v1524 = vld [vmem:[%s1522 + $0x4] sm:$0xf]
        %v1525 = vld [vmem:[%s1522 + $0x8] sm:$0xf]
        %v1526 = vld [vmem:[%s1522 + $0xc] sm:$0xf]
        %v1527 = vld [vmem:[%s1522 + $0x10] sm:$0xf]
        %v1528 = vld [vmem:[%s1522 + $0x14] sm:$0xf]
        %v1529 = vld [vmem:[%s1522 + $0x18] sm:$0xf]
        %v1530 = vld [vmem:[%s1522 + $0x1c] sm:$0xf]
        %v1531 = vld [vmem:[%s1522 + $0x20] sm:$0xf]
        %v1532 = vld [vmem:[%s1522 + $0x24] sm:$0xf]
        %v1533 = vld [vmem:[%s1522 + $0x28] sm:$0xf]
        %v1534 = vld [vmem:[%s1522 + $0x2c] sm:$0xf]
        %v1535 = vld [vmem:[%s1522 + $0x30] sm:$0xf]
        %v1536 = vld [vmem:[%s1522 + $0x34] sm:$0xf]
        %v1537 = vld [vmem:[%s1522 + $0x38] sm:$0xf]
        %v1538 = vld [vmem:[%s1522 + $0x3c] sm:$0xf]
        %v1555 = vunpack.c.l.b16 %v1523
        %v1556 = vunpack.c.l.b16 %v1524
        %v1557 = vunpack.c.l.b16 %v1525
        %v1558 = vunpack.c.l.b16 %v1526
        %v1559 = vunpack.c.l.b16 %v1527
        %v1560 = vunpack.c.l.b16 %v1528
        %v1561 = vunpack.c.l.b16 %v1529
        %v1562 = vunpack.c.l.b16 %v1530
        %v1563 = vunpack.c.l.b16 %v1531
        %v1564 = vunpack.c.l.b16 %v1532
        %v1565 = vunpack.c.l.b16 %v1533
        %v1566 = vunpack.c.l.b16 %v1534
        %v1567 = vunpack.c.l.b16 %v1535
        %v1568 = vunpack.c.l.b16 %v1536
        %v1569 = vunpack.c.l.b16 %v1537
        %v1570 = vunpack.c.l.b16 %v1538
        %v1571 = vpack.c.b16 %v1556, %v1555
        %v1572 = vpack.c.b16 %v1558, %v1557
        %v1573 = vpack.c.b16 %v1560, %v1559
        %v1574 = vpack.c.b16 %v1562, %v1561
        %v1575 = vpack.c.b16 %v1564, %v1563
        %v1576 = vpack.c.b16 %v1566, %v1565
        %v1577 = vpack.c.b16 %v1568, %v1567
        %v1578 = vpack.c.b16 %v1570, %v1569
        %1587 = vmatprep.subr.bf16.mxu0 0
        %1588 = vmatpush1.bf16.msra.mxu0 %v1571
        %1589 = vmatprep.subr.bf16.mxu0 0
        %1590 = vmatpush1.bf16.msra.mxu0 %v1572
        %1591 = vmatprep.subr.bf16.mxu0 0
        %1592 = vmatpush1.bf16.msra.mxu0 %v1573
        %1593 = vmatprep.subr.bf16.mxu0 0
        %1594 = vmatpush1.bf16.msra.mxu0 %v1574
        %1595 = vmatprep.subr.bf16.mxu0 0
        %1596 = vmatpush1.bf16.msra.mxu0 %v1575
        %1597 = vmatprep.subr.bf16.mxu0 0
        %1598 = vmatpush1.bf16.msra.mxu0 %v1576
        %1599 = vmatprep.subr.bf16.mxu0 0
        %1600 = vmatpush1.bf16.msra.mxu0 %v1577
        %1601 = vmatprep.subr.bf16.mxu0 0
        %1602 = vmatpush1.bf16.msra.mxu0 %v1578
        %1603 = vmatprep.subr.bf16.mxu0 0
        %1604 = vmatpush1.bf16.msra.mxu0 0
        %1605 = vmatprep.subr.bf16.mxu0 0
        %1606 = vmatpush1.bf16.msra.mxu0 0
        %1607 = vmatprep.subr.bf16.mxu0 0
        %1608 = vmatpush1.bf16.msra.mxu0 0
        %1609 = vmatprep.subr.bf16.mxu0 0
        %1610 = vmatpush1.bf16.msra.mxu0 0
        %1611 = vmatprep.subr.bf16.mxu0 0
        %1612 = vmatpush1.bf16.msra.mxu0 0
        %1613 = vmatprep.subr.bf16.mxu0 0
        %1614 = vmatpush1.bf16.msra.mxu0 0
        %1615 = vmatprep.subr.bf16.mxu0 0
        %1616 = vmatpush1.bf16.msra.mxu0 0
        %1617 = vmatprep.subr.bf16.mxu0 0
        %1618 = vmatpush1.bf16.msra.mxu0 0
        %1619 = vmatprep.mubr.bf16.mxu0 0
        %1620 = vmatmul.mubr.bf16.gmra.mrb[0].mxu0 %v1519
        %v1621 = vpop.f32.mrb[0].mxu0
        %v1622 = vadd.f32 0.0, %v1621
        %v1623 = vpop.f32.mrb[0].mxu0
        %v1624 = vpop.f32.mrb[0].mxu0
        %v1625 = vadd.f32 0.0, %v1624
        %v1626 = vpop.f32.mrb[0].mxu0
        %1627 = vmatprep.mubr.bf16.mxu0 0
        %1628 = vmatmul.mubr.bf16.gmra.mrb[0].mxu0 %v1520
        %v1629 = vpop.f32.mrb[0].mxu0
        %v1630 = vadd.f32 0.0, %v1629
        %v1631 = vpop.f32.mrb[0].mxu0
        %v1632 = vpop.f32.mrb[0].mxu0
        %v1633 = vadd.f32 0.0, %v1632
        %v1634 = vpop.f32.mrb[0].mxu0
        %1635 = vmatprep.mubr.bf16.mxu0 0
        %1636 = vmatmul.mubr.bf16.gmra.mrb[0].mxu0 %v1521
        %v1637 = vpop.f32.mrb[0].mxu0
        %v1638 = vadd.f32 0.0, %v1637
        %v1639 = vpop.f32.mrb[0].mxu0
        %v1640 = vpop.f32.mrb[0].mxu0
        %v1641 = vpop.f32.mrb[0].mxu0
        %1642 = vdwg.mxu0
        %v1643 = vadd.f32 %v1508, %v1622
        %v1644 = vadd.f32 %v1509, %v1625
        %v1645 = vadd.f32 %v1510, %v1630
        %v1646 = vadd.f32 %v1511, %v1633
        %v1647 = vadd.f32 %v1512, %v1638
        %v1648 = vld [vmem:[%s2] sm:$0x1]
        %v1650 = vlaneseq
        %v1651 = vshrl.u32 %v1650, 7
        %v1652 = vsub.s32 0, %v1651
        %v1653 = vrot.slane %v1648, %v1652
        %v1655 = vadd.f32 %v1643, %v1653
        %v1656 = vadd.f32 %v1644, %v1653
        %v1657 = vadd.f32 %v1645, %v1653
        %v1658 = vadd.f32 %v1646, %v1653
        %v1659 = vadd.f32 %v1647, %v1653
        %v1660 = vmax.f32 %v1655, 0.0
        %v1661 = vmax.f32 %v1656, 0.0
        %v1662 = vmax.f32 %v1657, 0.0
        %v1663 = vmax.f32 %v1658, 0.0
        %v1664 = vmax.f32 %v1659, 0.0
        %1665 = vst [vmem:[%s393] sm:$0x1f] %v1660
        %1666 = vst [vmem:[%s393 + $0x8] sm:$0x1f] %v1661
        %1667 = vst [vmem:[%s393 + $0x10] sm:$0x1f] %v1662
        %1668 = vst [vmem:[%s393 + $0x18] sm:$0x1f] %v1663
        %1669 = vst [vmem:[%s393 + $0x20] sm:$0x1f] %v1664
        %p1670 = scmp.lt.s32.totalorder %s14, 1
        %s1671 = scalar_select %p1670, %s14, 1
        %s1672 = smul.addr %s1671, 5
        %s1673 = smul.addr %s1672, 8
        %s1674 = scalar_lea.vmem %s3, %s1673
        // Predicated region
        $region71: #{cnn_2layer_fc_forward.4} parent=65 // pred_check
          %p1675 = pneg %p100
        $region72: #{cnn_2layer_fc_forward.4} parent=65 // pred_check_branch
          %1677 = sbr.rel (%p1675) target = $region74
        $region73: #{cnn_2layer_fc_forward.4} parent=65 // pred_region
          _
        $region74: #{cnn_2layer_fc_forward.4} parent=65 // pred_fallthru
          _
      $region66: #{cnn_2layer_fc_forward.4} parent=5 // pred_fallthru
        _
      %p1678 = scmp.le.s32.totalorder 2, %s9
      // Predicated region
      $region75: #{cnn_2layer_fc_forward.4} parent=5 // pred_check
        %p1679 = pneg %p1678
      $region76: #{cnn_2layer_fc_forward.4} parent=5 // pred_check_branch
        %1681 = sbr.rel (%p1679) target = $region78
      $region77: #{cnn_2layer_fc_forward.4} parent=5 // pred_region
        %s1682 = ssub.s32 %s9, 2
        // Predicated region
        $region79: #{cnn_2layer_fc_forward.4} parent=77 // pred_check
          %p1683 = pneg %p106
        $region80: #{cnn_2layer_fc_forward.4} parent=77 // pred_check_branch
          %1685 = sbr.rel (%p1683) target = $region82
        $region81: #{cnn_2layer_fc_forward.4} parent=77 // pred_region
          %p1686 = scmp.lt.s32.totalorder %s15, 1
          %s1687 = scalar_select %p1686, %s15, 1
          %s1688 = smul.addr %s1687, 5
          %s1689 = smul.addr %s1688, 8
          %s1690 = scalar_lea.vmem %s3, %s1689
        $region82: #{cnn_2layer_fc_forward.4} parent=77 // pred_fallthru
          _
      $region78: #{cnn_2layer_fc_forward.4} parent=5 // pred_fallthru
        _
    $region6: #{cnn_2layer_fc_forward.4} parent=1 // loop_footer
      %s13 = sadd.s32 1, %s9
    $region7: #{cnn_2layer_fc_forward.4} parent=1 // loop_footer_branch
      %8 = sbr.rel target = $region3
    $region8: #{cnn_2layer_fc_forward.4} parent=1 // loop_exit
      _

// kernel: cnn_2layer_fc_forward.3
$region0: #{cnn_2layer_fc_forward.3}
  #allocation0 [shape = 'u32[]', space=smem, size = 0x4, offset = 0x4, fixed_abs, tag = 'smem constant byte address 0x4 - core index']
  #allocation1 [shape = 'u32[144,128]{1,0:T(1,128)}', space=vmem, size = 0x12000, scoped, tag = 'internal scratch']
  %s0 = inlined_call_operand.vmem [shape: f32[2,12,18,3], index: 0, kind: input, shape index: {}]
  %s1 = inlined_call_operand.vmem [shape: bf16[9,3,128], index: 1, kind: input, shape index: {}]
  %s2 = inlined_call_operand.vmem [shape: f32[1,128], index: 2, kind: input, shape index: {}]
  %s3 = inlined_call_operand.vmem [shape: f32[2,9,9,128], index: 3, kind: output, shape index: {}]
  %s4 = sld [smem:[#allocation0]]
  $region45: #{cnn_2layer_fc_forward.3} parent=0
    _
  %s6 = ssub.s32 1, %s4
  %s7 = scalar_select 0, %s6, %s4
  loop: start=0, step=1, limit=4
  $region2: #{cnn_2layer_fc_forward.3} parent=0 // loop_pre_header
    _
  $region3: #{cnn_2layer_fc_forward.3} parent=0 // loop_header
    %s9 = sphi 0, %s13
    %p10 = scmp.ge.s32.totalorder %s9, 4
    %s19 = sphi 0, %s21
    %s22 = sphi 0, %s19
    %s23 = sphi 0, %s22
    %s39 = sphi 0, %s23
    %s43 = sphi 0, %s43
    %s45 = sphi 0, %s43
    %s46 = sphi 0, %s45
    %s60 = sphi 0, %s46
    %s64 = sphi 0, %s64
    %s66 = sphi 0, %s64
    %s67 = sphi 0, %s66
    %s81 = sphi 0, %s67
    %s87 = sphi 0, %s89
    %s90 = sphi 0, %s87
    %s91 = sphi 0, %s90
    %s107 = sphi 0, %s91
  $region4: #{cnn_2layer_fc_forward.3} parent=0 // loop_header_branch
    %12 = sbr.rel (%p10) target = $region8
  $region5: #{cnn_2layer_fc_forward.3} parent=0 // loop_body
    %s14 = ssub.s32 %s9, 1
    %s15 = ssub.s32 %s9, 2
    %s16 = sadd.s32 %s9, 1
    %s17 = ssub.s32 %s9, %s16
    %p18 = scmp.eq.s32.totalorder %s17, 0
    %s20 = sadd.s32 %s19, 1
    %s21 = scalar_select %p18, %s19, %s20
    %p24 = pneg %p18
    %p25 = scmp.eq.s32.totalorder %s9, 1
    %p26 = por %p24, %p25
    %p27 = scmp.ne.s32.totalorder %s19, %s22
    %p28 = scmp.eq.s32.totalorder %s9, 0
    %p29 = por %p27, %p28
    %p30 = scmp.ne.s32.totalorder %s19, %s22
    %p31 = scmp.eq.s32.totalorder %s14, 1
    %p32 = por %p30, %p31
    %p33 = scmp.ne.s32.totalorder %s22, %s23
    %p34 = scmp.eq.s32.totalorder %s14, 0
    %p35 = por %p33, %p34
    %p36 = scmp.ne.s32.totalorder %s22, %s23
    %p37 = scmp.eq.s32.totalorder %s15, 1
    %p38 = por %p36, %p37
    %p40 = scmp.ne.s32.totalorder %s23, %s39
    %p41 = scmp.eq.s32.totalorder %s15, 0
    %p42 = por %p40, %p41
    %s44 = sadd.s32 %s43, 1
    %p47 = scmp.eq.s32.totalorder %s9, 1
    %p48 = scmp.ne.s32.totalorder %s43, %s45
    %p49 = scmp.eq.s32.totalorder %s9, 0
    %p50 = por %p48, %p49
    %p51 = scmp.ne.s32.totalorder %s43, %s45
    %p52 = scmp.eq.s32.totalorder %s14, 1
    %p53 = por %p51, %p52
    %p54 = scmp.ne.s32.totalorder %s45, %s46
    %p55 = scmp.eq.s32.totalorder %s14, 0
    %p56 = por %p54, %p55
    %p57 = scmp.ne.s32.totalorder %s45, %s46
    %p58 = scmp.eq.s32.totalorder %s15, 1
    %p59 = por %p57, %p58
    %p61 = scmp.ne.s32.totalorder %s46, %s60
    %p62 = scmp.eq.s32.totalorder %s15, 0
    %p63 = por %p61, %p62
    %s65 = sadd.s32 %s64, 1
    %p68 = scmp.eq.s32.totalorder %s9, 1
    %p69 = scmp.ne.s32.totalorder %s64, %s66
    %p70 = scmp.eq.s32.totalorder %s9, 0
    %p71 = por %p69, %p70
    %p72 = scmp.ne.s32.totalorder %s64, %s66
    %p73 = scmp.eq.s32.totalorder %s14, 1
    %p74 = por %p72, %p73
    %p75 = scmp.ne.s32.totalorder %s66, %s67
    %p76 = scmp.eq.s32.totalorder %s14, 0
    %p77 = por %p75, %p76
    %p78 = scmp.ne.s32.totalorder %s66, %s67
    %p79 = scmp.eq.s32.totalorder %s15, 1
    %p80 = por %p78, %p79
    %p82 = scmp.ne.s32.totalorder %s67, %s81
    %p83 = scmp.eq.s32.totalorder %s15, 0
    %p84 = por %p82, %p83
    %s85 = ssub.s32 %s9, %s16
    %p86 = scmp.eq.s32.totalorder %s85, 0
    %s88 = sadd.s32 %s87, 1
    %s89 = scalar_select %p86, %s87, %s88
    %p92 = pneg %p86
    %p93 = scmp.eq.s32.totalorder %s9, 1
    %p94 = por %p92, %p93
    %p95 = scmp.ne.s32.totalorder %s87, %s90
    %p96 = scmp.eq.s32.totalorder %s9, 0
    %p97 = por %p95, %p96
    %p98 = scmp.ne.s32.totalorder %s87, %s90
    %p99 = scmp.eq.s32.totalorder %s14, 1
    %p100 = por %p98, %p99
    %p101 = scmp.ne.s32.totalorder %s90, %s91
    %p102 = scmp.eq.s32.totalorder %s14, 0
    %p103 = por %p101, %p102
    %p104 = scmp.ne.s32.totalorder %s90, %s91
    %p105 = scmp.eq.s32.totalorder %s15, 1
    %p106 = por %p104, %p105
    %p108 = scmp.ne.s32.totalorder %s91, %s107
    %p109 = scmp.eq.s32.totalorder %s15, 0
    %p110 = por %p108, %p109
    %p111 = scmp.le.s32.totalorder 1, %s9
    %p112 = scmp.lt.s32.totalorder %s9, 3
    %p113 = pnand %p111, %p112
    %p114 = pneg %p113
    // Predicated region
    $region9: #{cnn_2layer_fc_forward.3} parent=5 // pred_check
      _
    $region10: #{cnn_2layer_fc_forward.3} parent=5 // pred_check_branch
      %116 = sbr.rel (%p113) target = $region12
    $region11: #{cnn_2layer_fc_forward.3} parent=5 // pred_region
      %s117 = ssub.s32 %s9, 1
      // Predicated region
      $region13: #{cnn_2layer_fc_forward.3} parent=11 // pred_check
        %p118 = pneg %p56
      $region14: #{cnn_2layer_fc_forward.3} parent=11 // pred_check_branch
        %120 = sbr.rel (%p118) target = $region16
      $region15: #{cnn_2layer_fc_forward.3} parent=11 // pred_region
        _
      $region16: #{cnn_2layer_fc_forward.3} parent=11 // pred_fallthru
        _
      // Predicated region
      $region17: #{cnn_2layer_fc_forward.3} parent=11 // pred_check
        %p121 = pneg %p77
      $region18: #{cnn_2layer_fc_forward.3} parent=11 // pred_check_branch
        %123 = sbr.rel (%p121) target = $region20
      $region19: #{cnn_2layer_fc_forward.3} parent=11 // pred_region
        _
      $region20: #{cnn_2layer_fc_forward.3} parent=11 // pred_fallthru
        _
    $region12: #{cnn_2layer_fc_forward.3} parent=5 // pred_fallthru
      _
    %p124 = scmp.lt.s32.totalorder %s9, 2
    // Predicated region
    $region21: #{cnn_2layer_fc_forward.3} parent=5 // pred_check
      %p125 = pneg %p124
    $region22: #{cnn_2layer_fc_forward.3} parent=5 // pred_check_branch
      %127 = sbr.rel (%p125) target = $region24
    $region23: #{cnn_2layer_fc_forward.3} parent=5 // pred_region
      // Predicated region
      $region25: #{cnn_2layer_fc_forward.3} parent=23 // pred_check
        %p128 = pneg %p29
      $region26: #{cnn_2layer_fc_forward.3} parent=23 // pred_check_branch
        %130 = sbr.rel (%p128) target = $region28
      $region27: #{cnn_2layer_fc_forward.3} parent=23 // pred_region
        %p131 = scmp.lt.s32.totalorder %s9, 1
        %s132 = scalar_select %p131, %s9, 1
        %s133 = smul.addr %s132, 36
        %s134 = smul.addr %s133, 8
        %s135 = scalar_lea.vmem %s0, %s134
      $region28: #{cnn_2layer_fc_forward.3} parent=23 // pred_fallthru
        _
    $region24: #{cnn_2layer_fc_forward.3} parent=5 // pred_fallthru
      _
    %p136 = scmp.le.s32.totalorder 1, %s9
    %p137 = scmp.lt.s32.totalorder %s9, 3
    %p138 = pnand %p136, %p137
    %p139 = pneg %p138
    // Predicated region
    $region29: #{cnn_2layer_fc_forward.3} parent=5 // pred_check
      _
    $region30: #{cnn_2layer_fc_forward.3} parent=5 // pred_check_branch
      %141 = sbr.rel (%p138) target = $region32
    $region31: #{cnn_2layer_fc_forward.3} parent=5 // pred_region
      %s142 = ssub.s32 %s9, 1
      %p143 = scmp.lt.s32.totalorder %s14, 1
      %s144 = scalar_select %p143, %s14, 1
      %s145 = smul.addr %s144, 36
      %s146 = smul.addr %s145, 8
      %s147 = scalar_lea.vmem %s0, %s146
      %p148 = pneg %p35
      %p149 = pneg %p32
      %p150 = pneg %p56
      %p151 = pneg %p53
      %p152 = pneg %p77
      %p153 = pneg %p74
      %p154 = pneg %p103
      %p155 = pneg %p100
      %p156 = scmp.lt.s32.totalorder %s14, 1
      %s157 = scalar_select %p156, %s14, 1
      %s158 = smul.addr %s157, 18
      %s159 = smul.addr %s158, 8
      %s160 = scalar_lea.vmem %s3, %s159
      %p161 = scmp.lt.s32.totalorder %s14, 1
      %s162 = scalar_select %p161, %s14, 1
      %s163 = smul.addr %s162, 36
      %s164 = smul.addr %s163, 8
      %s165 = scalar_lea.vmem %s0, %s164
      %p166 = scmp.lt.s32.totalorder %s14, 1
      %s167 = scalar_select %p166, %s14, 1
      %s168 = smul.addr %s167, 18
      %s169 = smul.addr %s168, 8
      %s170 = scalar_lea.vmem %s3, %s169
      %v172 = vld [vmem:[%s165] sm:$0xff]
      %v173 = vld [vmem:[%s165 + $0x8] sm:$0xff]
      %v174 = vld [vmem:[%s165 + $0x10] sm:$0x3]
      %v175 = vld [vmem:[%s165 + $0x18] sm:$0xff]
      %v176 = vld [vmem:[%s165 + $0x20] sm:$0xff]
      %v177 = vld [vmem:[%s165 + $0x28] sm:$0x3]
      %v178 = vld [vmem:[%s165 + $0x30] sm:$0xff]
      %v179 = vld [vmem:[%s165 + $0x38] sm:$0xff]
      %v180 = vld [vmem:[%s165 + $0x40] sm:$0x3]
      %v181 = vld [vmem:[%s165 + $0x48] sm:$0xff]
      %v182 = vld [vmem:[%s165 + $0x50] sm:$0xff]
      %v183 = vld [vmem:[%s165 + $0x58] sm:$0x3]
      %v184 = vld [vmem:[%s165 + $0x60] sm:$0xff]
      %v185 = vld [vmem:[%s165 + $0x68] sm:$0xff]
      %v186 = vld [vmem:[%s165 + $0x70] sm:$0x3]
      %v187 = vld [vmem:[%s165 + $0x78] sm:$0xff]
      %v188 = vld [vmem:[%s165 + $0x80] sm:$0xff]
      %v189 = vld [vmem:[%s165 + $0x88] sm:$0x3]
      %v190 = vld [vmem:[%s165 + $0x90] sm:$0xff]
      %v191 = vld [vmem:[%s165 + $0x98] sm:$0xff]
      %v192 = vld [vmem:[%s165 + $0xa0] sm:$0x3]
      %v193 = vld [vmem:[%s165 + $0xa8] sm:$0xff]
      %v194 = vld [vmem:[%s165 + $0xb0] sm:$0xff]
      %v195 = vld [vmem:[%s165 + $0xb8] sm:$0x3]
      %v196 = vld [vmem:[%s165 + $0xc0] sm:$0xff]
      %v197 = vld [vmem:[%s165 + $0xc8] sm:$0xff]
      %v198 = vld [vmem:[%s165 + $0xd0] sm:$0x3]
      %v199 = vld [vmem:[%s165 + $0xd8] sm:$0xff]
      %v200 = vld [vmem:[%s165 + $0xe0] sm:$0xff]
      %v201 = vld [vmem:[%s165 + $0xe8] sm:$0x3]
      %v202 = vld [vmem:[%s165 + $0xf0] sm:$0xff]
      %v203 = vld [vmem:[%s165 + $0xf8] sm:$0xff]
      %v204 = vld [vmem:[%s165 + $0x100] sm:$0x3]
      %v205 = vld [vmem:[%s165 + $0x108] sm:$0xff]
      %v206 = vld [vmem:[%s165 + $0x110] sm:$0xff]
      %v207 = vld [vmem:[%s165 + $0x118] sm:$0x3]
      %v208 = vpack.c.bf16 %v173, %v172
      %v209 = vpack.c.bf16 %v176, %v175
      %v210 = vpack.c.bf16 %v179, %v178
      %v211 = vpack.c.bf16 %v182, %v181
      %v212 = vpack.c.bf16 %v185, %v184
      %v213 = vpack.c.bf16 %v188, %v187
      %v214 = vpack.c.bf16 %v191, %v190
      %v215 = vpack.c.bf16 %v194, %v193
      %v216 = vpack.c.bf16 %v197, %v196
      %v217 = vpack.c.bf16 %v200, %v199
      %v218 = vld [vmem:[%s1] sm:$0x3]
      %vm249 = vcmask 1046528
      %v250 = vrot.slane %v172, 1
      %v251 = vrot.slane %v173, 1
      %v252 = vsel %vm249, %v250, %v251
      %v253 = vrot.slane %v174, 1
      %v254 = vsel %vm249, %v251, %v253
      %v255 = vrot.slane %v175, 1
      %v256 = vrot.slane %v176, 1
      %v257 = vsel %vm249, %v255, %v256
      %v258 = vrot.slane %v177, 1
      %v259 = vsel %vm249, %v256, %v258
      %v260 = vrot.slane %v178, 1
      %v261 = vrot.slane %v179, 1
      %v262 = vsel %vm249, %v260, %v261
      %v263 = vrot.slane %v180, 1
      %v264 = vsel %vm249, %v261, %v263
      %v265 = vrot.slane %v181, 1
      %v266 = vrot.slane %v182, 1
      %v267 = vsel %vm249, %v265, %v266
      %v268 = vrot.slane %v183, 1
      %v269 = vsel %vm249, %v266, %v268
      %v270 = vrot.slane %v184, 1
      %v271 = vrot.slane %v185, 1
      %v272 = vsel %vm249, %v270, %v271
      %v273 = vrot.slane %v186, 1
      %v274 = vsel %vm249, %v271, %v273
      %v275 = vrot.slane %v187, 1
      %v276 = vrot.slane %v188, 1
      %v277 = vsel %vm249, %v275, %v276
      %v278 = vrot.slane %v189, 1
      %v279 = vsel %vm249, %v276, %v278
      %v280 = vrot.slane %v190, 1
      %v281 = vrot.slane %v191, 1
      %v282 = vsel %vm249, %v280, %v281
      %v283 = vrot.slane %v192, 1
      %v284 = vsel %vm249, %v281, %v283
      %v285 = vrot.slane %v193, 1
      %v286 = vrot.slane %v194, 1
      %v287 = vsel %vm249, %v285, %v286
      %v288 = vrot.slane %v195, 1
      %v289 = vsel %vm249, %v286, %v288
      %v290 = vrot.slane %v196, 1
      %v291 = vrot.slane %v197, 1
      %v292 = vsel %vm249, %v290, %v291
      %v293 = vrot.slane %v198, 1
      %v294 = vsel %vm249, %v291, %v293
      %v295 = vrot.slane %v199, 1
      %v296 = vrot.slane %v200, 1
      %v297 = vsel %vm249, %v295, %v296
      %v298 = vrot.slane %v201, 1
      %v299 = vsel %vm249, %v296, %v298
      %v320 = vpack.c.bf16 %v254, %v252
      %v321 = vpack.c.bf16 %v259, %v257
      %v322 = vpack.c.bf16 %v264, %v262
      %v323 = vpack.c.bf16 %v269, %v267
      %v324 = vpack.c.bf16 %v274, %v272
      %v325 = vpack.c.bf16 %v279, %v277
      %v326 = vpack.c.bf16 %v284, %v282
      %v327 = vpack.c.bf16 %v289, %v287
      %v328 = vpack.c.bf16 %v294, %v292
      %v329 = vpack.c.bf16 %v299, %v297
      %s330 = scalar_lea.vmem %s1, 2
      %v331 = vld [vmem:[%s330] sm:$0x3]
      %vm332 = vcmask 23552
      %v334 = vsel %vm332, %v320, 0
      %v337 = vsel %vm332, %v321, 0
      %v340 = vsel %vm332, %v322, 0
      %v343 = vsel %vm332, %v323, 0
      %v346 = vsel %vm332, %v324, 0
      %v349 = vsel %vm332, %v325, 0
      %v352 = vsel %vm332, %v326, 0
      %v355 = vsel %vm332, %v327, 0
      %v358 = vsel %vm332, %v328, 0
      %v361 = vsel %vm332, %v329, 0
      %vm363 = vcmask 1040384
      %vm364 = vcmask 1041408
      %v365 = vsel %vm363, 4294967295, 65535
      %v366 = vsel %vm364, %v365, 0
      %v368 = vand.u32 %v331, %v366
      %370 = vmatprep.subr.bf16.mxu0 0
      %371 = vmatpush1.bf16.msra.mxu0 %v368
      %372 = vmatprep.subr.bf16.mxu0 0
      %373 = vmatpush1.bf16.msra.mxu0 0
      %374 = vmatprep.subr.bf16.mxu0 0
      %375 = vmatpush1.bf16.msra.mxu0 0
      %376 = vmatprep.subr.bf16.mxu0 0
      %377 = vmatpush1.bf16.msra.mxu0 0
      %378 = vmatprep.subr.bf16.mxu0 0
      %379 = vmatpush1.bf16.msra.mxu0 0
      %380 = vmatprep.subr.bf16.mxu0 0
      %381 = vmatpush1.bf16.msra.mxu0 0
      %382 = vmatprep.subr.bf16.mxu0 0
      %383 = vmatpush1.bf16.msra.mxu0 0
      %384 = vmatprep.subr.bf16.mxu0 0
      %385 = vmatpush1.bf16.msra.mxu0 0
      %386 = vmatprep.subr.bf16.mxu0 0
      %387 = vmatpush1.bf16.msra.mxu0 0
      %388 = vmatprep.subr.bf16.mxu0 0
      %389 = vmatpush1.bf16.msra.mxu0 0
      %390 = vmatprep.subr.bf16.mxu0 0
      %391 = vmatpush1.bf16.msra.mxu0 0
      %392 = vmatprep.subr.bf16.mxu0 0
      %393 = vmatpush1.bf16.msra.mxu0 0
      %394 = vmatprep.subr.bf16.mxu0 0
      %395 = vmatpush1.bf16.msra.mxu0 0
      %396 = vmatprep.subr.bf16.mxu0 0
      %397 = vmatpush1.bf16.msra.mxu0 0
      %398 = vmatprep.subr.bf16.mxu0 0
      %399 = vmatpush1.bf16.msra.mxu0 0
      %400 = vmatprep.subr.bf16.mxu0 0
      %401 = vmatpush1.bf16.msra.mxu0 0
      %402 = vmatprep.mubr.bf16.mxu0 0
      %403 = vmatmul.mubr.bf16.gmra.mrb[0].mxu0 %v334
      %v404 = vpop.f32.mrb[0].mxu0
      %v405 = vadd.f32 0.0, %v404
      %v406 = vpop.f32.mrb[0].mxu0
      %v407 = vpop.f32.mrb[0].mxu0
      %v408 = vadd.f32 0.0, %v407
      %v409 = vpop.f32.mrb[0].mxu0
      %410 = vmatprep.mubr.bf16.mxu0 0
      %411 = vmatmul.mubr.bf16.gmra.mrb[0].mxu0 %v337
      %v412 = vpop.f32.mrb[0].mxu0
      %v413 = vadd.f32 0.0, %v412
      %v414 = vpop.f32.mrb[0].mxu0
      %v415 = vpop.f32.mrb[0].mxu0
      %v416 = vadd.f32 0.0, %v415
      %v417 = vpop.f32.mrb[0].mxu0
      %418 = vmatprep.mubr.bf16.mxu0 0
      %419 = vmatmul.mubr.bf16.gmra.mrb[0].mxu0 %v340
      %v420 = vpop.f32.mrb[0].mxu0
      %v421 = vadd.f32 0.0, %v420
      %v422 = vpop.f32.mrb[0].mxu0
      %v423 = vpop.f32.mrb[0].mxu0
      %v424 = vadd.f32 0.0, %v423
      %v425 = vpop.f32.mrb[0].mxu0
      %426 = vmatprep.mubr.bf16.mxu0 0
      %427 = vmatmul.mubr.bf16.gmra.mrb[0].mxu0 %v343
      %v428 = vpop.f32.mrb[0].mxu0
      %v429 = vadd.f32 0.0, %v428
      %v430 = vpop.f32.mrb[0].mxu0
      %v431 = vpop.f32.mrb[0].mxu0
      %v432 = vadd.f32 0.0, %v431
      %v433 = vpop.f32.mrb[0].mxu0
      %434 = vmatprep.mubr.bf16.mxu0 0
      %435 = vmatmul.mubr.bf16.gmra.mrb[0].mxu0 %v346
      %v436 = vpop.f32.mrb[0].mxu0
      %v437 = vadd.f32 0.0, %v436
      %v438 = vpop.f32.mrb[0].mxu0
      %v439 = vpop.f32.mrb[0].mxu0
      %v440 = vadd.f32 0.0, %v439
      %v441 = vpop.f32.mrb[0].mxu0
      %442 = vmatprep.mubr.bf16.mxu0 0
      %443 = vmatmul.mubr.bf16.gmra.mrb[0].mxu0 %v349
      %v444 = vpop.f32.mrb[0].mxu0
      %v445 = vadd.f32 0.0, %v444
      %v446 = vpop.f32.mrb[0].mxu0
      %v447 = vpop.f32.mrb[0].mxu0
      %v448 = vadd.f32 0.0, %v447
      %v449 = vpop.f32.mrb[0].mxu0
      %450 = vmatprep.mubr.bf16.mxu0 0
      %451 = vmatmul.mubr.bf16.gmra.mrb[0].mxu0 %v352
      %v452 = vpop.f32.mrb[0].mxu0
      %v453 = vadd.f32 0.0, %v452
      %v454 = vpop.f32.mrb[0].mxu0
      %v455 = vpop.f32.mrb[0].mxu0
      %v456 = vadd.f32 0.0, %v455
      %v457 = vpop.f32.mrb[0].mxu0
      %458 = vmatprep.mubr.bf16.mxu0 0
      %459 = vmatmul.mubr.bf16.gmra.mrb[0].mxu0 %v355
      %v460 = vpop.f32.mrb[0].mxu0
      %v461 = vadd.f32 0.0, %v460
      %v462 = vpop.f32.mrb[0].mxu0
      %v463 = vpop.f32.mrb[0].mxu0
      %v464 = vadd.f32 0.0, %v463
      %v465 = vpop.f32.mrb[0].mxu0
      %466 = vmatprep.mubr.bf16.mxu0 0
      %467 = vmatmul.mubr.bf16.gmra.mrb[0].mxu0 %v358
      %v468 = vpop.f32.mrb[0].mxu0
      %v469 = vadd.f32 0.0, %v468
      %v470 = vpop.f32.mrb[0].mxu0
      %v471 = vpop.f32.mrb[0].mxu0
      %v472 = vadd.f32 0.0, %v471
      %v473 = vpop.f32.mrb[0].mxu0
      %474 = vmatprep.mubr.bf16.mxu0 0
      %475 = vmatmul.mubr.bf16.gmra.mrb[0].mxu0 %v361
      %v476 = vpop.f32.mrb[0].mxu0
      %v477 = vadd.f32 0.0, %v476
      %v478 = vpop.f32.mrb[0].mxu0
      %v479 = vpop.f32.mrb[0].mxu0
      %v480 = vadd.f32 0.0, %v479
      %v481 = vpop.f32.mrb[0].mxu0
      %482 = vdwg.mxu0
      %v484 = vsel %vm332, %v208, 0
      %v487 = vsel %vm332, %v209, 0
      %v490 = vsel %vm332, %v210, 0
      %v493 = vsel %vm332, %v211, 0
      %v496 = vsel %vm332, %v212, 0
      %v499 = vsel %vm332, %v213, 0
      %v502 = vsel %vm332, %v214, 0
      %v505 = vsel %vm332, %v215, 0
      %v508 = vsel %vm332, %v216, 0
      %v511 = vsel %vm332, %v217, 0
      %v514 = vand.u32 %v218, %v366
      %516 = vmatprep.subr.bf16.mxu0 0
      %517 = vmatpush1.bf16.msra.mxu0 %v514
      %518 = vmatprep.subr.bf16.mxu0 0
      %519 = vmatpush1.bf16.msra.mxu0 0
      %520 = vmatprep.subr.bf16.mxu0 0
      %521 = vmatpush1.bf16.msra.mxu0 0
      %522 = vmatprep.subr.bf16.mxu0 0
      %523 = vmatpush1.bf16.msra.mxu0 0
      %524 = vmatprep.subr.bf16.mxu0 0
      %525 = vmatpush1.bf16.msra.mxu0 0
      %526 = vmatprep.subr.bf16.mxu0 0
      %527 = vmatpush1.bf16.msra.mxu0 0
      %528 = vmatprep.subr.bf16.mxu0 0
      %529 = vmatpush1.bf16.msra.mxu0 0
      %530 = vmatprep.subr.bf16.mxu0 0
      %531 = vmatpush1.bf16.msra.mxu0 0
      %532 = vmatprep.subr.bf16.mxu0 0
      %533 = vmatpush1.bf16.msra.mxu0 0
      %534 = vmatprep.subr.bf16.mxu0 0
      %535 = vmatpush1.bf16.msra.mxu0 0
      %536 = vmatprep.subr.bf16.mxu0 0
      %537 = vmatpush1.bf16.msra.mxu0 0
      %538 = vmatprep.subr.bf16.mxu0 0
      %539 = vmatpush1.bf16.msra.mxu0 0
      %540 = vmatprep.subr.bf16.mxu0 0
      %541 = vmatpush1.bf16.msra.mxu0 0
      %542 = vmatprep.subr.bf16.mxu0 0
      %543 = vmatpush1.bf16.msra.mxu0 0
      %544 = vmatprep.subr.bf16.mxu0 0
      %545 = vmatpush1.bf16.msra.mxu0 0
      %546 = vmatprep.subr.bf16.mxu0 0
      %547 = vmatpush1.bf16.msra.mxu0 0
      %548 = vmatprep.mubr.bf16.mxu0 0
      %549 = vmatmul.mubr.bf16.gmra.mrb[0].mxu0 %v484
      %v550 = vpop.f32.mrb[0].mxu0
      %v551 = vadd.f32 %v405, %v550
      %v552 = vpop.f32.mrb[0].mxu0
      %v553 = vpop.f32.mrb[0].mxu0
      %v554 = vadd.f32 %v408, %v553
      %v555 = vpop.f32.mrb[0].mxu0
      %556 = vmatprep.mubr.bf16.mxu0 0
      %557 = vmatmul.mubr.bf16.gmra.mrb[0].mxu0 %v487
      %v558 = vpop.f32.mrb[0].mxu0
      %v559 = vadd.f32 %v413, %v558
      %v560 = vpop.f32.mrb[0].mxu0
      %v561 = vpop.f32.mrb[0].mxu0
      %v562 = vadd.f32 %v416, %v561
      %v563 = vpop.f32.mrb[0].mxu0
      %564 = vmatprep.mubr.bf16.mxu0 0
      %565 = vmatmul.mubr.bf16.gmra.mrb[0].mxu0 %v490
      %v566 = vpop.f32.mrb[0].mxu0
      %v567 = vadd.f32 %v421, %v566
      %v568 = vpop.f32.mrb[0].mxu0
      %v569 = vpop.f32.mrb[0].mxu0
      %v570 = vadd.f32 %v424, %v569
      %v571 = vpop.f32.mrb[0].mxu0
      %572 = vmatprep.mubr.bf16.mxu0 0
      %573 = vmatmul.mubr.bf16.gmra.mrb[0].mxu0 %v493
      %v574 = vpop.f32.mrb[0].mxu0
      %v575 = vadd.f32 %v429, %v574
      %v576 = vpop.f32.mrb[0].mxu0
      %v577 = vpop.f32.mrb[0].mxu0
      %v578 = vadd.f32 %v432, %v577
      %v579 = vpop.f32.mrb[0].mxu0
      %580 = vmatprep.mubr.bf16.mxu0 0
      %581 = vmatmul.mubr.bf16.gmra.mrb[0].mxu0 %v496
      %v582 = vpop.f32.mrb[0].mxu0
      %v583 = vadd.f32 %v437, %v582
      %v584 = vpop.f32.mrb[0].mxu0
      %v585 = vpop.f32.mrb[0].mxu0
      %v586 = vadd.f32 %v440, %v585
      %v587 = vpop.f32.mrb[0].mxu0
      %588 = vmatprep.mubr.bf16.mxu0 0
      %589 = vmatmul.mubr.bf16.gmra.mrb[0].mxu0 %v499
      %v590 = vpop.f32.mrb[0].mxu0
      %v591 = vadd.f32 %v445, %v590
      %v592 = vpop.f32.mrb[0].mxu0
      %v593 = vpop.f32.mrb[0].mxu0
      %v594 = vadd.f32 %v448, %v593
      %v595 = vpop.f32.mrb[0].mxu0
      %596 = vmatprep.mubr.bf16.mxu0 0
      %597 = vmatmul.mubr.bf16.gmra.mrb[0].mxu0 %v502
      %v598 = vpop.f32.mrb[0].mxu0
      %v599 = vadd.f32 %v453, %v598
      %v600 = vpop.f32.mrb[0].mxu0
      %v601 = vpop.f32.mrb[0].mxu0
      %v602 = vadd.f32 %v456, %v601
      %v603 = vpop.f32.mrb[0].mxu0
      %604 = vmatprep.mubr.bf16.mxu0 0
      %605 = vmatmul.mubr.bf16.gmra.mrb[0].mxu0 %v505
      %v606 = vpop.f32.mrb[0].mxu0
      %v607 = vadd.f32 %v461, %v606
      %v608 = vpop.f32.mrb[0].mxu0
      %v609 = vpop.f32.mrb[0].mxu0
      %v610 = vadd.f32 %v464, %v609
      %v611 = vpop.f32.mrb[0].mxu0
      %612 = vmatprep.mubr.bf16.mxu0 0
      %613 = vmatmul.mubr.bf16.gmra.mrb[0].mxu0 %v508
      %v614 = vpop.f32.mrb[0].mxu0
      %v615 = vadd.f32 %v469, %v614
      %v616 = vpop.f32.mrb[0].mxu0
      %v617 = vpop.f32.mrb[0].mxu0
      %v618 = vadd.f32 %v472, %v617
      %v619 = vpop.f32.mrb[0].mxu0
      %620 = vmatprep.mubr.bf16.mxu0 0
      %621 = vmatmul.mubr.bf16.gmra.mrb[0].mxu0 %v511
      %v622 = vpop.f32.mrb[0].mxu0
      %v623 = vadd.f32 %v477, %v622
      %v624 = vpop.f32.mrb[0].mxu0
      %v625 = vpop.f32.mrb[0].mxu0
      %v626 = vadd.f32 %v480, %v625
      %v627 = vpop.f32.mrb[0].mxu0
      %628 = vdwg.mxu0
      %vm629 = vcmask 1045504
      %v630 = vrot.slane %v172, 2
      %v631 = vrot.slane %v173, 2
      %v632 = vsel %vm629, %v630, %v631
      %v633 = vrot.slane %v174, 2
      %v634 = vsel %vm629, %v631, %v633
      %v635 = vrot.slane %v175, 2
      %v636 = vrot.slane %v176, 2
      %v637 = vsel %vm629, %v635, %v636
      %v638 = vrot.slane %v177, 2
      %v639 = vsel %vm629, %v636, %v638
      %v640 = vrot.slane %v178, 2
      %v641 = vrot.slane %v179, 2
      %v642 = vsel %vm629, %v640, %v641
      %v643 = vrot.slane %v180, 2
      %v644 = vsel %vm629, %v641, %v643
      %v645 = vrot.slane %v181, 2
      %v646 = vrot.slane %v182, 2
      %v647 = vsel %vm629, %v645, %v646
      %v648 = vrot.slane %v183, 2
      %v649 = vsel %vm629, %v646, %v648
      %v650 = vrot.slane %v184, 2
      %v651 = vrot.slane %v185, 2
      %v652 = vsel %vm629, %v650, %v651
      %v653 = vrot.slane %v186, 2
      %v654 = vsel %vm629, %v651, %v653
      %v655 = vrot.slane %v187, 2
      %v656 = vrot.slane %v188, 2
      %v657 = vsel %vm629, %v655, %v656
      %v658 = vrot.slane %v189, 2
      %v659 = vsel %vm629, %v656, %v658
      %v660 = vrot.slane %v190, 2
      %v661 = vrot.slane %v191, 2
      %v662 = vsel %vm629, %v660, %v661
      %v663 = vrot.slane %v192, 2
      %v664 = vsel %vm629, %v661, %v663
      %v665 = vrot.slane %v193, 2
      %v666 = vrot.slane %v194, 2
      %v667 = vsel %vm629, %v665, %v666
      %v668 = vrot.slane %v195, 2
      %v669 = vsel %vm629, %v666, %v668
      %v670 = vrot.slane %v196, 2
      %v671 = vrot.slane %v197, 2
      %v672 = vsel %vm629, %v670, %v671
      %v673 = vrot.slane %v198, 2
      %v674 = vsel %vm629, %v671, %v673
      %v675 = vrot.slane %v199, 2
      %v676 = vrot.slane %v200, 2
      %v677 = vsel %vm629, %v675, %v676
      %v678 = vrot.slane %v201, 2
      %v679 = vsel %vm629, %v676, %v678
      %v700 = vpack.c.bf16 %v634, %v632
      %v701 = vpack.c.bf16 %v639, %v637
      %v702 = vpack.c.bf16 %v644, %v642
      %v703 = vpack.c.bf16 %v649, %v647
      %v704 = vpack.c.bf16 %v654, %v652
      %v705 = vpack.c.bf16 %v659, %v657
      %v706 = vpack.c.bf16 %v664, %v662
      %v707 = vpack.c.bf16 %v669, %v667
      %v708 = vpack.c.bf16 %v674, %v672
      %v709 = vpack.c.bf16 %v679, %v677
      %s710 = scalar_lea.vmem %s1, 4
      %v711 = vld [vmem:[%s710] sm:$0x3]
      %v713 = vsel %vm332, %v700, 0
      %v716 = vsel %vm332, %v701, 0
      %v719 = vsel %vm332, %v702, 0
      %v722 = vsel %vm332, %v703, 0
      %v725 = vsel %vm332, %v704, 0
      %v728 = vsel %vm332, %v705, 0
      %v731 = vsel %vm332, %v706, 0
      %v734 = vsel %vm332, %v707, 0
      %v737 = vsel %vm332, %v708, 0
      %v740 = vsel %vm332, %v709, 0
      %v743 = vand.u32 %v711, %v366
      %745 = vmatprep.subr.bf16.mxu0 0
      %746 = vmatpush1.bf16.msra.mxu0 %v743
      %747 = vmatprep.subr.bf16.mxu0 0
      %748 = vmatpush1.bf16.msra.mxu0 0
      %749 = vmatprep.subr.bf16.mxu0 0
      %750 = vmatpush1.bf16.msra.mxu0 0
      %751 = vmatprep.subr.bf16.mxu0 0
      %752 = vmatpush1.bf16.msra.mxu0 0
      %753 = vmatprep.subr.bf16.mxu0 0
      %754 = vmatpush1.bf16.msra.mxu0 0
      %755 = vmatprep.subr.bf16.mxu0 0
      %756 = vmatpush1.bf16.msra.mxu0 0
      %757 = vmatprep.subr.bf16.mxu0 0
      %758 = vmatpush1.bf16.msra.mxu0 0
      %759 = vmatprep.subr.bf16.mxu0 0
      %760 = vmatpush1.bf16.msra.mxu0 0
      %761 = vmatprep.subr.bf16.mxu0 0
      %762 = vmatpush1.bf16.msra.mxu0 0
      %763 = vmatprep.subr.bf16.mxu0 0
      %764 = vmatpush1.bf16.msra.mxu0 0
      %765 = vmatprep.subr.bf16.mxu0 0
      %766 = vmatpush1.bf16.msra.mxu0 0
      %767 = vmatprep.subr.bf16.mxu0 0
      %768 = vmatpush1.bf16.msra.mxu0 0
      %769 = vmatprep.subr.bf16.mxu0 0
      %770 = vmatpush1.bf16.msra.mxu0 0
      %771 = vmatprep.subr.bf16.mxu0 0
      %772 = vmatpush1.bf16.msra.mxu0 0
      %773 = vmatprep.subr.bf16.mxu0 0
      %774 = vmatpush1.bf16.msra.mxu0 0
      %775 = vmatprep.subr.bf16.mxu0 0
      %776 = vmatpush1.bf16.msra.mxu0 0
      %777 = vmatprep.mubr.bf16.mxu0 0
      %778 = vmatmul.mubr.bf16.gmra.mrb[0].mxu0 %v713
      %v779 = vpop.f32.mrb[0].mxu0
      %v780 = vadd.f32 0.0, %v779
      %v781 = vpop.f32.mrb[0].mxu0
      %v782 = vpop.f32.mrb[0].mxu0
      %v783 = vadd.f32 0.0, %v782
      %v784 = vpop.f32.mrb[0].mxu0
      %785 = vmatprep.mubr.bf16.mxu0 0
      %786 = vmatmul.mubr.bf16.gmra.mrb[0].mxu0 %v716
      %v787 = vpop.f32.mrb[0].mxu0
      %v788 = vadd.f32 0.0, %v787
      %v789 = vpop.f32.mrb[0].mxu0
      %v790 = vpop.f32.mrb[0].mxu0
      %v791 = vadd.f32 0.0, %v790
      %v792 = vpop.f32.mrb[0].mxu0
      %793 = vmatprep.mubr.bf16.mxu0 0
      %794 = vmatmul.mubr.bf16.gmra.mrb[0].mxu0 %v719
      %v795 = vpop.f32.mrb[0].mxu0
      %v796 = vadd.f32 0.0, %v795
      %v797 = vpop.f32.mrb[0].mxu0
      %v798 = vpop.f32.mrb[0].mxu0
      %v799 = vadd.f32 0.0, %v798
      %v800 = vpop.f32.mrb[0].mxu0
      %801 = vmatprep.mubr.bf16.mxu0 0
      %802 = vmatmul.mubr.bf16.gmra.mrb[0].mxu0 %v722
      %v803 = vpop.f32.mrb[0].mxu0
      %v804 = vadd.f32 0.0, %v803
      %v805 = vpop.f32.mrb[0].mxu0
      %v806 = vpop.f32.mrb[0].mxu0
      %v807 = vadd.f32 0.0, %v806
      %v808 = vpop.f32.mrb[0].mxu0
      %809 = vmatprep.mubr.bf16.mxu0 0
      %810 = vmatmul.mubr.bf16.gmra.mrb[0].mxu0 %v725
      %v811 = vpop.f32.mrb[0].mxu0
      %v812 = vadd.f32 0.0, %v811
      %v813 = vpop.f32.mrb[0].mxu0
      %v814 = vpop.f32.mrb[0].mxu0
      %v815 = vadd.f32 0.0, %v814
      %v816 = vpop.f32.mrb[0].mxu0
      %817 = vmatprep.mubr.bf16.mxu0 0
      %818 = vmatmul.mubr.bf16.gmra.mrb[0].mxu0 %v728
      %v819 = vpop.f32.mrb[0].mxu0
      %v820 = vadd.f32 0.0, %v819
      %v821 = vpop.f32.mrb[0].mxu0
      %v822 = vpop.f32.mrb[0].mxu0
      %v823 = vadd.f32 0.0, %v822
      %v824 = vpop.f32.mrb[0].mxu0
      %825 = vmatprep.mubr.bf16.mxu0 0
      %826 = vmatmul.mubr.bf16.gmra.mrb[0].mxu0 %v731
      %v827 = vpop.f32.mrb[0].mxu0
      %v828 = vadd.f32 0.0, %v827
      %v829 = vpop.f32.mrb[0].mxu0
      %v830 = vpop.f32.mrb[0].mxu0
      %v831 = vadd.f32 0.0, %v830
      %v832 = vpop.f32.mrb[0].mxu0
      %833 = vmatprep.mubr.bf16.mxu0 0
      %834 = vmatmul.mubr.bf16.gmra.mrb[0].mxu0 %v734
      %v835 = vpop.f32.mrb[0].mxu0
      %v836 = vadd.f32 0.0, %v835
      %v837 = vpop.f32.mrb[0].mxu0
      %v838 = vpop.f32.mrb[0].mxu0
      %v839 = vadd.f32 0.0, %v838
      %v840 = vpop.f32.mrb[0].mxu0
      %841 = vmatprep.mubr.bf16.mxu0 0
      %842 = vmatmul.mubr.bf16.gmra.mrb[0].mxu0 %v737
      %v843 = vpop.f32.mrb[0].mxu0
      %v844 = vadd.f32 0.0, %v843
      %v845 = vpop.f32.mrb[0].mxu0
      %v846 = vpop.f32.mrb[0].mxu0
      %v847 = vadd.f32 0.0, %v846
      %v848 = vpop.f32.mrb[0].mxu0
      %849 = vmatprep.mubr.bf16.mxu0 0
      %850 = vmatmul.mubr.bf16.gmra.mrb[0].mxu0 %v740
      %v851 = vpop.f32.mrb[0].mxu0
      %v852 = vadd.f32 0.0, %v851
      %v853 = vpop.f32.mrb[0].mxu0
      %v854 = vpop.f32.mrb[0].mxu0
      %v855 = vadd.f32 0.0, %v854
      %v856 = vpop.f32.mrb[0].mxu0
      %857 = vdwg.mxu0
      %v858 = vadd.f32 %v551, %v780
      %v859 = vadd.f32 %v554, %v783
      %v860 = vadd.f32 %v559, %v788
      %v861 = vadd.f32 %v562, %v791
      %v862 = vadd.f32 %v567, %v796
      %v863 = vadd.f32 %v570, %v799
      %v864 = vadd.f32 %v575, %v804
      %v865 = vadd.f32 %v578, %v807
      %v866 = vadd.f32 %v583, %v812
      %v867 = vadd.f32 %v586, %v815
      %v868 = vadd.f32 %v591, %v820
      %v869 = vadd.f32 %v594, %v823
      %v870 = vadd.f32 %v599, %v828
      %v871 = vadd.f32 %v602, %v831
      %v872 = vadd.f32 %v607, %v836
      %v873 = vadd.f32 %v610, %v839
      %v874 = vadd.f32 %v615, %v844
      %v875 = vadd.f32 %v618, %v847
      %v876 = vadd.f32 %v623, %v852
      %v877 = vadd.f32 %v626, %v855
      %v878 = vpack.c.bf16 %v203, %v202
      %s879 = scalar_lea.vmem %s1, 6
      %v880 = vld [vmem:[%s879] sm:$0x3]
      %v882 = vsel %vm332, %v878, 0
      %v885 = vand.u32 %v880, %v366
      %887 = vmatprep.subr.bf16.mxu0 0
      %888 = vmatpush1.bf16.msra.mxu0 %v885
      %889 = vmatprep.subr.bf16.mxu0 0
      %890 = vmatpush1.bf16.msra.mxu0 0
      %891 = vmatprep.subr.bf16.mxu0 0
      %892 = vmatpush1.bf16.msra.mxu0 0
      %893 = vmatprep.subr.bf16.mxu0 0
      %894 = vmatpush1.bf16.msra.mxu0 0
      %895 = vmatprep.subr.bf16.mxu0 0
      %896 = vmatpush1.bf16.msra.mxu0 0
      %897 = vmatprep.subr.bf16.mxu0 0
      %898 = vmatpush1.bf16.msra.mxu0 0
      %899 = vmatprep.subr.bf16.mxu0 0
      %900 = vmatpush1.bf16.msra.mxu0 0
      %901 = vmatprep.subr.bf16.mxu0 0
      %902 = vmatpush1.bf16.msra.mxu0 0
      %903 = vmatprep.subr.bf16.mxu0 0
      %904 = vmatpush1.bf16.msra.mxu0 0
      %905 = vmatprep.subr.bf16.mxu0 0
      %906 = vmatpush1.bf16.msra.mxu0 0
      %907 = vmatprep.subr.bf16.mxu0 0
      %908 = vmatpush1.bf16.msra.mxu0 0
      %909 = vmatprep.subr.bf16.mxu0 0
      %910 = vmatpush1.bf16.msra.mxu0 0
      %911 = vmatprep.subr.bf16.mxu0 0
      %912 = vmatpush1.bf16.msra.mxu0 0
      %913 = vmatprep.subr.bf16.mxu0 0
      %914 = vmatpush1.bf16.msra.mxu0 0
      %915 = vmatprep.subr.bf16.mxu0 0
      %916 = vmatpush1.bf16.msra.mxu0 0
      %917 = vmatprep.subr.bf16.mxu0 0
      %918 = vmatpush1.bf16.msra.mxu0 0
      %919 = vmatprep.mubr.bf16.mxu0 0
      %920 = vmatmul.mubr.bf16.gmra.mrb[0].mxu0 %v487
      %v921 = vpop.f32.mrb[0].mxu0
      %v922 = vadd.f32 0.0, %v921
      %v923 = vpop.f32.mrb[0].mxu0
      %v924 = vpop.f32.mrb[0].mxu0
      %v925 = vadd.f32 0.0, %v924
      %v926 = vpop.f32.mrb[0].mxu0
      %927 = vmatprep.mubr.bf16.mxu0 0
      %928 = vmatmul.mubr.bf16.gmra.mrb[0].mxu0 %v490
      %v929 = vpop.f32.mrb[0].mxu0
      %v930 = vadd.f32 0.0, %v929
      %v931 = vpop.f32.mrb[0].mxu0
      %v932 = vpop.f32.mrb[0].mxu0
      %v933 = vadd.f32 0.0, %v932
      %v934 = vpop.f32.mrb[0].mxu0
      %935 = vmatprep.mubr.bf16.mxu0 0
      %936 = vmatmul.mubr.bf16.gmra.mrb[0].mxu0 %v493
      %v937 = vpop.f32.mrb[0].mxu0
      %v938 = vadd.f32 0.0, %v937
      %v939 = vpop.f32.mrb[0].mxu0
      %v940 = vpop.f32.mrb[0].mxu0
      %v941 = vadd.f32 0.0, %v940
      %v942 = vpop.f32.mrb[0].mxu0
      %943 = vmatprep.mubr.bf16.mxu0 0
      %944 = vmatmul.mubr.bf16.gmra.mrb[0].mxu0 %v496
      %v945 = vpop.f32.mrb[0].mxu0
      %v946 = vadd.f32 0.0, %v945
      %v947 = vpop.f32.mrb[0].mxu0
      %v948 = vpop.f32.mrb[0].mxu0
      %v949 = vadd.f32 0.0, %v948
      %v950 = vpop.f32.mrb[0].mxu0
      %951 = vmatprep.mubr.bf16.mxu0 0
      %952 = vmatmul.mubr.bf16.gmra.mrb[0].mxu0 %v499
      %v953 = vpop.f32.mrb[0].mxu0
      %v954 = vadd.f32 0.0, %v953
      %v955 = vpop.f32.mrb[0].mxu0
      %v956 = vpop.f32.mrb[0].mxu0
      %v957 = vadd.f32 0.0, %v956
      %v958 = vpop.f32.mrb[0].mxu0
      %959 = vmatprep.mubr.bf16.mxu0 0
      %960 = vmatmul.mubr.bf16.gmra.mrb[0].mxu0 %v502
      %v961 = vpop.f32.mrb[0].mxu0
      %v962 = vadd.f32 0.0, %v961
      %v963 = vpop.f32.mrb[0].mxu0
      %v964 = vpop.f32.mrb[0].mxu0
      %v965 = vadd.f32 0.0, %v964
      %v966 = vpop.f32.mrb[0].mxu0
      %967 = vmatprep.mubr.bf16.mxu0 0
      %968 = vmatmul.mubr.bf16.gmra.mrb[0].mxu0 %v505
      %v969 = vpop.f32.mrb[0].mxu0
      %v970 = vadd.f32 0.0, %v969
      %v971 = vpop.f32.mrb[0].mxu0
      %v972 = vpop.f32.mrb[0].mxu0
      %v973 = vadd.f32 0.0, %v972
      %v974 = vpop.f32.mrb[0].mxu0
      %975 = vmatprep.mubr.bf16.mxu0 0
      %976 = vmatmul.mubr.bf16.gmra.mrb[0].mxu0 %v508
      %v977 = vpop.f32.mrb[0].mxu0
      %v978 = vadd.f32 0.0, %v977
      %v979 = vpop.f32.mrb[0].mxu0
      %v980 = vpop.f32.mrb[0].mxu0
      %v981 = vadd.f32 0.0, %v980
      %v982 = vpop.f32.mrb[0].mxu0
      %983 = vmatprep.mubr.bf16.mxu0 0
      %984 = vmatmul.mubr.bf16.gmra.mrb[0].mxu0 %v511
      %v985 = vpop.f32.mrb[0].mxu0
      %v986 = vadd.f32 0.0, %v985
      %v987 = vpop.f32.mrb[0].mxu0
      %v988 = vpop.f32.mrb[0].mxu0
      %v989 = vadd.f32 0.0, %v988
      %v990 = vpop.f32.mrb[0].mxu0
      %991 = vmatprep.mubr.bf16.mxu0 0
      %992 = vmatmul.mubr.bf16.gmra.mrb[0].mxu0 %v882
      %v993 = vpop.f32.mrb[0].mxu0
      %v994 = vadd.f32 0.0, %v993
      %v995 = vpop.f32.mrb[0].mxu0
      %v996 = vpop.f32.mrb[0].mxu0
      %v997 = vadd.f32 0.0, %v996
      %v998 = vpop.f32.mrb[0].mxu0
      %999 = vdwg.mxu0
      %v1000 = vadd.f32 %v858, %v922
      %v1001 = vadd.f32 %v859, %v925
      %v1002 = vadd.f32 %v860, %v930
      %v1003 = vadd.f32 %v861, %v933
      %v1004 = vadd.f32 %v862, %v938
      %v1005 = vadd.f32 %v863, %v941
      %v1006 = vadd.f32 %v864, %v946
      %v1007 = vadd.f32 %v865, %v949
      %v1008 = vadd.f32 %v866, %v954
      %v1009 = vadd.f32 %v867, %v957
      %v1010 = vadd.f32 %v868, %v962
      %v1011 = vadd.f32 %v869, %v965
      %v1012 = vadd.f32 %v870, %v970
      %v1013 = vadd.f32 %v871, %v973
      %v1014 = vadd.f32 %v872, %v978
      %v1015 = vadd.f32 %v873, %v981
      %v1016 = vadd.f32 %v874, %v986
      %v1017 = vadd.f32 %v875, %v989
      %v1018 = vadd.f32 %v876, %v994
      %v1019 = vadd.f32 %v877, %v997
      %v1023 = vrot.slane %v202, 1
      %v1024 = vrot.slane %v203, 1
      %v1025 = vsel %vm249, %v1023, %v1024
      %v1026 = vrot.slane %v204, 1
      %v1027 = vsel %vm249, %v1024, %v1026
      %v1030 = vpack.c.bf16 %v1027, %v1025
      %s1031 = scalar_lea.vmem %s1, 8
      %v1032 = vld [vmem:[%s1031] sm:$0x3]
      %v1034 = vsel %vm332, %v1030, 0
      %v1037 = vand.u32 %v1032, %v366
      %1039 = vmatprep.subr.bf16.mxu0 0
      %1040 = vmatpush1.bf16.msra.mxu0 %v1037
      %1041 = vmatprep.subr.bf16.mxu0 0
      %1042 = vmatpush1.bf16.msra.mxu0 0
      %1043 = vmatprep.subr.bf16.mxu0 0
      %1044 = vmatpush1.bf16.msra.mxu0 0
      %1045 = vmatprep.subr.bf16.mxu0 0
      %1046 = vmatpush1.bf16.msra.mxu0 0
      %1047 = vmatprep.subr.bf16.mxu0 0
      %1048 = vmatpush1.bf16.msra.mxu0 0
      %1049 = vmatprep.subr.bf16.mxu0 0
      %1050 = vmatpush1.bf16.msra.mxu0 0
      %1051 = vmatprep.subr.bf16.mxu0 0
      %1052 = vmatpush1.bf16.msra.mxu0 0
      %1053 = vmatprep.subr.bf16.mxu0 0
      %1054 = vmatpush1.bf16.msra.mxu0 0
      %1055 = vmatprep.subr.bf16.mxu0 0
      %1056 = vmatpush1.bf16.msra.mxu0 0
      %1057 = vmatprep.subr.bf16.mxu0 0
      %1058 = vmatpush1.bf16.msra.mxu0 0
      %1059 = vmatprep.subr.bf16.mxu0 0
      %1060 = vmatpush1.bf16.msra.mxu0 0
      %1061 = vmatprep.subr.bf16.mxu0 0
      %1062 = vmatpush1.bf16.msra.mxu0 0
      %1063 = vmatprep.subr.bf16.mxu0 0
      %1064 = vmatpush1.bf16.msra.mxu0 0
      %1065 = vmatprep.subr.bf16.mxu0 0
      %1066 = vmatpush1.bf16.msra.mxu0 0
      %1067 = vmatprep.subr.bf16.mxu0 0
      %1068 = vmatpush1.bf16.msra.mxu0 0
      %1069 = vmatprep.subr.bf16.mxu0 0
      %1070 = vmatpush1.bf16.msra.mxu0 0
      %1071 = vmatprep.mubr.bf16.mxu0 0
      %1072 = vmatmul.mubr.bf16.gmra.mrb[0].mxu0 %v337
      %v1073 = vpop.f32.mrb[0].mxu0
      %v1074 = vadd.f32 0.0, %v1073
      %v1075 = vpop.f32.mrb[0].mxu0
      %v1076 = vpop.f32.mrb[0].mxu0
      %v1077 = vadd.f32 0.0, %v1076
      %v1078 = vpop.f32.mrb[0].mxu0
      %1079 = vmatprep.mubr.bf16.mxu0 0
      %1080 = vmatmul.mubr.bf16.gmra.mrb[0].mxu0 %v340
      %v1081 = vpop.f32.mrb[0].mxu0
      %v1082 = vadd.f32 0.0, %v1081
      %v1083 = vpop.f32.mrb[0].mxu0
      %v1084 = vpop.f32.mrb[0].mxu0
      %v1085 = vadd.f32 0.0, %v1084
      %v1086 = vpop.f32.mrb[0].mxu0
      %1087 = vmatprep.mubr.bf16.mxu0 0
      %1088 = vmatmul.mubr.bf16.gmra.mrb[0].mxu0 %v343
      %v1089 = vpop.f32.mrb[0].mxu0
      %v1090 = vadd.f32 0.0, %v1089
      %v1091 = vpop.f32.mrb[0].mxu0
      %v1092 = vpop.f32.mrb[0].mxu0
      %v1093 = vadd.f32 0.0, %v1092
      %v1094 = vpop.f32.mrb[0].mxu0
      %1095 = vmatprep.mubr.bf16.mxu0 0
      %1096 = vmatmul.mubr.bf16.gmra.mrb[0].mxu0 %v346
      %v1097 = vpop.f32.mrb[0].mxu0
      %v1098 = vadd.f32 0.0, %v1097
      %v1099 = vpop.f32.mrb[0].mxu0
      %v1100 = vpop.f32.mrb[0].mxu0
      %v1101 = vadd.f32 0.0, %v1100
      %v1102 = vpop.f32.mrb[0].mxu0
      %1103 = vmatprep.mubr.bf16.mxu0 0
      %1104 = vmatmul.mubr.bf16.gmra.mrb[0].mxu0 %v349
      %v1105 = vpop.f32.mrb[0].mxu0
      %v1106 = vadd.f32 0.0, %v1105
      %v1107 = vpop.f32.mrb[0].mxu0
      %v1108 = vpop.f32.mrb[0].mxu0
      %v1109 = vadd.f32 0.0, %v1108
      %v1110 = vpop.f32.mrb[0].mxu0
      %1111 = vmatprep.mubr.bf16.mxu0 0
      %1112 = vmatmul.mubr.bf16.gmra.mrb[0].mxu0 %v352
      %v1113 = vpop.f32.mrb[0].mxu0
      %v1114 = vadd.f32 0.0, %v1113
      %v1115 = vpop.f32.mrb[0].mxu0
      %v1116 = vpop.f32.mrb[0].mxu0
      %v1117 = vadd.f32 0.0, %v1116
      %v1118 = vpop.f32.mrb[0].mxu0
      %1119 = vmatprep.mubr.bf16.mxu0 0
      %1120 = vmatmul.mubr.bf16.gmra.mrb[0].mxu0 %v355
      %v1121 = vpop.f32.mrb[0].mxu0
      %v1122 = vadd.f32 0.0, %v1121
      %v1123 = vpop.f32.mrb[0].mxu0
      %v1124 = vpop.f32.mrb[0].mxu0
      %v1125 = vadd.f32 0.0, %v1124
      %v1126 = vpop.f32.mrb[0].mxu0
      %1127 = vmatprep.mubr.bf16.mxu0 0
      %1128 = vmatmul.mubr.bf16.gmra.mrb[0].mxu0 %v358
      %v1129 = vpop.f32.mrb[0].mxu0
      %v1130 = vadd.f32 0.0, %v1129
      %v1131 = vpop.f32.mrb[0].mxu0
      %v1132 = vpop.f32.mrb[0].mxu0
      %v1133 = vadd.f32 0.0, %v1132
      %v1134 = vpop.f32.mrb[0].mxu0
      %1135 = vmatprep.mubr.bf16.mxu0 0
      %1136 = vmatmul.mubr.bf16.gmra.mrb[0].mxu0 %v361
      %v1137 = vpop.f32.mrb[0].mxu0
      %v1138 = vadd.f32 0.0, %v1137
      %v1139 = vpop.f32.mrb[0].mxu0
      %v1140 = vpop.f32.mrb[0].mxu0
      %v1141 = vadd.f32 0.0, %v1140
      %v1142 = vpop.f32.mrb[0].mxu0
      %1143 = vmatprep.mubr.bf16.mxu0 0
      %1144 = vmatmul.mubr.bf16.gmra.mrb[0].mxu0 %v1034
      %v1145 = vpop.f32.mrb[0].mxu0
      %v1146 = vadd.f32 0.0, %v1145
      %v1147 = vpop.f32.mrb[0].mxu0
      %v1148 = vpop.f32.mrb[0].mxu0
      %v1149 = vadd.f32 0.0, %v1148
      %v1150 = vpop.f32.mrb[0].mxu0
      %1151 = vdwg.mxu0
      %v1152 = vadd.f32 %v1000, %v1074
      %v1153 = vadd.f32 %v1001, %v1077
      %v1154 = vadd.f32 %v1002, %v1082
      %v1155 = vadd.f32 %v1003, %v1085
      %v1156 = vadd.f32 %v1004, %v1090
      %v1157 = vadd.f32 %v1005, %v1093
      %v1158 = vadd.f32 %v1006, %v1098
      %v1159 = vadd.f32 %v1007, %v1101
      %v1160 = vadd.f32 %v1008, %v1106
      %v1161 = vadd.f32 %v1009, %v1109
      %v1162 = vadd.f32 %v1010, %v1114
      %v1163 = vadd.f32 %v1011, %v1117
      %v1164 = vadd.f32 %v1012, %v1122
      %v1165 = vadd.f32 %v1013, %v1125
      %v1166 = vadd.f32 %v1014, %v1130
      %v1167 = vadd.f32 %v1015, %v1133
      %v1168 = vadd.f32 %v1016, %v1138
      %v1169 = vadd.f32 %v1017, %v1141
      %v1170 = vadd.f32 %v1018, %v1146
      %v1171 = vadd.f32 %v1019, %v1149
      %v1172 = vrot.slane %v202, 2
      %v1173 = vrot.slane %v203, 2
      %v1174 = vsel %vm629, %v1172, %v1173
      %v1175 = vrot.slane %v204, 2
      %v1176 = vsel %vm629, %v1173, %v1175
      %v1179 = vpack.c.bf16 %v1176, %v1174
      %s1180 = scalar_lea.vmem %s1, 10
      %v1181 = vld [vmem:[%s1180] sm:$0x3]
      %v1183 = vsel %vm332, %v1179, 0
      %v1186 = vand.u32 %v1181, %v366
      %1188 = vmatprep.subr.bf16.mxu0 0
      %1189 = vmatpush1.bf16.msra.mxu0 %v1186
      %1190 = vmatprep.subr.bf16.mxu0 0
      %1191 = vmatpush1.bf16.msra.mxu0 0
      %1192 = vmatprep.subr.bf16.mxu0 0
      %1193 = vmatpush1.bf16.msra.mxu0 0
      %1194 = vmatprep.subr.bf16.mxu0 0
      %1195 = vmatpush1.bf16.msra.mxu0 0
      %1196 = vmatprep.subr.bf16.mxu0 0
      %1197 = vmatpush1.bf16.msra.mxu0 0
      %1198 = vmatprep.subr.bf16.mxu0 0
      %1199 = vmatpush1.bf16.msra.mxu0 0
      %1200 = vmatprep.subr.bf16.mxu0 0
      %1201 = vmatpush1.bf16.msra.mxu0 0
      %1202 = vmatprep.subr.bf16.mxu0 0
      %1203 = vmatpush1.bf16.msra.mxu0 0
      %1204 = vmatprep.subr.bf16.mxu0 0
      %1205 = vmatpush1.bf16.msra.mxu0 0
      %1206 = vmatprep.subr.bf16.mxu0 0
      %1207 = vmatpush1.bf16.msra.mxu0 0
      %1208 = vmatprep.subr.bf16.mxu0 0
      %1209 = vmatpush1.bf16.msra.mxu0 0
      %1210 = vmatprep.subr.bf16.mxu0 0
      %1211 = vmatpush1.bf16.msra.mxu0 0
      %1212 = vmatprep.subr.bf16.mxu0 0
      %1213 = vmatpush1.bf16.msra.mxu0 0
      %1214 = vmatprep.subr.bf16.mxu0 0
      %1215 = vmatpush1.bf16.msra.mxu0 0
      %1216 = vmatprep.subr.bf16.mxu0 0
      %1217 = vmatpush1.bf16.msra.mxu0 0
      %1218 = vmatprep.subr.bf16.mxu0 0
      %1219 = vmatpush1.bf16.msra.mxu0 0
      %1220 = vmatprep.mubr.bf16.mxu0 0
      %1221 = vmatmul.mubr.bf16.gmra.mrb[0].mxu0 %v716
      %v1222 = vpop.f32.mrb[0].mxu0
      %v1223 = vadd.f32 0.0, %v1222
      %v1224 = vpop.f32.mrb[0].mxu0
      %v1225 = vpop.f32.mrb[0].mxu0
      %v1226 = vadd.f32 0.0, %v1225
      %v1227 = vpop.f32.mrb[0].mxu0
      %1228 = vmatprep.mubr.bf16.mxu0 0
      %1229 = vmatmul.mubr.bf16.gmra.mrb[0].mxu0 %v719
      %v1230 = vpop.f32.mrb[0].mxu0
      %v1231 = vadd.f32 0.0, %v1230
      %v1232 = vpop.f32.mrb[0].mxu0
      %v1233 = vpop.f32.mrb[0].mxu0
      %v1234 = vadd.f32 0.0, %v1233
      %v1235 = vpop.f32.mrb[0].mxu0
      %1236 = vmatprep.mubr.bf16.mxu0 0
      %1237 = vmatmul.mubr.bf16.gmra.mrb[0].mxu0 %v722
      %v1238 = vpop.f32.mrb[0].mxu0
      %v1239 = vadd.f32 0.0, %v1238
      %v1240 = vpop.f32.mrb[0].mxu0
      %v1241 = vpop.f32.mrb[0].mxu0
      %v1242 = vadd.f32 0.0, %v1241
      %v1243 = vpop.f32.mrb[0].mxu0
      %1244 = vmatprep.mubr.bf16.mxu0 0
      %1245 = vmatmul.mubr.bf16.gmra.mrb[0].mxu0 %v725
      %v1246 = vpop.f32.mrb[0].mxu0
      %v1247 = vadd.f32 0.0, %v1246
      %v1248 = vpop.f32.mrb[0].mxu0
      %v1249 = vpop.f32.mrb[0].mxu0
      %v1250 = vadd.f32 0.0, %v1249
      %v1251 = vpop.f32.mrb[0].mxu0
      %1252 = vmatprep.mubr.bf16.mxu0 0
      %1253 = vmatmul.mubr.bf16.gmra.mrb[0].mxu0 %v728
      %v1254 = vpop.f32.mrb[0].mxu0
      %v1255 = vadd.f32 0.0, %v1254
      %v1256 = vpop.f32.mrb[0].mxu0
      %v1257 = vpop.f32.mrb[0].mxu0
      %v1258 = vadd.f32 0.0, %v1257
      %v1259 = vpop.f32.mrb[0].mxu0
      %1260 = vmatprep.mubr.bf16.mxu0 0
      %1261 = vmatmul.mubr.bf16.gmra.mrb[0].mxu0 %v731
      %v1262 = vpop.f32.mrb[0].mxu0
      %v1263 = vadd.f32 0.0, %v1262
      %v1264 = vpop.f32.mrb[0].mxu0
      %v1265 = vpop.f32.mrb[0].mxu0
      %v1266 = vadd.f32 0.0, %v1265
      %v1267 = vpop.f32.mrb[0].mxu0
      %1268 = vmatprep.mubr.bf16.mxu0 0
      %1269 = vmatmul.mubr.bf16.gmra.mrb[0].mxu0 %v734
      %v1270 = vpop.f32.mrb[0].mxu0
      %v1271 = vadd.f32 0.0, %v1270
      %v1272 = vpop.f32.mrb[0].mxu0
      %v1273 = vpop.f32.mrb[0].mxu0
      %v1274 = vadd.f32 0.0, %v1273
      %v1275 = vpop.f32.mrb[0].mxu0
      %1276 = vmatprep.mubr.bf16.mxu0 0
      %1277 = vmatmul.mubr.bf16.gmra.mrb[0].mxu0 %v737
      %v1278 = vpop.f32.mrb[0].mxu0
      %v1279 = vadd.f32 0.0, %v1278
      %v1280 = vpop.f32.mrb[0].mxu0
      %v1281 = vpop.f32.mrb[0].mxu0
      %v1282 = vadd.f32 0.0, %v1281
      %v1283 = vpop.f32.mrb[0].mxu0
      %1284 = vmatprep.mubr.bf16.mxu0 0
      %1285 = vmatmul.mubr.bf16.gmra.mrb[0].mxu0 %v740
      %v1286 = vpop.f32.mrb[0].mxu0
      %v1287 = vadd.f32 0.0, %v1286
      %v1288 = vpop.f32.mrb[0].mxu0
      %v1289 = vpop.f32.mrb[0].mxu0
      %v1290 = vadd.f32 0.0, %v1289
      %v1291 = vpop.f32.mrb[0].mxu0
      %1292 = vmatprep.mubr.bf16.mxu0 0
      %1293 = vmatmul.mubr.bf16.gmra.mrb[0].mxu0 %v1183
      %v1294 = vpop.f32.mrb[0].mxu0
      %v1295 = vadd.f32 0.0, %v1294
      %v1296 = vpop.f32.mrb[0].mxu0
      %v1297 = vpop.f32.mrb[0].mxu0
      %v1298 = vadd.f32 0.0, %v1297
      %v1299 = vpop.f32.mrb[0].mxu0
      %1300 = vdwg.mxu0
      %v1301 = vadd.f32 %v1152, %v1223
      %v1302 = vadd.f32 %v1153, %v1226
      %v1303 = vadd.f32 %v1154, %v1231
      %v1304 = vadd.f32 %v1155, %v1234
      %v1305 = vadd.f32 %v1156, %v1239
      %v1306 = vadd.f32 %v1157, %v1242
      %v1307 = vadd.f32 %v1158, %v1247
      %v1308 = vadd.f32 %v1159, %v1250
      %v1309 = vadd.f32 %v1160, %v1255
      %v1310 = vadd.f32 %v1161, %v1258
      %v1311 = vadd.f32 %v1162, %v1263
      %v1312 = vadd.f32 %v1163, %v1266
      %v1313 = vadd.f32 %v1164, %v1271
      %v1314 = vadd.f32 %v1165, %v1274
      %v1315 = vadd.f32 %v1166, %v1279
      %v1316 = vadd.f32 %v1167, %v1282
      %v1317 = vadd.f32 %v1168, %v1287
      %v1318 = vadd.f32 %v1169, %v1290
      %v1319 = vadd.f32 %v1170, %v1295
      %v1320 = vadd.f32 %v1171, %v1298
      %v1321 = vpack.c.bf16 %v206, %v205
      %s1322 = scalar_lea.vmem %s1, 12
      %v1323 = vld [vmem:[%s1322] sm:$0x3]
      %v1325 = vsel %vm332, %v1321, 0
      %v1328 = vand.u32 %v1323, %v366
      %1330 = vmatprep.subr.bf16.mxu0 0
      %1331 = vmatpush1.bf16.msra.mxu0 %v1328
      %1332 = vmatprep.subr.bf16.mxu0 0
      %1333 = vmatpush1.bf16.msra.mxu0 0
      %1334 = vmatprep.subr.bf16.mxu0 0
      %1335 = vmatpush1.bf16.msra.mxu0 0
      %1336 = vmatprep.subr.bf16.mxu0 0
      %1337 = vmatpush1.bf16.msra.mxu0 0
      %1338 = vmatprep.subr.bf16.mxu0 0
      %1339 = vmatpush1.bf16.msra.mxu0 0
      %1340 = vmatprep.subr.bf16.mxu0 0
      %1341 = vmatpush1.bf16.msra.mxu0 0
      %1342 = vmatprep.subr.bf16.mxu0 0
      %1343 = vmatpush1.bf16.msra.mxu0 0
      %1344 = vmatprep.subr.bf16.mxu0 0
      %1345 = vmatpush1.bf16.msra.mxu0 0
      %1346 = vmatprep.subr.bf16.mxu0 0
      %1347 = vmatpush1.bf16.msra.mxu0 0
      %1348 = vmatprep.subr.bf16.mxu0 0
      %1349 = vmatpush1.bf16.msra.mxu0 0
      %1350 = vmatprep.subr.bf16.mxu0 0
      %1351 = vmatpush1.bf16.msra.mxu0 0
      %1352 = vmatprep.subr.bf16.mxu0 0
      %1353 = vmatpush1.bf16.msra.mxu0 0
      %1354 = vmatprep.subr.bf16.mxu0 0
      %1355 = vmatpush1.bf16.msra.mxu0 0
      %1356 = vmatprep.subr.bf16.mxu0 0
      %1357 = vmatpush1.bf16.msra.mxu0 0
      %1358 = vmatprep.subr.bf16.mxu0 0
      %1359 = vmatpush1.bf16.msra.mxu0 0
      %1360 = vmatprep.subr.bf16.mxu0 0
      %1361 = vmatpush1.bf16.msra.mxu0 0
      %1362 = vmatprep.mubr.bf16.mxu0 0
      %1363 = vmatmul.mubr.bf16.gmra.mrb[0].mxu0 %v490
      %v1364 = vpop.f32.mrb[0].mxu0
      %v1365 = vadd.f32 0.0, %v1364
      %v1366 = vpop.f32.mrb[0].mxu0
      %v1367 = vpop.f32.mrb[0].mxu0
      %v1368 = vadd.f32 0.0, %v1367
      %v1369 = vpop.f32.mrb[0].mxu0
      %1370 = vmatprep.mubr.bf16.mxu0 0
      %1371 = vmatmul.mubr.bf16.gmra.mrb[0].mxu0 %v493
      %v1372 = vpop.f32.mrb[0].mxu0
      %v1373 = vadd.f32 0.0, %v1372
      %v1374 = vpop.f32.mrb[0].mxu0
      %v1375 = vpop.f32.mrb[0].mxu0
      %v1376 = vadd.f32 0.0, %v1375
      %v1377 = vpop.f32.mrb[0].mxu0
      %1378 = vmatprep.mubr.bf16.mxu0 0
      %1379 = vmatmul.mubr.bf16.gmra.mrb[0].mxu0 %v496
      %v1380 = vpop.f32.mrb[0].mxu0
      %v1381 = vadd.f32 0.0, %v1380
      %v1382 = vpop.f32.mrb[0].mxu0
      %v1383 = vpop.f32.mrb[0].mxu0
      %v1384 = vadd.f32 0.0, %v1383
      %v1385 = vpop.f32.mrb[0].mxu0
      %1386 = vmatprep.mubr.bf16.mxu0 0
      %1387 = vmatmul.mubr.bf16.gmra.mrb[0].mxu0 %v499
      %v1388 = vpop.f32.mrb[0].mxu0
      %v1389 = vadd.f32 0.0, %v1388
      %v1390 = vpop.f32.mrb[0].mxu0
      %v1391 = vpop.f32.mrb[0].mxu0
      %v1392 = vadd.f32 0.0, %v1391
      %v1393 = vpop.f32.mrb[0].mxu0
      %1394 = vmatprep.mubr.bf16.mxu0 0
      %1395 = vmatmul.mubr.bf16.gmra.mrb[0].mxu0 %v502
      %v1396 = vpop.f32.mrb[0].mxu0
      %v1397 = vadd.f32 0.0, %v1396
      %v1398 = vpop.f32.mrb[0].mxu0
      %v1399 = vpop.f32.mrb[0].mxu0
      %v1400 = vadd.f32 0.0, %v1399
      %v1401 = vpop.f32.mrb[0].mxu0
      %1402 = vmatprep.mubr.bf16.mxu0 0
      %1403 = vmatmul.mubr.bf16.gmra.mrb[0].mxu0 %v505
      %v1404 = vpop.f32.mrb[0].mxu0
      %v1405 = vadd.f32 0.0, %v1404
      %v1406 = vpop.f32.mrb[0].mxu0
      %v1407 = vpop.f32.mrb[0].mxu0
      %v1408 = vadd.f32 0.0, %v1407
      %v1409 = vpop.f32.mrb[0].mxu0
      %1410 = vmatprep.mubr.bf16.mxu0 0
      %1411 = vmatmul.mubr.bf16.gmra.mrb[0].mxu0 %v508
      %v1412 = vpop.f32.mrb[0].mxu0
      %v1413 = vadd.f32 0.0, %v1412
      %v1414 = vpop.f32.mrb[0].mxu0
      %v1415 = vpop.f32.mrb[0].mxu0
      %v1416 = vadd.f32 0.0, %v1415
      %v1417 = vpop.f32.mrb[0].mxu0
      %1418 = vmatprep.mubr.bf16.mxu0 0
      %1419 = vmatmul.mubr.bf16.gmra.mrb[0].mxu0 %v511
      %v1420 = vpop.f32.mrb[0].mxu0
      %v1421 = vadd.f32 0.0, %v1420
      %v1422 = vpop.f32.mrb[0].mxu0
      %v1423 = vpop.f32.mrb[0].mxu0
      %v1424 = vadd.f32 0.0, %v1423
      %v1425 = vpop.f32.mrb[0].mxu0
      %1426 = vmatprep.mubr.bf16.mxu0 0
      %1427 = vmatmul.mubr.bf16.gmra.mrb[0].mxu0 %v882
      %v1428 = vpop.f32.mrb[0].mxu0
      %v1429 = vadd.f32 0.0, %v1428
      %v1430 = vpop.f32.mrb[0].mxu0
      %v1431 = vpop.f32.mrb[0].mxu0
      %v1432 = vadd.f32 0.0, %v1431
      %v1433 = vpop.f32.mrb[0].mxu0
      %1434 = vmatprep.mubr.bf16.mxu0 0
      %1435 = vmatmul.mubr.bf16.gmra.mrb[0].mxu0 %v1325
      %v1436 = vpop.f32.mrb[0].mxu0
      %v1437 = vadd.f32 0.0, %v1436
      %v1438 = vpop.f32.mrb[0].mxu0
      %v1439 = vpop.f32.mrb[0].mxu0
      %v1440 = vadd.f32 0.0, %v1439
      %v1441 = vpop.f32.mrb[0].mxu0
      %1442 = vdwg.mxu0
      %v1443 = vadd.f32 %v1301, %v1365
      %v1444 = vadd.f32 %v1302, %v1368
      %v1445 = vadd.f32 %v1303, %v1373
      %v1446 = vadd.f32 %v1304, %v1376
      %v1447 = vadd.f32 %v1305, %v1381
      %v1448 = vadd.f32 %v1306, %v1384
      %v1449 = vadd.f32 %v1307, %v1389
      %v1450 = vadd.f32 %v1308, %v1392
      %v1451 = vadd.f32 %v1309, %v1397
      %v1452 = vadd.f32 %v1310, %v1400
      %v1453 = vadd.f32 %v1311, %v1405
      %v1454 = vadd.f32 %v1312, %v1408
      %v1455 = vadd.f32 %v1313, %v1413
      %v1456 = vadd.f32 %v1314, %v1416
      %v1457 = vadd.f32 %v1315, %v1421
      %v1458 = vadd.f32 %v1316, %v1424
      %v1459 = vadd.f32 %v1317, %v1429
      %v1460 = vadd.f32 %v1318, %v1432
      %v1461 = vadd.f32 %v1319, %v1437
      %v1462 = vadd.f32 %v1320, %v1440
      %v1466 = vrot.slane %v205, 1
      %v1467 = vrot.slane %v206, 1
      %v1468 = vsel %vm249, %v1466, %v1467
      %v1469 = vrot.slane %v207, 1
      %v1470 = vsel %vm249, %v1467, %v1469
      %v1473 = vpack.c.bf16 %v1470, %v1468
      %s1474 = scalar_lea.vmem %s1, 14
      %v1475 = vld [vmem:[%s1474] sm:$0x3]
      %v1477 = vsel %vm332, %v1473, 0
      %v1480 = vand.u32 %v1475, %v366
      %1482 = vmatprep.subr.bf16.mxu0 0
      %1483 = vmatpush1.bf16.msra.mxu0 %v1480
      %1484 = vmatprep.subr.bf16.mxu0 0
      %1485 = vmatpush1.bf16.msra.mxu0 0
      %1486 = vmatprep.subr.bf16.mxu0 0
      %1487 = vmatpush1.bf16.msra.mxu0 0
      %1488 = vmatprep.subr.bf16.mxu0 0
      %1489 = vmatpush1.bf16.msra.mxu0 0
      %1490 = vmatprep.subr.bf16.mxu0 0
      %1491 = vmatpush1.bf16.msra.mxu0 0
      %1492 = vmatprep.subr.bf16.mxu0 0
      %1493 = vmatpush1.bf16.msra.mxu0 0
      %1494 = vmatprep.subr.bf16.mxu0 0
      %1495 = vmatpush1.bf16.msra.mxu0 0
      %1496 = vmatprep.subr.bf16.mxu0 0
      %1497 = vmatpush1.bf16.msra.mxu0 0
      %1498 = vmatprep.subr.bf16.mxu0 0
      %1499 = vmatpush1.bf16.msra.mxu0 0
      %1500 = vmatprep.subr.bf16.mxu0 0
      %1501 = vmatpush1.bf16.msra.mxu0 0
      %1502 = vmatprep.subr.bf16.mxu0 0
      %1503 = vmatpush1.bf16.msra.mxu0 0
      %1504 = vmatprep.subr.bf16.mxu0 0
      %1505 = vmatpush1.bf16.msra.mxu0 0
      %1506 = vmatprep.subr.bf16.mxu0 0
      %1507 = vmatpush1.bf16.msra.mxu0 0
      %1508 = vmatprep.subr.bf16.mxu0 0
      %1509 = vmatpush1.bf16.msra.mxu0 0
      %1510 = vmatprep.subr.bf16.mxu0 0
      %1511 = vmatpush1.bf16.msra.mxu0 0
      %1512 = vmatprep.subr.bf16.mxu0 0
      %1513 = vmatpush1.bf16.msra.mxu0 0
      %1514 = vmatprep.mubr.bf16.mxu0 0
      %1515 = vmatmul.mubr.bf16.gmra.mrb[0].mxu0 %v340
      %v1516 = vpop.f32.mrb[0].mxu0
      %v1517 = vadd.f32 0.0, %v1516
      %v1518 = vpop.f32.mrb[0].mxu0
      %v1519 = vpop.f32.mrb[0].mxu0
      %v1520 = vadd.f32 0.0, %v1519
      %v1521 = vpop.f32.mrb[0].mxu0
      %1522 = vmatprep.mubr.bf16.mxu0 0
      %1523 = vmatmul.mubr.bf16.gmra.mrb[0].mxu0 %v343
      %v1524 = vpop.f32.mrb[0].mxu0
      %v1525 = vadd.f32 0.0, %v1524
      %v1526 = vpop.f32.mrb[0].mxu0
      %v1527 = vpop.f32.mrb[0].mxu0
      %v1528 = vadd.f32 0.0, %v1527
      %v1529 = vpop.f32.mrb[0].mxu0
      %1530 = vmatprep.mubr.bf16.mxu0 0
      %1531 = vmatmul.mubr.bf16.gmra.mrb[0].mxu0 %v346
      %v1532 = vpop.f32.mrb[0].mxu0
      %v1533 = vadd.f32 0.0, %v1532
      %v1534 = vpop.f32.mrb[0].mxu0
      %v1535 = vpop.f32.mrb[0].mxu0
      %v1536 = vadd.f32 0.0, %v1535
      %v1537 = vpop.f32.mrb[0].mxu0
      %1538 = vmatprep.mubr.bf16.mxu0 0
      %1539 = vmatmul.mubr.bf16.gmra.mrb[0].mxu0 %v349
      %v1540 = vpop.f32.mrb[0].mxu0
      %v1541 = vadd.f32 0.0, %v1540
      %v1542 = vpop.f32.mrb[0].mxu0
      %v1543 = vpop.f32.mrb[0].mxu0
      %v1544 = vadd.f32 0.0, %v1543
      %v1545 = vpop.f32.mrb[0].mxu0
      %1546 = vmatprep.mubr.bf16.mxu0 0
      %1547 = vmatmul.mubr.bf16.gmra.mrb[0].mxu0 %v352
      %v1548 = vpop.f32.mrb[0].mxu0
      %v1549 = vadd.f32 0.0, %v1548
      %v1550 = vpop.f32.mrb[0].mxu0
      %v1551 = vpop.f32.mrb[0].mxu0
      %v1552 = vadd.f32 0.0, %v1551
      %v1553 = vpop.f32.mrb[0].mxu0
      %1554 = vmatprep.mubr.bf16.mxu0 0
      %1555 = vmatmul.mubr.bf16.gmra.mrb[0].mxu0 %v355
      %v1556 = vpop.f32.mrb[0].mxu0
      %v1557 = vadd.f32 0.0, %v1556
      %v1558 = vpop.f32.mrb[0].mxu0
      %v1559 = vpop.f32.mrb[0].mxu0
      %v1560 = vadd.f32 0.0, %v1559
      %v1561 = vpop.f32.mrb[0].mxu0
      %1562 = vmatprep.mubr.bf16.mxu0 0
      %1563 = vmatmul.mubr.bf16.gmra.mrb[0].mxu0 %v358
      %v1564 = vpop.f32.mrb[0].mxu0
      %v1565 = vadd.f32 0.0, %v1564
      %v1566 = vpop.f32.mrb[0].mxu0
      %v1567 = vpop.f32.mrb[0].mxu0
      %v1568 = vadd.f32 0.0, %v1567
      %v1569 = vpop.f32.mrb[0].mxu0
      %1570 = vmatprep.mubr.bf16.mxu0 0
      %1571 = vmatmul.mubr.bf16.gmra.mrb[0].mxu0 %v361
      %v1572 = vpop.f32.mrb[0].mxu0
      %v1573 = vadd.f32 0.0, %v1572
      %v1574 = vpop.f32.mrb[0].mxu0
      %v1575 = vpop.f32.mrb[0].mxu0
      %v1576 = vadd.f32 0.0, %v1575
      %v1577 = vpop.f32.mrb[0].mxu0
      %1578 = vmatprep.mubr.bf16.mxu0 0
      %1579 = vmatmul.mubr.bf16.gmra.mrb[0].mxu0 %v1034
      %v1580 = vpop.f32.mrb[0].mxu0
      %v1581 = vadd.f32 0.0, %v1580
      %v1582 = vpop.f32.mrb[0].mxu0
      %v1583 = vpop.f32.mrb[0].mxu0
      %v1584 = vadd.f32 0.0, %v1583
      %v1585 = vpop.f32.mrb[0].mxu0
      %1586 = vmatprep.mubr.bf16.mxu0 0
      %1587 = vmatmul.mubr.bf16.gmra.mrb[0].mxu0 %v1477
      %v1588 = vpop.f32.mrb[0].mxu0
      %v1589 = vadd.f32 0.0, %v1588
      %v1590 = vpop.f32.mrb[0].mxu0
      %v1591 = vpop.f32.mrb[0].mxu0
      %v1592 = vadd.f32 0.0, %v1591
      %v1593 = vpop.f32.mrb[0].mxu0
      %1594 = vdwg.mxu0
      %v1595 = vadd.f32 %v1443, %v1517
      %v1596 = vadd.f32 %v1444, %v1520
      %v1597 = vadd.f32 %v1445, %v1525
      %v1598 = vadd.f32 %v1446, %v1528
      %v1599 = vadd.f32 %v1447, %v1533
      %v1600 = vadd.f32 %v1448, %v1536
      %v1601 = vadd.f32 %v1449, %v1541
      %v1602 = vadd.f32 %v1450, %v1544
      %v1603 = vadd.f32 %v1451, %v1549
      %v1604 = vadd.f32 %v1452, %v1552
      %v1605 = vadd.f32 %v1453, %v1557
      %v1606 = vadd.f32 %v1454, %v1560
      %v1607 = vadd.f32 %v1455, %v1565
      %v1608 = vadd.f32 %v1456, %v1568
      %v1609 = vadd.f32 %v1457, %v1573
      %v1610 = vadd.f32 %v1458, %v1576
      %v1611 = vadd.f32 %v1459, %v1581
      %v1612 = vadd.f32 %v1460, %v1584
      %v1613 = vadd.f32 %v1461, %v1589
      %v1614 = vadd.f32 %v1462, %v1592
      %v1615 = vrot.slane %v205, 2
      %v1616 = vrot.slane %v206, 2
      %v1617 = vsel %vm629, %v1615, %v1616
      %v1618 = vrot.slane %v207, 2
      %v1619 = vsel %vm629, %v1616, %v1618
      %v1622 = vpack.c.bf16 %v1619, %v1617
      %s1623 = scalar_lea.vmem %s1, 16
      %v1624 = vld [vmem:[%s1623] sm:$0x3]
      %v1626 = vsel %vm332, %v1622, 0
      %v1629 = vand.u32 %v1624, %v366
      %1631 = vmatprep.subr.bf16.mxu0 0
      %1632 = vmatpush1.bf16.msra.mxu0 %v1629
      %1633 = vmatprep.subr.bf16.mxu0 0
      %1634 = vmatpush1.bf16.msra.mxu0 0
      %1635 = vmatprep.subr.bf16.mxu0 0
      %1636 = vmatpush1.bf16.msra.mxu0 0
      %1637 = vmatprep.subr.bf16.mxu0 0
      %1638 = vmatpush1.bf16.msra.mxu0 0
      %1639 = vmatprep.subr.bf16.mxu0 0
      %1640 = vmatpush1.bf16.msra.mxu0 0
      %1641 = vmatprep.subr.bf16.mxu0 0
      %1642 = vmatpush1.bf16.msra.mxu0 0
      %1643 = vmatprep.subr.bf16.mxu0 0
      %1644 = vmatpush1.bf16.msra.mxu0 0
      %1645 = vmatprep.subr.bf16.mxu0 0
      %1646 = vmatpush1.bf16.msra.mxu0 0
      %1647 = vmatprep.subr.bf16.mxu0 0
      %1648 = vmatpush1.bf16.msra.mxu0 0
      %1649 = vmatprep.subr.bf16.mxu0 0
      %1650 = vmatpush1.bf16.msra.mxu0 0
      %1651 = vmatprep.subr.bf16.mxu0 0
      %1652 = vmatpush1.bf16.msra.mxu0 0
      %1653 = vmatprep.subr.bf16.mxu0 0
      %1654 = vmatpush1.bf16.msra.mxu0 0
      %1655 = vmatprep.subr.bf16.mxu0 0
      %1656 = vmatpush1.bf16.msra.mxu0 0
      %1657 = vmatprep.subr.bf16.mxu0 0
      %1658 = vmatpush1.bf16.msra.mxu0 0
      %1659 = vmatprep.subr.bf16.mxu0 0
      %1660 = vmatpush1.bf16.msra.mxu0 0
      %1661 = vmatprep.subr.bf16.mxu0 0
      %1662 = vmatpush1.bf16.msra.mxu0 0
      %1663 = vmatprep.mubr.bf16.mxu0 0
      %1664 = vmatmul.mubr.bf16.gmra.mrb[0].mxu0 %v719
      %v1665 = vpop.f32.mrb[0].mxu0
      %v1666 = vadd.f32 0.0, %v1665
      %v1667 = vpop.f32.mrb[0].mxu0
      %v1668 = vpop.f32.mrb[0].mxu0
      %v1669 = vadd.f32 0.0, %v1668
      %v1670 = vpop.f32.mrb[0].mxu0
      %1671 = vmatprep.mubr.bf16.mxu0 0
      %1672 = vmatmul.mubr.bf16.gmra.mrb[0].mxu0 %v722
      %v1673 = vpop.f32.mrb[0].mxu0
      %v1674 = vadd.f32 0.0, %v1673
      %v1675 = vpop.f32.mrb[0].mxu0
      %v1676 = vpop.f32.mrb[0].mxu0
      %v1677 = vadd.f32 0.0, %v1676
      %v1678 = vpop.f32.mrb[0].mxu0
      %1679 = vmatprep.mubr.bf16.mxu0 0
      %1680 = vmatmul.mubr.bf16.gmra.mrb[0].mxu0 %v725
      %v1681 = vpop.f32.mrb[0].mxu0
      %v1682 = vadd.f32 0.0, %v1681
      %v1683 = vpop.f32.mrb[0].mxu0
      %v1684 = vpop.f32.mrb[0].mxu0
      %v1685 = vadd.f32 0.0, %v1684
      %v1686 = vpop.f32.mrb[0].mxu0
      %1687 = vmatprep.mubr.bf16.mxu0 0
      %1688 = vmatmul.mubr.bf16.gmra.mrb[0].mxu0 %v728
      %v1689 = vpop.f32.mrb[0].mxu0
      %v1690 = vadd.f32 0.0, %v1689
      %v1691 = vpop.f32.mrb[0].mxu0
      %v1692 = vpop.f32.mrb[0].mxu0
      %v1693 = vadd.f32 0.0, %v1692
      %v1694 = vpop.f32.mrb[0].mxu0
      %1695 = vmatprep.mubr.bf16.mxu0 0
      %1696 = vmatmul.mubr.bf16.gmra.mrb[0].mxu0 %v731
      %v1697 = vpop.f32.mrb[0].mxu0
      %v1698 = vadd.f32 0.0, %v1697
      %v1699 = vpop.f32.mrb[0].mxu0
      %v1700 = vpop.f32.mrb[0].mxu0
      %v1701 = vadd.f32 0.0, %v1700
      %v1702 = vpop.f32.mrb[0].mxu0
      %1703 = vmatprep.mubr.bf16.mxu0 0
      %1704 = vmatmul.mubr.bf16.gmra.mrb[0].mxu0 %v734
      %v1705 = vpop.f32.mrb[0].mxu0
      %v1706 = vadd.f32 0.0, %v1705
      %v1707 = vpop.f32.mrb[0].mxu0
      %v1708 = vpop.f32.mrb[0].mxu0
      %v1709 = vadd.f32 0.0, %v1708
      %v1710 = vpop.f32.mrb[0].mxu0
      %1711 = vmatprep.mubr.bf16.mxu0 0
      %1712 = vmatmul.mubr.bf16.gmra.mrb[0].mxu0 %v737
      %v1713 = vpop.f32.mrb[0].mxu0
      %v1714 = vadd.f32 0.0, %v1713
      %v1715 = vpop.f32.mrb[0].mxu0
      %v1716 = vpop.f32.mrb[0].mxu0
      %v1717 = vadd.f32 0.0, %v1716
      %v1718 = vpop.f32.mrb[0].mxu0
      %1719 = vmatprep.mubr.bf16.mxu0 0
      %1720 = vmatmul.mubr.bf16.gmra.mrb[0].mxu0 %v740
      %v1721 = vpop.f32.mrb[0].mxu0
      %v1722 = vadd.f32 0.0, %v1721
      %v1723 = vpop.f32.mrb[0].mxu0
      %v1724 = vpop.f32.mrb[0].mxu0
      %v1725 = vadd.f32 0.0, %v1724
      %v1726 = vpop.f32.mrb[0].mxu0
      %1727 = vmatprep.mubr.bf16.mxu0 0
      %1728 = vmatmul.mubr.bf16.gmra.mrb[0].mxu0 %v1183
      %v1729 = vpop.f32.mrb[0].mxu0
      %v1730 = vadd.f32 0.0, %v1729
      %v1731 = vpop.f32.mrb[0].mxu0
      %v1732 = vpop.f32.mrb[0].mxu0
      %v1733 = vadd.f32 0.0, %v1732
      %v1734 = vpop.f32.mrb[0].mxu0
      %1735 = vmatprep.mubr.bf16.mxu0 0
      %1736 = vmatmul.mubr.bf16.gmra.mrb[0].mxu0 %v1626
      %v1737 = vpop.f32.mrb[0].mxu0
      %v1738 = vadd.f32 0.0, %v1737
      %v1739 = vpop.f32.mrb[0].mxu0
      %v1740 = vpop.f32.mrb[0].mxu0
      %v1741 = vadd.f32 0.0, %v1740
      %v1742 = vpop.f32.mrb[0].mxu0
      %1743 = vdwg.mxu0
      %v1744 = vadd.f32 %v1595, %v1666
      %v1745 = vadd.f32 %v1596, %v1669
      %v1746 = vadd.f32 %v1597, %v1674
      %v1747 = vadd.f32 %v1598, %v1677
      %v1748 = vadd.f32 %v1599, %v1682
      %v1749 = vadd.f32 %v1600, %v1685
      %v1750 = vadd.f32 %v1601, %v1690
      %v1751 = vadd.f32 %v1602, %v1693
      %v1752 = vadd.f32 %v1603, %v1698
      %v1753 = vadd.f32 %v1604, %v1701
      %v1754 = vadd.f32 %v1605, %v1706
      %v1755 = vadd.f32 %v1606, %v1709
      %v1756 = vadd.f32 %v1607, %v1714
      %v1757 = vadd.f32 %v1608, %v1717
      %v1758 = vadd.f32 %v1609, %v1722
      %v1759 = vadd.f32 %v1610, %v1725
      %v1760 = vadd.f32 %v1611, %v1730
      %v1761 = vadd.f32 %v1612, %v1733
      %v1762 = vadd.f32 %v1613, %v1738
      %v1763 = vadd.f32 %v1614, %v1741
      %v1764 = vld [vmem:[%s2] sm:$0x1]
      %v1766 = vlaneseq
      %v1767 = vshrl.u32 %v1766, 7
      %v1768 = vsub.s32 0, %v1767
      %v1769 = vrot.slane %v1764, %v1768
      %v1771 = vadd.f32 %v1744, %v1769
      %v1772 = vadd.f32 %v1745, %v1769
      %v1773 = vadd.f32 %v1746, %v1769
      %v1774 = vadd.f32 %v1747, %v1769
      %v1775 = vadd.f32 %v1748, %v1769
      %v1776 = vadd.f32 %v1749, %v1769
      %v1777 = vadd.f32 %v1750, %v1769
      %v1778 = vadd.f32 %v1751, %v1769
      %v1779 = vadd.f32 %v1752, %v1769
      %v1780 = vadd.f32 %v1753, %v1769
      %v1781 = vadd.f32 %v1754, %v1769
      %v1782 = vadd.f32 %v1755, %v1769
      %v1783 = vadd.f32 %v1756, %v1769
      %v1784 = vadd.f32 %v1757, %v1769
      %v1785 = vadd.f32 %v1758, %v1769
      %v1786 = vadd.f32 %v1759, %v1769
      %v1787 = vadd.f32 %v1760, %v1769
      %v1788 = vadd.f32 %v1761, %v1769
      %v1789 = vadd.f32 %v1762, %v1769
      %v1790 = vadd.f32 %v1763, %v1769
      %v1791 = vmax.f32 %v1771, 0.0
      %v1792 = vmax.f32 %v1772, 0.0
      %v1793 = vmax.f32 %v1773, 0.0
      %v1794 = vmax.f32 %v1774, 0.0
      %v1795 = vmax.f32 %v1775, 0.0
      %v1796 = vmax.f32 %v1776, 0.0
      %v1797 = vmax.f32 %v1777, 0.0
      %v1798 = vmax.f32 %v1778, 0.0
      %v1799 = vmax.f32 %v1779, 0.0
      %v1800 = vmax.f32 %v1780, 0.0
      %v1801 = vmax.f32 %v1781, 0.0
      %v1802 = vmax.f32 %v1782, 0.0
      %v1803 = vmax.f32 %v1783, 0.0
      %v1804 = vmax.f32 %v1784, 0.0
      %v1805 = vmax.f32 %v1785, 0.0
      %v1806 = vmax.f32 %v1786, 0.0
      %v1807 = vmax.f32 %v1787, 0.0
      %v1808 = vmax.f32 %v1788, 0.0
      %v1809 = vmax.f32 %v1789, 0.0
      %v1810 = vmax.f32 %v1790, 0.0
      %v1811 = vlaneseq
      %v1812 = vshrl.u32 %v1811, 7
      %v1813 = vadd.s32 %v1812, 8
      %vm1814 = vcmp.ge.s32.totalorder %v1812, 1
      %vm1815 = vcmp.ge.s32.totalorder %v1813, 1
      %vm1816 = vmand 0, %vm1814
      %vm1817 = vmand 0, %vm1815
      %vm1818 = vmand 1, %vm1814
      %vm1819 = vmand 1, %vm1815
      %vm1820 = vcmp.le.s32.totalorder %v1812, 8
      %vm1821 = vcmp.le.s32.totalorder %v1813, 8
      %vm1822 = vmand %vm1816, %vm1820
      %vm1823 = vmand %vm1817, %vm1821
      %vm1824 = vmand %vm1818, %vm1820
      %vm1825 = vmand %vm1819, %vm1821
      %v1826 = vsel %vm1822, %v1791, 0.0
      %v1827 = vsel %vm1823, %v1792, 0.0
      %v1828 = vsel %vm1824, %v1793, 0.0
      %v1829 = vsel %vm1825, %v1794, 0.0
      %v1830 = vsel %vm1824, %v1795, 0.0
      %v1831 = vsel %vm1825, %v1796, 0.0
      %v1832 = vsel %vm1824, %v1797, 0.0
      %v1833 = vsel %vm1825, %v1798, 0.0
      %v1834 = vsel %vm1824, %v1799, 0.0
      %v1835 = vsel %vm1825, %v1800, 0.0
      %v1836 = vsel %vm1824, %v1801, 0.0
      %v1837 = vsel %vm1825, %v1802, 0.0
      %v1838 = vsel %vm1824, %v1803, 0.0
      %v1839 = vsel %vm1825, %v1804, 0.0
      %v1840 = vsel %vm1824, %v1805, 0.0
      %v1841 = vsel %vm1825, %v1806, 0.0
      %v1842 = vsel %vm1824, %v1807, 0.0
      %v1843 = vsel %vm1825, %v1808, 0.0
      %v1844 = vsel %vm1822, %v1809, 0.0
      %v1845 = vsel %vm1823, %v1810, 0.0
      %v1846 = vadd.f32 %v1826, %v1828
      %v1847 = vadd.f32 %v1827, %v1829
      %v1848 = vadd.f32 %v1828, %v1830
      %v1849 = vadd.f32 %v1829, %v1831
      %v1850 = vadd.f32 %v1830, %v1832
      %v1851 = vadd.f32 %v1831, %v1833
      %v1852 = vadd.f32 %v1832, %v1834
      %v1853 = vadd.f32 %v1833, %v1835
      %v1854 = vadd.f32 %v1834, %v1836
      %v1855 = vadd.f32 %v1835, %v1837
      %v1856 = vadd.f32 %v1836, %v1838
      %v1857 = vadd.f32 %v1837, %v1839
      %v1858 = vadd.f32 %v1838, %v1840
      %v1859 = vadd.f32 %v1839, %v1841
      %v1860 = vadd.f32 %v1840, %v1842
      %v1861 = vadd.f32 %v1841, %v1843
      %v1862 = vadd.f32 %v1842, %v1844
      %v1863 = vadd.f32 %v1843, %v1845
      %v1882 = vrot.slane %v1826, 1
      %v1883 = vrot.slane %v1827, 1
      %v1884 = vsel %vm249, %v1882, %v1883
      %v1885 = vrot.slane %v1828, 1
      %v1886 = vrot.slane %v1829, 1
      %v1887 = vsel %vm249, %v1885, %v1886
      %v1888 = vrot.slane %v1830, 1
      %v1889 = vrot.slane %v1831, 1
      %v1890 = vsel %vm249, %v1888, %v1889
      %v1891 = vrot.slane %v1832, 1
      %v1892 = vrot.slane %v1833, 1
      %v1893 = vsel %vm249, %v1891, %v1892
      %v1894 = vrot.slane %v1834, 1
      %v1895 = vrot.slane %v1835, 1
      %v1896 = vsel %vm249, %v1894, %v1895
      %v1897 = vrot.slane %v1836, 1
      %v1898 = vrot.slane %v1837, 1
      %v1899 = vsel %vm249, %v1897, %v1898
      %v1900 = vrot.slane %v1838, 1
      %v1901 = vrot.slane %v1839, 1
      %v1902 = vsel %vm249, %v1900, %v1901
      %v1903 = vrot.slane %v1840, 1
      %v1904 = vrot.slane %v1841, 1
      %v1905 = vsel %vm249, %v1903, %v1904
      %v1906 = vrot.slane %v1842, 1
      %v1907 = vrot.slane %v1843, 1
      %v1908 = vsel %vm249, %v1906, %v1907
      %v1927 = vadd.f32 %v1846, %v1884
      %v1928 = vadd.f32 %v1847, %v1883
      %v1929 = vadd.f32 %v1848, %v1887
      %v1930 = vadd.f32 %v1849, %v1886
      %v1931 = vadd.f32 %v1850, %v1890
      %v1932 = vadd.f32 %v1851, %v1889
      %v1933 = vadd.f32 %v1852, %v1893
      %v1934 = vadd.f32 %v1853, %v1892
      %v1935 = vadd.f32 %v1854, %v1896
      %v1936 = vadd.f32 %v1855, %v1895
      %v1937 = vadd.f32 %v1856, %v1899
      %v1938 = vadd.f32 %v1857, %v1898
      %v1939 = vadd.f32 %v1858, %v1902
      %v1940 = vadd.f32 %v1859, %v1901
      %v1941 = vadd.f32 %v1860, %v1905
      %v1942 = vadd.f32 %v1861, %v1904
      %v1943 = vadd.f32 %v1862, %v1908
      %v1944 = vadd.f32 %v1863, %v1907
      %v1947 = vrot.slane %v1844, 1
      %v1948 = vrot.slane %v1845, 1
      %v1949 = vsel %vm249, %v1947, %v1948
      %v1952 = vadd.f32 %v1927, %v1887
      %v1953 = vadd.f32 %v1928, %v1886
      %v1954 = vadd.f32 %v1929, %v1890
      %v1955 = vadd.f32 %v1930, %v1889
      %v1956 = vadd.f32 %v1931, %v1893
      %v1957 = vadd.f32 %v1932, %v1892
      %v1958 = vadd.f32 %v1933, %v1896
      %v1959 = vadd.f32 %v1934, %v1895
      %v1960 = vadd.f32 %v1935, %v1899
      %v1961 = vadd.f32 %v1936, %v1898
      %v1962 = vadd.f32 %v1937, %v1902
      %v1963 = vadd.f32 %v1938, %v1901
      %v1964 = vadd.f32 %v1939, %v1905
      %v1965 = vadd.f32 %v1940, %v1904
      %v1966 = vadd.f32 %v1941, %v1908
      %v1967 = vadd.f32 %v1942, %v1907
      %v1968 = vadd.f32 %v1943, %v1949
      %v1969 = vadd.f32 %v1944, %v1948
      %v1970 = vmul.f32 %v1952, 0.25
      %v1971 = vmul.f32 %v1953, 0.25
      %v1972 = vmul.f32 %v1954, 0.25
      %v1973 = vmul.f32 %v1955, 0.25
      %v1974 = vmul.f32 %v1956, 0.25
      %v1975 = vmul.f32 %v1957, 0.25
      %v1976 = vmul.f32 %v1958, 0.25
      %v1977 = vmul.f32 %v1959, 0.25
      %v1978 = vmul.f32 %v1960, 0.25
      %v1979 = vmul.f32 %v1961, 0.25
      %v1980 = vmul.f32 %v1962, 0.25
      %v1981 = vmul.f32 %v1963, 0.25
      %v1982 = vmul.f32 %v1964, 0.25
      %v1983 = vmul.f32 %v1965, 0.25
      %v1984 = vmul.f32 %v1966, 0.25
      %v1985 = vmul.f32 %v1967, 0.25
      %v1986 = vmul.f32 %v1968, 0.25
      %v1987 = vmul.f32 %v1969, 0.25
      %1988 = vst [vmem:[%s170] sm:$0xff] %v1970
      %1989 = vst [vmem:[%s170 + $0x8] sm:$0x1] %v1971
      %1990 = vst [vmem:[%s170 + $0x10] sm:$0xff] %v1972
      %1991 = vst [vmem:[%s170 + $0x18] sm:$0x1] %v1973
      %1992 = vst [vmem:[%s170 + $0x20] sm:$0xff] %v1974
      %1993 = vst [vmem:[%s170 + $0x28] sm:$0x1] %v1975
      %1994 = vst [vmem:[%s170 + $0x30] sm:$0xff] %v1976
      %1995 = vst [vmem:[%s170 + $0x38] sm:$0x1] %v1977
      %1996 = vst [vmem:[%s170 + $0x40] sm:$0xff] %v1978
      %1997 = vst [vmem:[%s170 + $0x48] sm:$0x1] %v1979
      %1998 = vst [vmem:[%s170 + $0x50] sm:$0xff] %v1980
      %1999 = vst [vmem:[%s170 + $0x58] sm:$0x1] %v1981
      %2000 = vst [vmem:[%s170 + $0x60] sm:$0xff] %v1982
      %2001 = vst [vmem:[%s170 + $0x68] sm:$0x1] %v1983
      %2002 = vst [vmem:[%s170 + $0x70] sm:$0xff] %v1984
      %2003 = vst [vmem:[%s170 + $0x78] sm:$0x1] %v1985
      %2004 = vst [vmem:[%s170 + $0x80] sm:$0xff] %v1986
      %2005 = vst [vmem:[%s170 + $0x88] sm:$0x1] %v1987
      %p2006 = scmp.lt.s32.totalorder %s14, 1
      %s2007 = scalar_select %p2006, %s14, 1
      %s2008 = smul.addr %s2007, 18
      %s2009 = smul.addr %s2008, 8
      %s2010 = scalar_lea.vmem %s3, %s2009
      // Predicated region
      $region33: #{cnn_2layer_fc_forward.3} parent=31 // pred_check
        %p2011 = pneg %p100
      $region34: #{cnn_2layer_fc_forward.3} parent=31 // pred_check_branch
        %2013 = sbr.rel (%p2011) target = $region36
      $region35: #{cnn_2layer_fc_forward.3} parent=31 // pred_region
        _
      $region36: #{cnn_2layer_fc_forward.3} parent=31 // pred_fallthru
        _
    $region32: #{cnn_2layer_fc_forward.3} parent=5 // pred_fallthru
      _
    %p2014 = scmp.le.s32.totalorder 2, %s9
    // Predicated region
    $region37: #{cnn_2layer_fc_forward.3} parent=5 // pred_check
      %p2015 = pneg %p2014
    $region38: #{cnn_2layer_fc_forward.3} parent=5 // pred_check_branch
      %2017 = sbr.rel (%p2015) target = $region40
    $region39: #{cnn_2layer_fc_forward.3} parent=5 // pred_region
      %s2018 = ssub.s32 %s9, 2
      // Predicated region
      $region41: #{cnn_2layer_fc_forward.3} parent=39 // pred_check
        %p2019 = pneg %p106
      $region42: #{cnn_2layer_fc_forward.3} parent=39 // pred_check_branch
        %2021 = sbr.rel (%p2019) target = $region44
      $region43: #{cnn_2layer_fc_forward.3} parent=39 // pred_region
        %p2022 = scmp.lt.s32.totalorder %s15, 1
        %s2023 = scalar_select %p2022, %s15, 1
        %s2024 = smul.addr %s2023, 18
        %s2025 = smul.addr %s2024, 8
        %s2026 = scalar_lea.vmem %s3, %s2025
      $region44: #{cnn_2layer_fc_forward.3} parent=39 // pred_fallthru
        _
    $region40: #{cnn_2layer_fc_forward.3} parent=5 // pred_fallthru
      _
  $region6: #{cnn_2layer_fc_forward.3} parent=0 // loop_footer
    %s13 = sadd.s32 1, %s9
  $region7: #{cnn_2layer_fc_forward.3} parent=0 // loop_footer_branch
    %8 = sbr.rel target = $region3
  $region8: #{cnn_2layer_fc_forward.3} parent=0 // loop_exit
    _

// kernel: cnn_2layer_fc_forward.5
$region0: #{cnn_2layer_fc_forward.5}
  #allocation0 [shape = 'u32[]', space=smem, size = 0x4, offset = 0x4, fixed_abs, tag = 'smem constant byte address 0x4 - core index']
  #allocation1 [shape = 'u32[144,128]{1,0:T(1,128)}', space=vmem, size = 0x12000, scoped, tag = 'internal scratch']
  %s0 = inlined_call_operand.vmem [shape: f32[2,3200], index: 0, kind: input, shape index: {}]
  %s1 = inlined_call_operand.vmem [shape: bf16[3200,128], index: 1, kind: input, shape index: {}]
  %s2 = inlined_call_operand.hbm [shape: f32[2,128], index: 2, kind: output, shape index: {}]
  %s3 = sld [smem:[#allocation0]]
  $region18: #{cnn_2layer_fc_forward.5} parent=0
    _
  %s5 = ssub.s32 1, %s3
  %s6 = scalar_select 0, %s5, %s3
  $region1: #{cnn_2layer_fc_forward.5} parent=0
    #allocation2 [shape = 'u8[1024]{0}', space=vmem, size = 0x400, scoped, tag = 'output window, operand 0, single buffered']
    #allocation3 [shape = 's32[1]{0}', space=sflag, size = 0x4, scoped, tag = 'scoped memory for cnn_2layer_fc_forward.5']
    %7 = vsyncpa [#allocation3], 0
    // Predicated region
    $region2: #{cnn_2layer_fc_forward.5} parent=1 // pred_check
      _
    $region3: #{cnn_2layer_fc_forward.5} parent=1 // pred_check_branch
      %9 = sbr.rel (0) target = $region5
    $region4: #{cnn_2layer_fc_forward.5} parent=1 // pred_region
      _
    $region5: #{cnn_2layer_fc_forward.5} parent=1 // pred_fallthru
      _
    // Predicated region
    $region6: #{cnn_2layer_fc_forward.5} parent=1 // pred_check
      _
    $region7: #{cnn_2layer_fc_forward.5} parent=1 // pred_check_branch
      %11 = sbr.rel (0) target = $region9
    $region8: #{cnn_2layer_fc_forward.5} parent=1 // pred_region
      _
    $region9: #{cnn_2layer_fc_forward.5} parent=1 // pred_fallthru
      _
    %v13 = vld [vmem:[%s0] sm:$0xff]
    %v14 = vld [vmem:[%s0 + $0x8] sm:$0xff]
    %v15 = vld [vmem:[%s0 + $0x10] sm:$0xff]
    %v16 = vld [vmem:[%s0 + $0x18] sm:$0xff]
    %v17 = vld [vmem:[%s0 + $0x20] sm:$0xff]
    %v18 = vld [vmem:[%s0 + $0x28] sm:$0xff]
    %v19 = vld [vmem:[%s0 + $0x30] sm:$0x3]
    %v27 = vcombine.high %v13, %v13
    %v29 = vunpack.c.l.s4 1983009808
    %v30 = vunpack.c.0.s8 %v29
    %v31 = vlaneseq
    %v32 = vshrl.u32 %v31, 7
    %v33 = vsub.s32 %v30, %v32
    %v34 = vrot.slane %v13, %v33
    %v36 = vunpack.c.l.s4 1983009808
    %v37 = vunpack.c.0.s8 %v36
    %v38 = vlaneseq
    %v39 = vshrl.u32 %v38, 7
    %v40 = vsub.s32 %v37, %v39
    %v41 = vrot.slane %v27, %v40
    %v42 = vcombine.high %v34, %v34
    %v43 = vcombine.high %v41, %v41
    %v44 = vcombine.high %v14, %v14
    %v46 = vunpack.c.l.s4 1983009808
    %v47 = vunpack.c.0.s8 %v46
    %v48 = vlaneseq
    %v49 = vshrl.u32 %v48, 7
    %v50 = vsub.s32 %v47, %v49
    %v51 = vrot.slane %v14, %v50
    %v53 = vunpack.c.l.s4 1983009808
    %v54 = vunpack.c.0.s8 %v53
    %v55 = vlaneseq
    %v56 = vshrl.u32 %v55, 7
    %v57 = vsub.s32 %v54, %v56
    %v58 = vrot.slane %v44, %v57
    %v59 = vcombine.high %v51, %v51
    %v60 = vcombine.high %v58, %v58
    %v61 = vcombine.high %v15, %v15
    %v63 = vunpack.c.l.s4 1983009808
    %v64 = vunpack.c.0.s8 %v63
    %v65 = vlaneseq
    %v66 = vshrl.u32 %v65, 7
    %v67 = vsub.s32 %v64, %v66
    %v68 = vrot.slane %v15, %v67
    %v70 = vunpack.c.l.s4 1983009808
    %v71 = vunpack.c.0.s8 %v70
    %v72 = vlaneseq
    %v73 = vshrl.u32 %v72, 7
    %v74 = vsub.s32 %v71, %v73
    %v75 = vrot.slane %v61, %v74
    %v76 = vcombine.high %v68, %v68
    %v77 = vcombine.high %v75, %v75
    %v78 = vcombine.high %v16, %v16
    %v80 = vunpack.c.l.s4 1983009808
    %v81 = vunpack.c.0.s8 %v80
    %v82 = vlaneseq
    %v83 = vshrl.u32 %v82, 7
    %v84 = vsub.s32 %v81, %v83
    %v85 = vrot.slane %v16, %v84
    %v87 = vunpack.c.l.s4 1983009808
    %v88 = vunpack.c.0.s8 %v87
    %v89 = vlaneseq
    %v90 = vshrl.u32 %v89, 7
    %v91 = vsub.s32 %v88, %v90
    %v92 = vrot.slane %v78, %v91
    %v93 = vcombine.high %v85, %v85
    %v94 = vcombine.high %v92, %v92
    %v95 = vcombine.high %v17, %v17
    %v97 = vunpack.c.l.s4 1983009808
    %v98 = vunpack.c.0.s8 %v97
    %v99 = vlaneseq
    %v100 = vshrl.u32 %v99, 7
    %v101 = vsub.s32 %v98, %v100
    %v102 = vrot.slane %v17, %v101
    %v104 = vunpack.c.l.s4 1983009808
    %v105 = vunpack.c.0.s8 %v104
    %v106 = vlaneseq
    %v107 = vshrl.u32 %v106, 7
    %v108 = vsub.s32 %v105, %v107
    %v109 = vrot.slane %v95, %v108
    %v110 = vcombine.high %v102, %v102
    %v111 = vcombine.high %v109, %v109
    %v112 = vcombine.high %v18, %v18
    %v114 = vunpack.c.l.s4 1983009808
    %v115 = vunpack.c.0.s8 %v114
    %v116 = vlaneseq
    %v117 = vshrl.u32 %v116, 7
    %v118 = vsub.s32 %v115, %v117
    %v119 = vrot.slane %v18, %v118
    %v121 = vunpack.c.l.s4 1983009808
    %v122 = vunpack.c.0.s8 %v121
    %v123 = vlaneseq
    %v124 = vshrl.u32 %v123, 7
    %v125 = vsub.s32 %v122, %v124
    %v126 = vrot.slane %v112, %v125
    %v127 = vcombine.high %v119, %v119
    %v128 = vcombine.high %v126, %v126
    %v130 = vunpack.c.l.s4 1983009808
    %v131 = vunpack.c.0.s8 %v130
    %v132 = vlaneseq
    %v133 = vshrl.u32 %v132, 7
    %v134 = vsub.s32 %v131, %v133
    %v135 = vrot.slane %v19, %v134
    %v161 = vpack.c.bf16 %v34, %v34
    %v162 = vpack.c.bf16 %v42, %v42
    %v163 = vpack.c.bf16 %v41, %v41
    %v164 = vpack.c.bf16 %v43, %v43
    %v165 = vpack.c.bf16 %v51, %v51
    %v166 = vpack.c.bf16 %v59, %v59
    %v167 = vpack.c.bf16 %v58, %v58
    %v168 = vpack.c.bf16 %v60, %v60
    %v169 = vpack.c.bf16 %v68, %v68
    %v170 = vpack.c.bf16 %v76, %v76
    %v171 = vpack.c.bf16 %v75, %v75
    %v172 = vpack.c.bf16 %v77, %v77
    %v173 = vpack.c.bf16 %v85, %v85
    %v174 = vpack.c.bf16 %v93, %v93
    %v175 = vpack.c.bf16 %v92, %v92
    %v176 = vpack.c.bf16 %v94, %v94
    %v177 = vpack.c.bf16 %v102, %v102
    %v178 = vpack.c.bf16 %v110, %v110
    %v179 = vpack.c.bf16 %v109, %v109
    %v180 = vpack.c.bf16 %v111, %v111
    %v181 = vpack.c.bf16 %v119, %v119
    %v182 = vpack.c.bf16 %v127, %v127
    %v183 = vpack.c.bf16 %v126, %v126
    %v184 = vpack.c.bf16 %v128, %v128
    %v185 = vpack.c.bf16 %v135, %v135
    %v186 = vld [vmem:[%s1] sm:$0xf]
    %v187 = vld [vmem:[%s1 + $0x4] sm:$0xf]
    %v188 = vld [vmem:[%s1 + $0x8] sm:$0xf]
    %v189 = vld [vmem:[%s1 + $0xc] sm:$0xf]
    %v190 = vld [vmem:[%s1 + $0x10] sm:$0xf]
    %v191 = vld [vmem:[%s1 + $0x14] sm:$0xf]
    %v192 = vld [vmem:[%s1 + $0x18] sm:$0xf]
    %v193 = vld [vmem:[%s1 + $0x1c] sm:$0xf]
    %v194 = vld [vmem:[%s1 + $0x20] sm:$0xf]
    %v195 = vld [vmem:[%s1 + $0x24] sm:$0xf]
    %v196 = vld [vmem:[%s1 + $0x28] sm:$0xf]
    %v197 = vld [vmem:[%s1 + $0x2c] sm:$0xf]
    %v198 = vld [vmem:[%s1 + $0x30] sm:$0xf]
    %v199 = vld [vmem:[%s1 + $0x34] sm:$0xf]
    %v200 = vld [vmem:[%s1 + $0x38] sm:$0xf]
    %v201 = vld [vmem:[%s1 + $0x3c] sm:$0xf]
    %v202 = vld [vmem:[%s1 + $0x40] sm:$0xf]
    %v203 = vld [vmem:[%s1 + $0x44] sm:$0xf]
    %v204 = vld [vmem:[%s1 + $0x48] sm:$0xf]
    %v205 = vld [vmem:[%s1 + $0x4c] sm:$0xf]
    %v206 = vld [vmem:[%s1 + $0x50] sm:$0xf]
    %v207 = vld [vmem:[%s1 + $0x54] sm:$0xf]
    %v208 = vld [vmem:[%s1 + $0x58] sm:$0xf]
    %v209 = vld [vmem:[%s1 + $0x5c] sm:$0xf]
    %v210 = vld [vmem:[%s1 + $0x60] sm:$0xf]
    %v211 = vld [vmem:[%s1 + $0x64] sm:$0xf]
    %v212 = vld [vmem:[%s1 + $0x68] sm:$0xf]
    %v213 = vld [vmem:[%s1 + $0x6c] sm:$0xf]
    %v214 = vld [vmem:[%s1 + $0x70] sm:$0xf]
    %v215 = vld [vmem:[%s1 + $0x74] sm:$0xf]
    %v216 = vld [vmem:[%s1 + $0x78] sm:$0xf]
    %v217 = vld [vmem:[%s1 + $0x7c] sm:$0xf]
    %v218 = vld [vmem:[%s1 + $0x80] sm:$0xf]
    %v219 = vld [vmem:[%s1 + $0x84] sm:$0xf]
    %v220 = vld [vmem:[%s1 + $0x88] sm:$0xf]
    %v221 = vld [vmem:[%s1 + $0x8c] sm:$0xf]
    %v222 = vld [vmem:[%s1 + $0x90] sm:$0xf]
    %v223 = vld [vmem:[%s1 + $0x94] sm:$0xf]
    %v224 = vld [vmem:[%s1 + $0x98] sm:$0xf]
    %v225 = vld [vmem:[%s1 + $0x9c] sm:$0xf]
    %v226 = vld [vmem:[%s1 + $0xa0] sm:$0xf]
    %v227 = vld [vmem:[%s1 + $0xa4] sm:$0xf]
    %v228 = vld [vmem:[%s1 + $0xa8] sm:$0xf]
    %v229 = vld [vmem:[%s1 + $0xac] sm:$0xf]
    %v230 = vld [vmem:[%s1 + $0xb0] sm:$0xf]
    %v231 = vld [vmem:[%s1 + $0xb4] sm:$0xf]
    %v232 = vld [vmem:[%s1 + $0xb8] sm:$0xf]
    %v233 = vld [vmem:[%s1 + $0xbc] sm:$0xf]
    %v234 = vld [vmem:[%s1 + $0xc0] sm:$0xf]
    %v235 = vld [vmem:[%s1 + $0xc4] sm:$0xf]
    %v236 = vld [vmem:[%s1 + $0xc8] sm:$0xf]
    %v237 = vld [vmem:[%s1 + $0xcc] sm:$0xf]
    %v238 = vld [vmem:[%s1 + $0xd0] sm:$0xf]
    %v239 = vld [vmem:[%s1 + $0xd4] sm:$0xf]
    %v240 = vld [vmem:[%s1 + $0xd8] sm:$0xf]
    %v241 = vld [vmem:[%s1 + $0xdc] sm:$0xf]
    %v242 = vld [vmem:[%s1 + $0xe0] sm:$0xf]
    %v243 = vld [vmem:[%s1 + $0xe4] sm:$0xf]
    %v244 = vld [vmem:[%s1 + $0xe8] sm:$0xf]
    %v245 = vld [vmem:[%s1 + $0xec] sm:$0xf]
    %v246 = vld [vmem:[%s1 + $0xf0] sm:$0xf]
    %v247 = vld [vmem:[%s1 + $0xf4] sm:$0xf]
    %v248 = vld [vmem:[%s1 + $0xf8] sm:$0xf]
    %v249 = vld [vmem:[%s1 + $0xfc] sm:$0xf]
    %v250 = vld [vmem:[%s1 + $0x100] sm:$0xf]
    %v251 = vld [vmem:[%s1 + $0x104] sm:$0xf]
    %v252 = vld [vmem:[%s1 + $0x108] sm:$0xf]
    %v253 = vld [vmem:[%s1 + $0x10c] sm:$0xf]
    %v254 = vld [vmem:[%s1 + $0x110] sm:$0xf]
    %v255 = vld [vmem:[%s1 + $0x114] sm:$0xf]
    %v256 = vld [vmem:[%s1 + $0x118] sm:$0xf]
    %v257 = vld [vmem:[%s1 + $0x11c] sm:$0xf]
    %v258 = vld [vmem:[%s1 + $0x120] sm:$0xf]
    %v259 = vld [vmem:[%s1 + $0x124] sm:$0xf]
    %v260 = vld [vmem:[%s1 + $0x128] sm:$0xf]
    %v261 = vld [vmem:[%s1 + $0x12c] sm:$0xf]
    %v262 = vld [vmem:[%s1 + $0x130] sm:$0xf]
    %v263 = vld [vmem:[%s1 + $0x134] sm:$0xf]
    %v264 = vld [vmem:[%s1 + $0x138] sm:$0xf]
    %v265 = vld [vmem:[%s1 + $0x13c] sm:$0xf]
    %v266 = vld [vmem:[%s1 + $0x140] sm:$0xf]
    %v267 = vld [vmem:[%s1 + $0x144] sm:$0xf]
    %v268 = vld [vmem:[%s1 + $0x148] sm:$0xf]
    %v269 = vld [vmem:[%s1 + $0x14c] sm:$0xf]
    %v270 = vld [vmem:[%s1 + $0x150] sm:$0xf]
    %v271 = vld [vmem:[%s1 + $0x154] sm:$0xf]
    %v272 = vld [vmem:[%s1 + $0x158] sm:$0xf]
    %v273 = vld [vmem:[%s1 + $0x15c] sm:$0xf]
    %v274 = vld [vmem:[%s1 + $0x160] sm:$0xf]
    %v275 = vld [vmem:[%s1 + $0x164] sm:$0xf]
    %v276 = vld [vmem:[%s1 + $0x168] sm:$0xf]
    %v277 = vld [vmem:[%s1 + $0x16c] sm:$0xf]
    %v278 = vld [vmem:[%s1 + $0x170] sm:$0xf]
    %v279 = vld [vmem:[%s1 + $0x174] sm:$0xf]
    %v280 = vld [vmem:[%s1 + $0x178] sm:$0xf]
    %v281 = vld [vmem:[%s1 + $0x17c] sm:$0xf]
    %v282 = vld [vmem:[%s1 + $0x180] sm:$0xf]
    %v283 = vld [vmem:[%s1 + $0x184] sm:$0xf]
    %v284 = vld [vmem:[%s1 + $0x188] sm:$0xf]
    %v285 = vld [vmem:[%s1 + $0x18c] sm:$0xf]
    %v286 = vld [vmem:[%s1 + $0x190] sm:$0xf]
    %v287 = vld [vmem:[%s1 + $0x194] sm:$0xf]
    %v288 = vld [vmem:[%s1 + $0x198] sm:$0xf]
    %v289 = vld [vmem:[%s1 + $0x19c] sm:$0xf]
    %v290 = vld [vmem:[%s1 + $0x1a0] sm:$0xf]
    %v291 = vld [vmem:[%s1 + $0x1a4] sm:$0xf]
    %v292 = vld [vmem:[%s1 + $0x1a8] sm:$0xf]
    %v293 = vld [vmem:[%s1 + $0x1ac] sm:$0xf]
    %v294 = vld [vmem:[%s1 + $0x1b0] sm:$0xf]
    %v295 = vld [vmem:[%s1 + $0x1b4] sm:$0xf]
    %v296 = vld [vmem:[%s1 + $0x1b8] sm:$0xf]
    %v297 = vld [vmem:[%s1 + $0x1bc] sm:$0xf]
    %v298 = vld [vmem:[%s1 + $0x1c0] sm:$0xf]
    %v299 = vld [vmem:[%s1 + $0x1c4] sm:$0xf]
    %v300 = vld [vmem:[%s1 + $0x1c8] sm:$0xf]
    %v301 = vld [vmem:[%s1 + $0x1cc] sm:$0xf]
    %v302 = vld [vmem:[%s1 + $0x1d0] sm:$0xf]
    %v303 = vld [vmem:[%s1 + $0x1d4] sm:$0xf]
    %v304 = vld [vmem:[%s1 + $0x1d8] sm:$0xf]
    %v305 = vld [vmem:[%s1 + $0x1dc] sm:$0xf]
    %v306 = vld [vmem:[%s1 + $0x1e0] sm:$0xf]
    %v307 = vld [vmem:[%s1 + $0x1e4] sm:$0xf]
    %v308 = vld [vmem:[%s1 + $0x1e8] sm:$0xf]
    %v309 = vld [vmem:[%s1 + $0x1ec] sm:$0xf]
    %v310 = vld [vmem:[%s1 + $0x1f0] sm:$0xf]
    %v311 = vld [vmem:[%s1 + $0x1f4] sm:$0xf]
    %v312 = vld [vmem:[%s1 + $0x1f8] sm:$0xf]
    %v313 = vld [vmem:[%s1 + $0x1fc] sm:$0xf]
    %v314 = vld [vmem:[%s1 + $0x200] sm:$0xf]
    %v315 = vld [vmem:[%s1 + $0x204] sm:$0xf]
    %v316 = vld [vmem:[%s1 + $0x208] sm:$0xf]
    %v317 = vld [vmem:[%s1 + $0x20c] sm:$0xf]
    %v318 = vld [vmem:[%s1 + $0x210] sm:$0xf]
    %v319 = vld [vmem:[%s1 + $0x214] sm:$0xf]
    %v320 = vld [vmem:[%s1 + $0x218] sm:$0xf]
    %v321 = vld [vmem:[%s1 + $0x21c] sm:$0xf]
    %v322 = vld [vmem:[%s1 + $0x220] sm:$0xf]
    %v323 = vld [vmem:[%s1 + $0x224] sm:$0xf]
    %v324 = vld [vmem:[%s1 + $0x228] sm:$0xf]
    %v325 = vld [vmem:[%s1 + $0x22c] sm:$0xf]
    %v326 = vld [vmem:[%s1 + $0x230] sm:$0xf]
    %v327 = vld [vmem:[%s1 + $0x234] sm:$0xf]
    %v328 = vld [vmem:[%s1 + $0x238] sm:$0xf]
    %v329 = vld [vmem:[%s1 + $0x23c] sm:$0xf]
    %v330 = vld [vmem:[%s1 + $0x240] sm:$0xf]
    %v331 = vld [vmem:[%s1 + $0x244] sm:$0xf]
    %v332 = vld [vmem:[%s1 + $0x248] sm:$0xf]
    %v333 = vld [vmem:[%s1 + $0x24c] sm:$0xf]
    %v334 = vld [vmem:[%s1 + $0x250] sm:$0xf]
    %v335 = vld [vmem:[%s1 + $0x254] sm:$0xf]
    %v336 = vld [vmem:[%s1 + $0x258] sm:$0xf]
    %v337 = vld [vmem:[%s1 + $0x25c] sm:$0xf]
    %v338 = vld [vmem:[%s1 + $0x260] sm:$0xf]
    %v339 = vld [vmem:[%s1 + $0x264] sm:$0xf]
    %v340 = vld [vmem:[%s1 + $0x268] sm:$0xf]
    %v341 = vld [vmem:[%s1 + $0x26c] sm:$0xf]
    %v342 = vld [vmem:[%s1 + $0x270] sm:$0xf]
    %v343 = vld [vmem:[%s1 + $0x274] sm:$0xf]
    %v344 = vld [vmem:[%s1 + $0x278] sm:$0xf]
    %v345 = vld [vmem:[%s1 + $0x27c] sm:$0xf]
    %v346 = vld [vmem:[%s1 + $0x280] sm:$0xf]
    %v347 = vld [vmem:[%s1 + $0x284] sm:$0xf]
    %v348 = vld [vmem:[%s1 + $0x288] sm:$0xf]
    %v349 = vld [vmem:[%s1 + $0x28c] sm:$0xf]
    %v350 = vld [vmem:[%s1 + $0x290] sm:$0xf]
    %v351 = vld [vmem:[%s1 + $0x294] sm:$0xf]
    %v352 = vld [vmem:[%s1 + $0x298] sm:$0xf]
    %v353 = vld [vmem:[%s1 + $0x29c] sm:$0xf]
    %v354 = vld [vmem:[%s1 + $0x2a0] sm:$0xf]
    %v355 = vld [vmem:[%s1 + $0x2a4] sm:$0xf]
    %v356 = vld [vmem:[%s1 + $0x2a8] sm:$0xf]
    %v357 = vld [vmem:[%s1 + $0x2ac] sm:$0xf]
    %v358 = vld [vmem:[%s1 + $0x2b0] sm:$0xf]
    %v359 = vld [vmem:[%s1 + $0x2b4] sm:$0xf]
    %v360 = vld [vmem:[%s1 + $0x2b8] sm:$0xf]
    %v361 = vld [vmem:[%s1 + $0x2bc] sm:$0xf]
    %v362 = vld [vmem:[%s1 + $0x2c0] sm:$0xf]
    %v363 = vld [vmem:[%s1 + $0x2c4] sm:$0xf]
    %v364 = vld [vmem:[%s1 + $0x2c8] sm:$0xf]
    %v365 = vld [vmem:[%s1 + $0x2cc] sm:$0xf]
    %v366 = vld [vmem:[%s1 + $0x2d0] sm:$0xf]
    %v367 = vld [vmem:[%s1 + $0x2d4] sm:$0xf]
    %v368 = vld [vmem:[%s1 + $0x2d8] sm:$0xf]
    %v369 = vld [vmem:[%s1 + $0x2dc] sm:$0xf]
    %v370 = vld [vmem:[%s1 + $0x2e0] sm:$0xf]
    %v371 = vld [vmem:[%s1 + $0x2e4] sm:$0xf]
    %v372 = vld [vmem:[%s1 + $0x2e8] sm:$0xf]
    %v373 = vld [vmem:[%s1 + $0x2ec] sm:$0xf]
    %v374 = vld [vmem:[%s1 + $0x2f0] sm:$0xf]
    %v375 = vld [vmem:[%s1 + $0x2f4] sm:$0xf]
    %v376 = vld [vmem:[%s1 + $0x2f8] sm:$0xf]
    %v377 = vld [vmem:[%s1 + $0x2fc] sm:$0xf]
    %v378 = vld [vmem:[%s1 + $0x300] sm:$0xf]
    %v379 = vld [vmem:[%s1 + $0x304] sm:$0xf]
    %v380 = vld [vmem:[%s1 + $0x308] sm:$0xf]
    %v381 = vld [vmem:[%s1 + $0x30c] sm:$0xf]
    %v382 = vld [vmem:[%s1 + $0x310] sm:$0xf]
    %v383 = vld [vmem:[%s1 + $0x314] sm:$0xf]
    %v384 = vld [vmem:[%s1 + $0x318] sm:$0xf]
    %v385 = vld [vmem:[%s1 + $0x31c] sm:$0xf]
    %v386 = vld [vmem:[%s1 + $0x320] sm:$0xf]
    %v387 = vld [vmem:[%s1 + $0x324] sm:$0xf]
    %v388 = vld [vmem:[%s1 + $0x328] sm:$0xf]
    %v389 = vld [vmem:[%s1 + $0x32c] sm:$0xf]
    %v390 = vld [vmem:[%s1 + $0x330] sm:$0xf]
    %v391 = vld [vmem:[%s1 + $0x334] sm:$0xf]
    %v392 = vld [vmem:[%s1 + $0x338] sm:$0xf]
    %v393 = vld [vmem:[%s1 + $0x33c] sm:$0xf]
    %v394 = vld [vmem:[%s1 + $0x340] sm:$0xf]
    %v395 = vld [vmem:[%s1 + $0x344] sm:$0xf]
    %v396 = vld [vmem:[%s1 + $0x348] sm:$0xf]
    %v397 = vld [vmem:[%s1 + $0x34c] sm:$0xf]
    %v398 = vld [vmem:[%s1 + $0x350] sm:$0xf]
    %v399 = vld [vmem:[%s1 + $0x354] sm:$0xf]
    %v400 = vld [vmem:[%s1 + $0x358] sm:$0xf]
    %v401 = vld [vmem:[%s1 + $0x35c] sm:$0xf]
    %v402 = vld [vmem:[%s1 + $0x360] sm:$0xf]
    %v403 = vld [vmem:[%s1 + $0x364] sm:$0xf]
    %v404 = vld [vmem:[%s1 + $0x368] sm:$0xf]
    %v405 = vld [vmem:[%s1 + $0x36c] sm:$0xf]
    %v406 = vld [vmem:[%s1 + $0x370] sm:$0xf]
    %v407 = vld [vmem:[%s1 + $0x374] sm:$0xf]
    %v408 = vld [vmem:[%s1 + $0x378] sm:$0xf]
    %v409 = vld [vmem:[%s1 + $0x37c] sm:$0xf]
    %v410 = vld [vmem:[%s1 + $0x380] sm:$0xf]
    %v411 = vld [vmem:[%s1 + $0x384] sm:$0xf]
    %v412 = vld [vmem:[%s1 + $0x388] sm:$0xf]
    %v413 = vld [vmem:[%s1 + $0x38c] sm:$0xf]
    %v414 = vld [vmem:[%s1 + $0x390] sm:$0xf]
    %v415 = vld [vmem:[%s1 + $0x394] sm:$0xf]
    %v416 = vld [vmem:[%s1 + $0x398] sm:$0xf]
    %v417 = vld [vmem:[%s1 + $0x39c] sm:$0xf]
    %v418 = vld [vmem:[%s1 + $0x3a0] sm:$0xf]
    %v419 = vld [vmem:[%s1 + $0x3a4] sm:$0xf]
    %v420 = vld [vmem:[%s1 + $0x3a8] sm:$0xf]
    %v421 = vld [vmem:[%s1 + $0x3ac] sm:$0xf]
    %v422 = vld [vmem:[%s1 + $0x3b0] sm:$0xf]
    %v423 = vld [vmem:[%s1 + $0x3b4] sm:$0xf]
    %v424 = vld [vmem:[%s1 + $0x3b8] sm:$0xf]
    %v425 = vld [vmem:[%s1 + $0x3bc] sm:$0xf]
    %v426 = vld [vmem:[%s1 + $0x3c0] sm:$0xf]
    %v427 = vld [vmem:[%s1 + $0x3c4] sm:$0xf]
    %v428 = vld [vmem:[%s1 + $0x3c8] sm:$0xf]
    %v429 = vld [vmem:[%s1 + $0x3cc] sm:$0xf]
    %v430 = vld [vmem:[%s1 + $0x3d0] sm:$0xf]
    %v431 = vld [vmem:[%s1 + $0x3d4] sm:$0xf]
    %v432 = vld [vmem:[%s1 + $0x3d8] sm:$0xf]
    %v433 = vld [vmem:[%s1 + $0x3dc] sm:$0xf]
    %v434 = vld [vmem:[%s1 + $0x3e0] sm:$0xf]
    %v435 = vld [vmem:[%s1 + $0x3e4] sm:$0xf]
    %v436 = vld [vmem:[%s1 + $0x3e8] sm:$0xf]
    %v437 = vld [vmem:[%s1 + $0x3ec] sm:$0xf]
    %v438 = vld [vmem:[%s1 + $0x3f0] sm:$0xf]
    %v439 = vld [vmem:[%s1 + $0x3f4] sm:$0xf]
    %v440 = vld [vmem:[%s1 + $0x3f8] sm:$0xf]
    %v441 = vld [vmem:[%s1 + $0x3fc] sm:$0xf]
    %v442 = vld [vmem:[%s1 + $0x400] sm:$0xf]
    %v443 = vld [vmem:[%s1 + $0x404] sm:$0xf]
    %v444 = vld [vmem:[%s1 + $0x408] sm:$0xf]
    %v445 = vld [vmem:[%s1 + $0x40c] sm:$0xf]
    %v446 = vld [vmem:[%s1 + $0x410] sm:$0xf]
    %v447 = vld [vmem:[%s1 + $0x414] sm:$0xf]
    %v448 = vld [vmem:[%s1 + $0x418] sm:$0xf]
    %v449 = vld [vmem:[%s1 + $0x41c] sm:$0xf]
    %v450 = vld [vmem:[%s1 + $0x420] sm:$0xf]
    %v451 = vld [vmem:[%s1 + $0x424] sm:$0xf]
    %v452 = vld [vmem:[%s1 + $0x428] sm:$0xf]
    %v453 = vld [vmem:[%s1 + $0x42c] sm:$0xf]
    %v454 = vld [vmem:[%s1 + $0x430] sm:$0xf]
    %v455 = vld [vmem:[%s1 + $0x434] sm:$0xf]
    %v456 = vld [vmem:[%s1 + $0x438] sm:$0xf]
    %v457 = vld [vmem:[%s1 + $0x43c] sm:$0xf]
    %v458 = vld [vmem:[%s1 + $0x440] sm:$0xf]
    %v459 = vld [vmem:[%s1 + $0x444] sm:$0xf]
    %v460 = vld [vmem:[%s1 + $0x448] sm:$0xf]
    %v461 = vld [vmem:[%s1 + $0x44c] sm:$0xf]
    %v462 = vld [vmem:[%s1 + $0x450] sm:$0xf]
    %v463 = vld [vmem:[%s1 + $0x454] sm:$0xf]
    %v464 = vld [vmem:[%s1 + $0x458] sm:$0xf]
    %v465 = vld [vmem:[%s1 + $0x45c] sm:$0xf]
    %v466 = vld [vmem:[%s1 + $0x460] sm:$0xf]
    %v467 = vld [vmem:[%s1 + $0x464] sm:$0xf]
    %v468 = vld [vmem:[%s1 + $0x468] sm:$0xf]
    %v469 = vld [vmem:[%s1 + $0x46c] sm:$0xf]
    %v470 = vld [vmem:[%s1 + $0x470] sm:$0xf]
    %v471 = vld [vmem:[%s1 + $0x474] sm:$0xf]
    %v472 = vld [vmem:[%s1 + $0x478] sm:$0xf]
    %v473 = vld [vmem:[%s1 + $0x47c] sm:$0xf]
    %v474 = vld [vmem:[%s1 + $0x480] sm:$0xf]
    %v475 = vld [vmem:[%s1 + $0x484] sm:$0xf]
    %v476 = vld [vmem:[%s1 + $0x488] sm:$0xf]
    %v477 = vld [vmem:[%s1 + $0x48c] sm:$0xf]
    %v478 = vld [vmem:[%s1 + $0x490] sm:$0xf]
    %v479 = vld [vmem:[%s1 + $0x494] sm:$0xf]
    %v480 = vld [vmem:[%s1 + $0x498] sm:$0xf]
    %v481 = vld [vmem:[%s1 + $0x49c] sm:$0xf]
    %v482 = vld [vmem:[%s1 + $0x4a0] sm:$0xf]
    %v483 = vld [vmem:[%s1 + $0x4a4] sm:$0xf]
    %v484 = vld [vmem:[%s1 + $0x4a8] sm:$0xf]
    %v485 = vld [vmem:[%s1 + $0x4ac] sm:$0xf]
    %v486 = vld [vmem:[%s1 + $0x4b0] sm:$0xf]
    %v487 = vld [vmem:[%s1 + $0x4b4] sm:$0xf]
    %v488 = vld [vmem:[%s1 + $0x4b8] sm:$0xf]
    %v489 = vld [vmem:[%s1 + $0x4bc] sm:$0xf]
    %v490 = vld [vmem:[%s1 + $0x4c0] sm:$0xf]
    %v491 = vld [vmem:[%s1 + $0x4c4] sm:$0xf]
    %v492 = vld [vmem:[%s1 + $0x4c8] sm:$0xf]
    %v493 = vld [vmem:[%s1 + $0x4cc] sm:$0xf]
    %v494 = vld [vmem:[%s1 + $0x4d0] sm:$0xf]
    %v495 = vld [vmem:[%s1 + $0x4d4] sm:$0xf]
    %v496 = vld [vmem:[%s1 + $0x4d8] sm:$0xf]
    %v497 = vld [vmem:[%s1 + $0x4dc] sm:$0xf]
    %v498 = vld [vmem:[%s1 + $0x4e0] sm:$0xf]
    %v499 = vld [vmem:[%s1 + $0x4e4] sm:$0xf]
    %v500 = vld [vmem:[%s1 + $0x4e8] sm:$0xf]
    %v501 = vld [vmem:[%s1 + $0x4ec] sm:$0xf]
    %v502 = vld [vmem:[%s1 + $0x4f0] sm:$0xf]
    %v503 = vld [vmem:[%s1 + $0x4f4] sm:$0xf]
    %v504 = vld [vmem:[%s1 + $0x4f8] sm:$0xf]
    %v505 = vld [vmem:[%s1 + $0x4fc] sm:$0xf]
    %v506 = vld [vmem:[%s1 + $0x500] sm:$0xf]
    %v507 = vld [vmem:[%s1 + $0x504] sm:$0xf]
    %v508 = vld [vmem:[%s1 + $0x508] sm:$0xf]
    %v509 = vld [vmem:[%s1 + $0x50c] sm:$0xf]
    %v510 = vld [vmem:[%s1 + $0x510] sm:$0xf]
    %v511 = vld [vmem:[%s1 + $0x514] sm:$0xf]
    %v512 = vld [vmem:[%s1 + $0x518] sm:$0xf]
    %v513 = vld [vmem:[%s1 + $0x51c] sm:$0xf]
    %v514 = vld [vmem:[%s1 + $0x520] sm:$0xf]
    %v515 = vld [vmem:[%s1 + $0x524] sm:$0xf]
    %v516 = vld [vmem:[%s1 + $0x528] sm:$0xf]
    %v517 = vld [vmem:[%s1 + $0x52c] sm:$0xf]
    %v518 = vld [vmem:[%s1 + $0x530] sm:$0xf]
    %v519 = vld [vmem:[%s1 + $0x534] sm:$0xf]
    %v520 = vld [vmem:[%s1 + $0x538] sm:$0xf]
    %v521 = vld [vmem:[%s1 + $0x53c] sm:$0xf]
    %v522 = vld [vmem:[%s1 + $0x540] sm:$0xf]
    %v523 = vld [vmem:[%s1 + $0x544] sm:$0xf]
    %v524 = vld [vmem:[%s1 + $0x548] sm:$0xf]
    %v525 = vld [vmem:[%s1 + $0x54c] sm:$0xf]
    %v526 = vld [vmem:[%s1 + $0x550] sm:$0xf]
    %v527 = vld [vmem:[%s1 + $0x554] sm:$0xf]
    %v528 = vld [vmem:[%s1 + $0x558] sm:$0xf]
    %v529 = vld [vmem:[%s1 + $0x55c] sm:$0xf]
    %v530 = vld [vmem:[%s1 + $0x560] sm:$0xf]
    %v531 = vld [vmem:[%s1 + $0x564] sm:$0xf]
    %v532 = vld [vmem:[%s1 + $0x568] sm:$0xf]
    %v533 = vld [vmem:[%s1 + $0x56c] sm:$0xf]
    %v534 = vld [vmem:[%s1 + $0x570] sm:$0xf]
    %v535 = vld [vmem:[%s1 + $0x574] sm:$0xf]
    %v536 = vld [vmem:[%s1 + $0x578] sm:$0xf]
    %v537 = vld [vmem:[%s1 + $0x57c] sm:$0xf]
    %v538 = vld [vmem:[%s1 + $0x580] sm:$0xf]
    %v539 = vld [vmem:[%s1 + $0x584] sm:$0xf]
    %v540 = vld [vmem:[%s1 + $0x588] sm:$0xf]
    %v541 = vld [vmem:[%s1 + $0x58c] sm:$0xf]
    %v542 = vld [vmem:[%s1 + $0x590] sm:$0xf]
    %v543 = vld [vmem:[%s1 + $0x594] sm:$0xf]
    %v544 = vld [vmem:[%s1 + $0x598] sm:$0xf]
    %v545 = vld [vmem:[%s1 + $0x59c] sm:$0xf]
    %v546 = vld [vmem:[%s1 + $0x5a0] sm:$0xf]
    %v547 = vld [vmem:[%s1 + $0x5a4] sm:$0xf]
    %v548 = vld [vmem:[%s1 + $0x5a8] sm:$0xf]
    %v549 = vld [vmem:[%s1 + $0x5ac] sm:$0xf]
    %v550 = vld [vmem:[%s1 + $0x5b0] sm:$0xf]
    %v551 = vld [vmem:[%s1 + $0x5b4] sm:$0xf]
    %v552 = vld [vmem:[%s1 + $0x5b8] sm:$0xf]
    %v553 = vld [vmem:[%s1 + $0x5bc] sm:$0xf]
    %v554 = vld [vmem:[%s1 + $0x5c0] sm:$0xf]
    %v555 = vld [vmem:[%s1 + $0x5c4] sm:$0xf]
    %v556 = vld [vmem:[%s1 + $0x5c8] sm:$0xf]
    %v557 = vld [vmem:[%s1 + $0x5cc] sm:$0xf]
    %v558 = vld [vmem:[%s1 + $0x5d0] sm:$0xf]
    %v559 = vld [vmem:[%s1 + $0x5d4] sm:$0xf]
    %v560 = vld [vmem:[%s1 + $0x5d8] sm:$0xf]
    %v561 = vld [vmem:[%s1 + $0x5dc] sm:$0xf]
    %v562 = vld [vmem:[%s1 + $0x5e0] sm:$0xf]
    %v563 = vld [vmem:[%s1 + $0x5e4] sm:$0xf]
    %v564 = vld [vmem:[%s1 + $0x5e8] sm:$0xf]
    %v565 = vld [vmem:[%s1 + $0x5ec] sm:$0xf]
    %v566 = vld [vmem:[%s1 + $0x5f0] sm:$0xf]
    %v567 = vld [vmem:[%s1 + $0x5f4] sm:$0xf]
    %v568 = vld [vmem:[%s1 + $0x5f8] sm:$0xf]
    %v569 = vld [vmem:[%s1 + $0x5fc] sm:$0xf]
    %v570 = vld [vmem:[%s1 + $0x600] sm:$0xf]
    %v571 = vld [vmem:[%s1 + $0x604] sm:$0xf]
    %v572 = vld [vmem:[%s1 + $0x608] sm:$0xf]
    %v573 = vld [vmem:[%s1 + $0x60c] sm:$0xf]
    %v574 = vld [vmem:[%s1 + $0x610] sm:$0xf]
    %v575 = vld [vmem:[%s1 + $0x614] sm:$0xf]
    %v576 = vld [vmem:[%s1 + $0x618] sm:$0xf]
    %v577 = vld [vmem:[%s1 + $0x61c] sm:$0xf]
    %v578 = vld [vmem:[%s1 + $0x620] sm:$0xf]
    %v579 = vld [vmem:[%s1 + $0x624] sm:$0xf]
    %v580 = vld [vmem:[%s1 + $0x628] sm:$0xf]
    %v581 = vld [vmem:[%s1 + $0x62c] sm:$0xf]
    %v582 = vld [vmem:[%s1 + $0x630] sm:$0xf]
    %v583 = vld [vmem:[%s1 + $0x634] sm:$0xf]
    %v584 = vld [vmem:[%s1 + $0x638] sm:$0xf]
    %v585 = vld [vmem:[%s1 + $0x63c] sm:$0xf]
    %v986 = vunpack.c.l.b16 %v186
    %v987 = vunpack.c.l.b16 %v187
    %v988 = vunpack.c.l.b16 %v188
    %v989 = vunpack.c.l.b16 %v189
    %v990 = vunpack.c.l.b16 %v190
    %v991 = vunpack.c.l.b16 %v191
    %v992 = vunpack.c.l.b16 %v192
    %v993 = vunpack.c.l.b16 %v193
    %v994 = vunpack.c.l.b16 %v194
    %v995 = vunpack.c.l.b16 %v195
    %v996 = vunpack.c.l.b16 %v196
    %v997 = vunpack.c.l.b16 %v197
    %v998 = vunpack.c.l.b16 %v198
    %v999 = vunpack.c.l.b16 %v199
    %v1000 = vunpack.c.l.b16 %v200
    %v1001 = vunpack.c.l.b16 %v201
    %v1002 = vunpack.c.l.b16 %v202
    %v1003 = vunpack.c.l.b16 %v203
    %v1004 = vunpack.c.l.b16 %v204
    %v1005 = vunpack.c.l.b16 %v205
    %v1006 = vunpack.c.l.b16 %v206
    %v1007 = vunpack.c.l.b16 %v207
    %v1008 = vunpack.c.l.b16 %v208
    %v1009 = vunpack.c.l.b16 %v209
    %v1010 = vunpack.c.l.b16 %v210
    %v1011 = vunpack.c.l.b16 %v211
    %v1012 = vunpack.c.l.b16 %v212
    %v1013 = vunpack.c.l.b16 %v213
    %v1014 = vunpack.c.l.b16 %v214
    %v1015 = vunpack.c.l.b16 %v215
    %v1016 = vunpack.c.l.b16 %v216
    %v1017 = vunpack.c.l.b16 %v217
    %v1018 = vunpack.c.l.b16 %v218
    %v1019 = vunpack.c.l.b16 %v219
    %v1020 = vunpack.c.l.b16 %v220
    %v1021 = vunpack.c.l.b16 %v221
    %v1022 = vunpack.c.l.b16 %v222
    %v1023 = vunpack.c.l.b16 %v223
    %v1024 = vunpack.c.l.b16 %v224
    %v1025 = vunpack.c.l.b16 %v225
    %v1026 = vunpack.c.l.b16 %v226
    %v1027 = vunpack.c.l.b16 %v227
    %v1028 = vunpack.c.l.b16 %v228
    %v1029 = vunpack.c.l.b16 %v229
    %v1030 = vunpack.c.l.b16 %v230
    %v1031 = vunpack.c.l.b16 %v231
    %v1032 = vunpack.c.l.b16 %v232
    %v1033 = vunpack.c.l.b16 %v233
    %v1034 = vunpack.c.l.b16 %v234
    %v1035 = vunpack.c.l.b16 %v235
    %v1036 = vunpack.c.l.b16 %v236
    %v1037 = vunpack.c.l.b16 %v237
    %v1038 = vunpack.c.l.b16 %v238
    %v1039 = vunpack.c.l.b16 %v239
    %v1040 = vunpack.c.l.b16 %v240
    %v1041 = vunpack.c.l.b16 %v241
    %v1042 = vunpack.c.l.b16 %v242
    %v1043 = vunpack.c.l.b16 %v243
    %v1044 = vunpack.c.l.b16 %v244
    %v1045 = vunpack.c.l.b16 %v245
    %v1046 = vunpack.c.l.b16 %v246
    %v1047 = vunpack.c.l.b16 %v247
    %v1048 = vunpack.c.l.b16 %v248
    %v1049 = vunpack.c.l.b16 %v249
    %v1050 = vunpack.c.l.b16 %v250
    %v1051 = vunpack.c.l.b16 %v251
    %v1052 = vunpack.c.l.b16 %v252
    %v1053 = vunpack.c.l.b16 %v253
    %v1054 = vunpack.c.l.b16 %v254
    %v1055 = vunpack.c.l.b16 %v255
    %v1056 = vunpack.c.l.b16 %v256
    %v1057 = vunpack.c.l.b16 %v257
    %v1058 = vunpack.c.l.b16 %v258
    %v1059 = vunpack.c.l.b16 %v259
    %v1060 = vunpack.c.l.b16 %v260
    %v1061 = vunpack.c.l.b16 %v261
    %v1062 = vunpack.c.l.b16 %v262
    %v1063 = vunpack.c.l.b16 %v263
    %v1064 = vunpack.c.l.b16 %v264
    %v1065 = vunpack.c.l.b16 %v265
    %v1066 = vunpack.c.l.b16 %v266
    %v1067 = vunpack.c.l.b16 %v267
    %v1068 = vunpack.c.l.b16 %v268
    %v1069 = vunpack.c.l.b16 %v269
    %v1070 = vunpack.c.l.b16 %v270
    %v1071 = vunpack.c.l.b16 %v271
    %v1072 = vunpack.c.l.b16 %v272
    %v1073 = vunpack.c.l.b16 %v273
    %v1074 = vunpack.c.l.b16 %v274
    %v1075 = vunpack.c.l.b16 %v275
    %v1076 = vunpack.c.l.b16 %v276
    %v1077 = vunpack.c.l.b16 %v277
    %v1078 = vunpack.c.l.b16 %v278
    %v1079 = vunpack.c.l.b16 %v279
    %v1080 = vunpack.c.l.b16 %v280
    %v1081 = vunpack.c.l.b16 %v281
    %v1082 = vunpack.c.l.b16 %v282
    %v1083 = vunpack.c.l.b16 %v283
    %v1084 = vunpack.c.l.b16 %v284
    %v1085 = vunpack.c.l.b16 %v285
    %v1086 = vunpack.c.l.b16 %v286
    %v1087 = vunpack.c.l.b16 %v287
    %v1088 = vunpack.c.l.b16 %v288
    %v1089 = vunpack.c.l.b16 %v289
    %v1090 = vunpack.c.l.b16 %v290
    %v1091 = vunpack.c.l.b16 %v291
    %v1092 = vunpack.c.l.b16 %v292
    %v1093 = vunpack.c.l.b16 %v293
    %v1094 = vunpack.c.l.b16 %v294
    %v1095 = vunpack.c.l.b16 %v295
    %v1096 = vunpack.c.l.b16 %v296
    %v1097 = vunpack.c.l.b16 %v297
    %v1098 = vunpack.c.l.b16 %v298
    %v1099 = vunpack.c.l.b16 %v299
    %v1100 = vunpack.c.l.b16 %v300
    %v1101 = vunpack.c.l.b16 %v301
    %v1102 = vunpack.c.l.b16 %v302
    %v1103 = vunpack.c.l.b16 %v303
    %v1104 = vunpack.c.l.b16 %v304
    %v1105 = vunpack.c.l.b16 %v305
    %v1106 = vunpack.c.l.b16 %v306
    %v1107 = vunpack.c.l.b16 %v307
    %v1108 = vunpack.c.l.b16 %v308
    %v1109 = vunpack.c.l.b16 %v309
    %v1110 = vunpack.c.l.b16 %v310
    %v1111 = vunpack.c.l.b16 %v311
    %v1112 = vunpack.c.l.b16 %v312
    %v1113 = vunpack.c.l.b16 %v313
    %v1114 = vunpack.c.l.b16 %v314
    %v1115 = vunpack.c.l.b16 %v315
    %v1116 = vunpack.c.l.b16 %v316
    %v1117 = vunpack.c.l.b16 %v317
    %v1118 = vunpack.c.l.b16 %v318
    %v1119 = vunpack.c.l.b16 %v319
    %v1120 = vunpack.c.l.b16 %v320
    %v1121 = vunpack.c.l.b16 %v321
    %v1122 = vunpack.c.l.b16 %v322
    %v1123 = vunpack.c.l.b16 %v323
    %v1124 = vunpack.c.l.b16 %v324
    %v1125 = vunpack.c.l.b16 %v325
    %v1126 = vunpack.c.l.b16 %v326
    %v1127 = vunpack.c.l.b16 %v327
    %v1128 = vunpack.c.l.b16 %v328
    %v1129 = vunpack.c.l.b16 %v329
    %v1130 = vunpack.c.l.b16 %v330
    %v1131 = vunpack.c.l.b16 %v331
    %v1132 = vunpack.c.l.b16 %v332
    %v1133 = vunpack.c.l.b16 %v333
    %v1134 = vunpack.c.l.b16 %v334
    %v1135 = vunpack.c.l.b16 %v335
    %v1136 = vunpack.c.l.b16 %v336
    %v1137 = vunpack.c.l.b16 %v337
    %v1138 = vunpack.c.l.b16 %v338
    %v1139 = vunpack.c.l.b16 %v339
    %v1140 = vunpack.c.l.b16 %v340
    %v1141 = vunpack.c.l.b16 %v341
    %v1142 = vunpack.c.l.b16 %v342
    %v1143 = vunpack.c.l.b16 %v343
    %v1144 = vunpack.c.l.b16 %v344
    %v1145 = vunpack.c.l.b16 %v345
    %v1146 = vunpack.c.l.b16 %v346
    %v1147 = vunpack.c.l.b16 %v347
    %v1148 = vunpack.c.l.b16 %v348
    %v1149 = vunpack.c.l.b16 %v349
    %v1150 = vunpack.c.l.b16 %v350
    %v1151 = vunpack.c.l.b16 %v351
    %v1152 = vunpack.c.l.b16 %v352
    %v1153 = vunpack.c.l.b16 %v353
    %v1154 = vunpack.c.l.b16 %v354
    %v1155 = vunpack.c.l.b16 %v355
    %v1156 = vunpack.c.l.b16 %v356
    %v1157 = vunpack.c.l.b16 %v357
    %v1158 = vunpack.c.l.b16 %v358
    %v1159 = vunpack.c.l.b16 %v359
    %v1160 = vunpack.c.l.b16 %v360
    %v1161 = vunpack.c.l.b16 %v361
    %v1162 = vunpack.c.l.b16 %v362
    %v1163 = vunpack.c.l.b16 %v363
    %v1164 = vunpack.c.l.b16 %v364
    %v1165 = vunpack.c.l.b16 %v365
    %v1166 = vunpack.c.l.b16 %v366
    %v1167 = vunpack.c.l.b16 %v367
    %v1168 = vunpack.c.l.b16 %v368
    %v1169 = vunpack.c.l.b16 %v369
    %v1170 = vunpack.c.l.b16 %v370
    %v1171 = vunpack.c.l.b16 %v371
    %v1172 = vunpack.c.l.b16 %v372
    %v1173 = vunpack.c.l.b16 %v373
    %v1174 = vunpack.c.l.b16 %v374
    %v1175 = vunpack.c.l.b16 %v375
    %v1176 = vunpack.c.l.b16 %v376
    %v1177 = vunpack.c.l.b16 %v377
    %v1178 = vunpack.c.l.b16 %v378
    %v1179 = vunpack.c.l.b16 %v379
    %v1180 = vunpack.c.l.b16 %v380
    %v1181 = vunpack.c.l.b16 %v381
    %v1182 = vunpack.c.l.b16 %v382
    %v1183 = vunpack.c.l.b16 %v383
    %v1184 = vunpack.c.l.b16 %v384
    %v1185 = vunpack.c.l.b16 %v385
    %v1186 = vunpack.c.l.b16 %v386
    %v1187 = vunpack.c.l.b16 %v387
    %v1188 = vunpack.c.l.b16 %v388
    %v1189 = vunpack.c.l.b16 %v389
    %v1190 = vunpack.c.l.b16 %v390
    %v1191 = vunpack.c.l.b16 %v391
    %v1192 = vunpack.c.l.b16 %v392
    %v1193 = vunpack.c.l.b16 %v393
    %v1194 = vunpack.c.l.b16 %v394
    %v1195 = vunpack.c.l.b16 %v395
    %v1196 = vunpack.c.l.b16 %v396
    %v1197 = vunpack.c.l.b16 %v397
    %v1198 = vunpack.c.l.b16 %v398
    %v1199 = vunpack.c.l.b16 %v399
    %v1200 = vunpack.c.l.b16 %v400
    %v1201 = vunpack.c.l.b16 %v401
    %v1202 = vunpack.c.l.b16 %v402
    %v1203 = vunpack.c.l.b16 %v403
    %v1204 = vunpack.c.l.b16 %v404
    %v1205 = vunpack.c.l.b16 %v405
    %v1206 = vunpack.c.l.b16 %v406
    %v1207 = vunpack.c.l.b16 %v407
    %v1208 = vunpack.c.l.b16 %v408
    %v1209 = vunpack.c.l.b16 %v409
    %v1210 = vunpack.c.l.b16 %v410
    %v1211 = vunpack.c.l.b16 %v411
    %v1212 = vunpack.c.l.b16 %v412
    %v1213 = vunpack.c.l.b16 %v413
    %v1214 = vunpack.c.l.b16 %v414
    %v1215 = vunpack.c.l.b16 %v415
    %v1216 = vunpack.c.l.b16 %v416
    %v1217 = vunpack.c.l.b16 %v417
    %v1218 = vunpack.c.l.b16 %v418
    %v1219 = vunpack.c.l.b16 %v419
    %v1220 = vunpack.c.l.b16 %v420
    %v1221 = vunpack.c.l.b16 %v421
    %v1222 = vunpack.c.l.b16 %v422
    %v1223 = vunpack.c.l.b16 %v423
    %v1224 = vunpack.c.l.b16 %v424
    %v1225 = vunpack.c.l.b16 %v425
    %v1226 = vunpack.c.l.b16 %v426
    %v1227 = vunpack.c.l.b16 %v427
    %v1228 = vunpack.c.l.b16 %v428
    %v1229 = vunpack.c.l.b16 %v429
    %v1230 = vunpack.c.l.b16 %v430
    %v1231 = vunpack.c.l.b16 %v431
    %v1232 = vunpack.c.l.b16 %v432
    %v1233 = vunpack.c.l.b16 %v433
    %v1234 = vunpack.c.l.b16 %v434
    %v1235 = vunpack.c.l.b16 %v435
    %v1236 = vunpack.c.l.b16 %v436
    %v1237 = vunpack.c.l.b16 %v437
    %v1238 = vunpack.c.l.b16 %v438
    %v1239 = vunpack.c.l.b16 %v439
    %v1240 = vunpack.c.l.b16 %v440
    %v1241 = vunpack.c.l.b16 %v441
    %v1242 = vunpack.c.l.b16 %v442
    %v1243 = vunpack.c.l.b16 %v443
    %v1244 = vunpack.c.l.b16 %v444
    %v1245 = vunpack.c.l.b16 %v445
    %v1246 = vunpack.c.l.b16 %v446
    %v1247 = vunpack.c.l.b16 %v447
    %v1248 = vunpack.c.l.b16 %v448
    %v1249 = vunpack.c.l.b16 %v449
    %v1250 = vunpack.c.l.b16 %v450
    %v1251 = vunpack.c.l.b16 %v451
    %v1252 = vunpack.c.l.b16 %v452
    %v1253 = vunpack.c.l.b16 %v453
    %v1254 = vunpack.c.l.b16 %v454
    %v1255 = vunpack.c.l.b16 %v455
    %v1256 = vunpack.c.l.b16 %v456
    %v1257 = vunpack.c.l.b16 %v457
    %v1258 = vunpack.c.l.b16 %v458
    %v1259 = vunpack.c.l.b16 %v459
    %v1260 = vunpack.c.l.b16 %v460
    %v1261 = vunpack.c.l.b16 %v461
    %v1262 = vunpack.c.l.b16 %v462
    %v1263 = vunpack.c.l.b16 %v463
    %v1264 = vunpack.c.l.b16 %v464
    %v1265 = vunpack.c.l.b16 %v465
    %v1266 = vunpack.c.l.b16 %v466
    %v1267 = vunpack.c.l.b16 %v467
    %v1268 = vunpack.c.l.b16 %v468
    %v1269 = vunpack.c.l.b16 %v469
    %v1270 = vunpack.c.l.b16 %v470
    %v1271 = vunpack.c.l.b16 %v471
    %v1272 = vunpack.c.l.b16 %v472
    %v1273 = vunpack.c.l.b16 %v473
    %v1274 = vunpack.c.l.b16 %v474
    %v1275 = vunpack.c.l.b16 %v475
    %v1276 = vunpack.c.l.b16 %v476
    %v1277 = vunpack.c.l.b16 %v477
    %v1278 = vunpack.c.l.b16 %v478
    %v1279 = vunpack.c.l.b16 %v479
    %v1280 = vunpack.c.l.b16 %v480
    %v1281 = vunpack.c.l.b16 %v481
    %v1282 = vunpack.c.l.b16 %v482
    %v1283 = vunpack.c.l.b16 %v483
    %v1284 = vunpack.c.l.b16 %v484
    %v1285 = vunpack.c.l.b16 %v485
    %v1286 = vunpack.c.l.b16 %v486
    %v1287 = vunpack.c.l.b16 %v487
    %v1288 = vunpack.c.l.b16 %v488
    %v1289 = vunpack.c.l.b16 %v489
    %v1290 = vunpack.c.l.b16 %v490
    %v1291 = vunpack.c.l.b16 %v491
    %v1292 = vunpack.c.l.b16 %v492
    %v1293 = vunpack.c.l.b16 %v493
    %v1294 = vunpack.c.l.b16 %v494
    %v1295 = vunpack.c.l.b16 %v495
    %v1296 = vunpack.c.l.b16 %v496
    %v1297 = vunpack.c.l.b16 %v497
    %v1298 = vunpack.c.l.b16 %v498
    %v1299 = vunpack.c.l.b16 %v499
    %v1300 = vunpack.c.l.b16 %v500
    %v1301 = vunpack.c.l.b16 %v501
    %v1302 = vunpack.c.l.b16 %v502
    %v1303 = vunpack.c.l.b16 %v503
    %v1304 = vunpack.c.l.b16 %v504
    %v1305 = vunpack.c.l.b16 %v505
    %v1306 = vunpack.c.l.b16 %v506
    %v1307 = vunpack.c.l.b16 %v507
    %v1308 = vunpack.c.l.b16 %v508
    %v1309 = vunpack.c.l.b16 %v509
    %v1310 = vunpack.c.l.b16 %v510
    %v1311 = vunpack.c.l.b16 %v511
    %v1312 = vunpack.c.l.b16 %v512
    %v1313 = vunpack.c.l.b16 %v513
    %v1314 = vunpack.c.l.b16 %v514
    %v1315 = vunpack.c.l.b16 %v515
    %v1316 = vunpack.c.l.b16 %v516
    %v1317 = vunpack.c.l.b16 %v517
    %v1318 = vunpack.c.l.b16 %v518
    %v1319 = vunpack.c.l.b16 %v519
    %v1320 = vunpack.c.l.b16 %v520
    %v1321 = vunpack.c.l.b16 %v521
    %v1322 = vunpack.c.l.b16 %v522
    %v1323 = vunpack.c.l.b16 %v523
    %v1324 = vunpack.c.l.b16 %v524
    %v1325 = vunpack.c.l.b16 %v525
    %v1326 = vunpack.c.l.b16 %v526
    %v1327 = vunpack.c.l.b16 %v527
    %v1328 = vunpack.c.l.b16 %v528
    %v1329 = vunpack.c.l.b16 %v529
    %v1330 = vunpack.c.l.b16 %v530
    %v1331 = vunpack.c.l.b16 %v531
    %v1332 = vunpack.c.l.b16 %v532
    %v1333 = vunpack.c.l.b16 %v533
    %v1334 = vunpack.c.l.b16 %v534
    %v1335 = vunpack.c.l.b16 %v535
    %v1336 = vunpack.c.l.b16 %v536
    %v1337 = vunpack.c.l.b16 %v537
    %v1338 = vunpack.c.l.b16 %v538
    %v1339 = vunpack.c.l.b16 %v539
    %v1340 = vunpack.c.l.b16 %v540
    %v1341 = vunpack.c.l.b16 %v541
    %v1342 = vunpack.c.l.b16 %v542
    %v1343 = vunpack.c.l.b16 %v543
    %v1344 = vunpack.c.l.b16 %v544
    %v1345 = vunpack.c.l.b16 %v545
    %v1346 = vunpack.c.l.b16 %v546
    %v1347 = vunpack.c.l.b16 %v547
    %v1348 = vunpack.c.l.b16 %v548
    %v1349 = vunpack.c.l.b16 %v549
    %v1350 = vunpack.c.l.b16 %v550
    %v1351 = vunpack.c.l.b16 %v551
    %v1352 = vunpack.c.l.b16 %v552
    %v1353 = vunpack.c.l.b16 %v553
    %v1354 = vunpack.c.l.b16 %v554
    %v1355 = vunpack.c.l.b16 %v555
    %v1356 = vunpack.c.l.b16 %v556
    %v1357 = vunpack.c.l.b16 %v557
    %v1358 = vunpack.c.l.b16 %v558
    %v1359 = vunpack.c.l.b16 %v559
    %v1360 = vunpack.c.l.b16 %v560
    %v1361 = vunpack.c.l.b16 %v561
    %v1362 = vunpack.c.l.b16 %v562
    %v1363 = vunpack.c.l.b16 %v563
    %v1364 = vunpack.c.l.b16 %v564
    %v1365 = vunpack.c.l.b16 %v565
    %v1366 = vunpack.c.l.b16 %v566
    %v1367 = vunpack.c.l.b16 %v567
    %v1368 = vunpack.c.l.b16 %v568
    %v1369 = vunpack.c.l.b16 %v569
    %v1370 = vunpack.c.l.b16 %v570
    %v1371 = vunpack.c.l.b16 %v571
    %v1372 = vunpack.c.l.b16 %v572
    %v1373 = vunpack.c.l.b16 %v573
    %v1374 = vunpack.c.l.b16 %v574
    %v1375 = vunpack.c.l.b16 %v575
    %v1376 = vunpack.c.l.b16 %v576
    %v1377 = vunpack.c.l.b16 %v577
    %v1378 = vunpack.c.l.b16 %v578
    %v1379 = vunpack.c.l.b16 %v579
    %v1380 = vunpack.c.l.b16 %v580
    %v1381 = vunpack.c.l.b16 %v581
    %v1382 = vunpack.c.l.b16 %v582
    %v1383 = vunpack.c.l.b16 %v583
    %v1384 = vunpack.c.l.b16 %v584
    %v1385 = vunpack.c.l.b16 %v585
    %v1386 = vpack.c.b16 %v987, %v986
    %v1387 = vpack.c.b16 %v989, %v988
    %v1388 = vpack.c.b16 %v991, %v990
    %v1389 = vpack.c.b16 %v993, %v992
    %v1390 = vpack.c.b16 %v995, %v994
    %v1391 = vpack.c.b16 %v997, %v996
    %v1392 = vpack.c.b16 %v999, %v998
    %v1393 = vpack.c.b16 %v1001, %v1000
    %v1394 = vpack.c.b16 %v1003, %v1002
    %v1395 = vpack.c.b16 %v1005, %v1004
    %v1396 = vpack.c.b16 %v1007, %v1006
    %v1397 = vpack.c.b16 %v1009, %v1008
    %v1398 = vpack.c.b16 %v1011, %v1010
    %v1399 = vpack.c.b16 %v1013, %v1012
    %v1400 = vpack.c.b16 %v1015, %v1014
    %v1401 = vpack.c.b16 %v1017, %v1016
    %v1402 = vpack.c.b16 %v1019, %v1018
    %v1403 = vpack.c.b16 %v1021, %v1020
    %v1404 = vpack.c.b16 %v1023, %v1022
    %v1405 = vpack.c.b16 %v1025, %v1024
    %v1406 = vpack.c.b16 %v1027, %v1026
    %v1407 = vpack.c.b16 %v1029, %v1028
    %v1408 = vpack.c.b16 %v1031, %v1030
    %v1409 = vpack.c.b16 %v1033, %v1032
    %v1410 = vpack.c.b16 %v1035, %v1034
    %v1411 = vpack.c.b16 %v1037, %v1036
    %v1412 = vpack.c.b16 %v1039, %v1038
    %v1413 = vpack.c.b16 %v1041, %v1040
    %v1414 = vpack.c.b16 %v1043, %v1042
    %v1415 = vpack.c.b16 %v1045, %v1044
    %v1416 = vpack.c.b16 %v1047, %v1046
    %v1417 = vpack.c.b16 %v1049, %v1048
    %v1418 = vpack.c.b16 %v1051, %v1050
    %v1419 = vpack.c.b16 %v1053, %v1052
    %v1420 = vpack.c.b16 %v1055, %v1054
    %v1421 = vpack.c.b16 %v1057, %v1056
    %v1422 = vpack.c.b16 %v1059, %v1058
    %v1423 = vpack.c.b16 %v1061, %v1060
    %v1424 = vpack.c.b16 %v1063, %v1062
    %v1425 = vpack.c.b16 %v1065, %v1064
    %v1426 = vpack.c.b16 %v1067, %v1066
    %v1427 = vpack.c.b16 %v1069, %v1068
    %v1428 = vpack.c.b16 %v1071, %v1070
    %v1429 = vpack.c.b16 %v1073, %v1072
    %v1430 = vpack.c.b16 %v1075, %v1074
    %v1431 = vpack.c.b16 %v1077, %v1076
    %v1432 = vpack.c.b16 %v1079, %v1078
    %v1433 = vpack.c.b16 %v1081, %v1080
    %v1434 = vpack.c.b16 %v1083, %v1082
    %v1435 = vpack.c.b16 %v1085, %v1084
    %v1436 = vpack.c.b16 %v1087, %v1086
    %v1437 = vpack.c.b16 %v1089, %v1088
    %v1438 = vpack.c.b16 %v1091, %v1090
    %v1439 = vpack.c.b16 %v1093, %v1092
    %v1440 = vpack.c.b16 %v1095, %v1094
    %v1441 = vpack.c.b16 %v1097, %v1096
    %v1442 = vpack.c.b16 %v1099, %v1098
    %v1443 = vpack.c.b16 %v1101, %v1100
    %v1444 = vpack.c.b16 %v1103, %v1102
    %v1445 = vpack.c.b16 %v1105, %v1104
    %v1446 = vpack.c.b16 %v1107, %v1106
    %v1447 = vpack.c.b16 %v1109, %v1108
    %v1448 = vpack.c.b16 %v1111, %v1110
    %v1449 = vpack.c.b16 %v1113, %v1112
    %v1450 = vpack.c.b16 %v1115, %v1114
    %v1451 = vpack.c.b16 %v1117, %v1116
    %v1452 = vpack.c.b16 %v1119, %v1118
    %v1453 = vpack.c.b16 %v1121, %v1120
    %v1454 = vpack.c.b16 %v1123, %v1122
    %v1455 = vpack.c.b16 %v1125, %v1124
    %v1456 = vpack.c.b16 %v1127, %v1126
    %v1457 = vpack.c.b16 %v1129, %v1128
    %v1458 = vpack.c.b16 %v1131, %v1130
    %v1459 = vpack.c.b16 %v1133, %v1132
    %v1460 = vpack.c.b16 %v1135, %v1134
    %v1461 = vpack.c.b16 %v1137, %v1136
    %v1462 = vpack.c.b16 %v1139, %v1138
    %v1463 = vpack.c.b16 %v1141, %v1140
    %v1464 = vpack.c.b16 %v1143, %v1142
    %v1465 = vpack.c.b16 %v1145, %v1144
    %v1466 = vpack.c.b16 %v1147, %v1146
    %v1467 = vpack.c.b16 %v1149, %v1148
    %v1468 = vpack.c.b16 %v1151, %v1150
    %v1469 = vpack.c.b16 %v1153, %v1152
    %v1470 = vpack.c.b16 %v1155, %v1154
    %v1471 = vpack.c.b16 %v1157, %v1156
    %v1472 = vpack.c.b16 %v1159, %v1158
    %v1473 = vpack.c.b16 %v1161, %v1160
    %v1474 = vpack.c.b16 %v1163, %v1162
    %v1475 = vpack.c.b16 %v1165, %v1164
    %v1476 = vpack.c.b16 %v1167, %v1166
    %v1477 = vpack.c.b16 %v1169, %v1168
    %v1478 = vpack.c.b16 %v1171, %v1170
    %v1479 = vpack.c.b16 %v1173, %v1172
    %v1480 = vpack.c.b16 %v1175, %v1174
    %v1481 = vpack.c.b16 %v1177, %v1176
    %v1482 = vpack.c.b16 %v1179, %v1178
    %v1483 = vpack.c.b16 %v1181, %v1180
    %v1484 = vpack.c.b16 %v1183, %v1182
    %v1485 = vpack.c.b16 %v1185, %v1184
    %v1486 = vpack.c.b16 %v1187, %v1186
    %v1487 = vpack.c.b16 %v1189, %v1188
    %v1488 = vpack.c.b16 %v1191, %v1190
    %v1489 = vpack.c.b16 %v1193, %v1192
    %v1490 = vpack.c.b16 %v1195, %v1194
    %v1491 = vpack.c.b16 %v1197, %v1196
    %v1492 = vpack.c.b16 %v1199, %v1198
    %v1493 = vpack.c.b16 %v1201, %v1200
    %v1494 = vpack.c.b16 %v1203, %v1202
    %v1495 = vpack.c.b16 %v1205, %v1204
    %v1496 = vpack.c.b16 %v1207, %v1206
    %v1497 = vpack.c.b16 %v1209, %v1208
    %v1498 = vpack.c.b16 %v1211, %v1210
    %v1499 = vpack.c.b16 %v1213, %v1212
    %v1500 = vpack.c.b16 %v1215, %v1214
    %v1501 = vpack.c.b16 %v1217, %v1216
    %v1502 = vpack.c.b16 %v1219, %v1218
    %v1503 = vpack.c.b16 %v1221, %v1220
    %v1504 = vpack.c.b16 %v1223, %v1222
    %v1505 = vpack.c.b16 %v1225, %v1224
    %v1506 = vpack.c.b16 %v1227, %v1226
    %v1507 = vpack.c.b16 %v1229, %v1228
    %v1508 = vpack.c.b16 %v1231, %v1230
    %v1509 = vpack.c.b16 %v1233, %v1232
    %v1510 = vpack.c.b16 %v1235, %v1234
    %v1511 = vpack.c.b16 %v1237, %v1236
    %v1512 = vpack.c.b16 %v1239, %v1238
    %v1513 = vpack.c.b16 %v1241, %v1240
    %v1514 = vpack.c.b16 %v1243, %v1242
    %v1515 = vpack.c.b16 %v1245, %v1244
    %v1516 = vpack.c.b16 %v1247, %v1246
    %v1517 = vpack.c.b16 %v1249, %v1248
    %v1518 = vpack.c.b16 %v1251, %v1250
    %v1519 = vpack.c.b16 %v1253, %v1252
    %v1520 = vpack.c.b16 %v1255, %v1254
    %v1521 = vpack.c.b16 %v1257, %v1256
    %v1522 = vpack.c.b16 %v1259, %v1258
    %v1523 = vpack.c.b16 %v1261, %v1260
    %v1524 = vpack.c.b16 %v1263, %v1262
    %v1525 = vpack.c.b16 %v1265, %v1264
    %v1526 = vpack.c.b16 %v1267, %v1266
    %v1527 = vpack.c.b16 %v1269, %v1268
    %v1528 = vpack.c.b16 %v1271, %v1270
    %v1529 = vpack.c.b16 %v1273, %v1272
    %v1530 = vpack.c.b16 %v1275, %v1274
    %v1531 = vpack.c.b16 %v1277, %v1276
    %v1532 = vpack.c.b16 %v1279, %v1278
    %v1533 = vpack.c.b16 %v1281, %v1280
    %v1534 = vpack.c.b16 %v1283, %v1282
    %v1535 = vpack.c.b16 %v1285, %v1284
    %v1536 = vpack.c.b16 %v1287, %v1286
    %v1537 = vpack.c.b16 %v1289, %v1288
    %v1538 = vpack.c.b16 %v1291, %v1290
    %v1539 = vpack.c.b16 %v1293, %v1292
    %v1540 = vpack.c.b16 %v1295, %v1294
    %v1541 = vpack.c.b16 %v1297, %v1296
    %v1542 = vpack.c.b16 %v1299, %v1298
    %v1543 = vpack.c.b16 %v1301, %v1300
    %v1544 = vpack.c.b16 %v1303, %v1302
    %v1545 = vpack.c.b16 %v1305, %v1304
    %v1546 = vpack.c.b16 %v1307, %v1306
    %v1547 = vpack.c.b16 %v1309, %v1308
    %v1548 = vpack.c.b16 %v1311, %v1310
    %v1549 = vpack.c.b16 %v1313, %v1312
    %v1550 = vpack.c.b16 %v1315, %v1314
    %v1551 = vpack.c.b16 %v1317, %v1316
    %v1552 = vpack.c.b16 %v1319, %v1318
    %v1553 = vpack.c.b16 %v1321, %v1320
    %v1554 = vpack.c.b16 %v1323, %v1322
    %v1555 = vpack.c.b16 %v1325, %v1324
    %v1556 = vpack.c.b16 %v1327, %v1326
    %v1557 = vpack.c.b16 %v1329, %v1328
    %v1558 = vpack.c.b16 %v1331, %v1330
    %v1559 = vpack.c.b16 %v1333, %v1332
    %v1560 = vpack.c.b16 %v1335, %v1334
    %v1561 = vpack.c.b16 %v1337, %v1336
    %v1562 = vpack.c.b16 %v1339, %v1338
    %v1563 = vpack.c.b16 %v1341, %v1340
    %v1564 = vpack.c.b16 %v1343, %v1342
    %v1565 = vpack.c.b16 %v1345, %v1344
    %v1566 = vpack.c.b16 %v1347, %v1346
    %v1567 = vpack.c.b16 %v1349, %v1348
    %v1568 = vpack.c.b16 %v1351, %v1350
    %v1569 = vpack.c.b16 %v1353, %v1352
    %v1570 = vpack.c.b16 %v1355, %v1354
    %v1571 = vpack.c.b16 %v1357, %v1356
    %v1572 = vpack.c.b16 %v1359, %v1358
    %v1573 = vpack.c.b16 %v1361, %v1360
    %v1574 = vpack.c.b16 %v1363, %v1362
    %v1575 = vpack.c.b16 %v1365, %v1364
    %v1576 = vpack.c.b16 %v1367, %v1366
    %v1577 = vpack.c.b16 %v1369, %v1368
    %v1578 = vpack.c.b16 %v1371, %v1370
    %v1579 = vpack.c.b16 %v1373, %v1372
    %v1580 = vpack.c.b16 %v1375, %v1374
    %v1581 = vpack.c.b16 %v1377, %v1376
    %v1582 = vpack.c.b16 %v1379, %v1378
    %v1583 = vpack.c.b16 %v1381, %v1380
    %v1584 = vpack.c.b16 %v1383, %v1382
    %v1585 = vpack.c.b16 %v1385, %v1384
    %1786 = vmatprep.subr.bf16.mxu0 0
    %1787 = vmatpush1.bf16.msra.mxu0 %v1386
    %1788 = vmatprep.subr.bf16.mxu0 0
    %1789 = vmatpush1.bf16.msra.mxu0 %v1387
    %1790 = vmatprep.subr.bf16.mxu0 0
    %1791 = vmatpush1.bf16.msra.mxu0 %v1388
    %1792 = vmatprep.subr.bf16.mxu0 0
    %1793 = vmatpush1.bf16.msra.mxu0 %v1389
    %1794 = vmatprep.subr.bf16.mxu0 0
    %1795 = vmatpush1.bf16.msra.mxu0 %v1390
    %1796 = vmatprep.subr.bf16.mxu0 0
    %1797 = vmatpush1.bf16.msra.mxu0 %v1391
    %1798 = vmatprep.subr.bf16.mxu0 0
    %1799 = vmatpush1.bf16.msra.mxu0 %v1392
    %1800 = vmatprep.subr.bf16.mxu0 0
    %1801 = vmatpush1.bf16.msra.mxu0 %v1393
    %1802 = vmatprep.subr.bf16.mxu0 0
    %1803 = vmatpush1.bf16.msra.mxu0 %v1394
    %1804 = vmatprep.subr.bf16.mxu0 0
    %1805 = vmatpush1.bf16.msra.mxu0 %v1395
    %1806 = vmatprep.subr.bf16.mxu0 0
    %1807 = vmatpush1.bf16.msra.mxu0 %v1396
    %1808 = vmatprep.subr.bf16.mxu0 0
    %1809 = vmatpush1.bf16.msra.mxu0 %v1397
    %1810 = vmatprep.subr.bf16.mxu0 0
    %1811 = vmatpush1.bf16.msra.mxu0 %v1398
    %1812 = vmatprep.subr.bf16.mxu0 0
    %1813 = vmatpush1.bf16.msra.mxu0 %v1399
    %1814 = vmatprep.subr.bf16.mxu0 0
    %1815 = vmatpush1.bf16.msra.mxu0 %v1400
    %1816 = vmatprep.subr.bf16.mxu0 0
    %1817 = vmatpush1.bf16.msra.mxu0 %v1401
    %1818 = vmatprep.mubr.bf16.mxu0 %v162
    %1819 = vmatmul.mubr.bf16.gmra.mrb[0].mxu0 %v161
    %v1820 = vpop.f32.mrb[0].mxu0
    %v1821 = vadd.f32 0.0, %v1820
    %v1822 = vpop.f32.mrb[0].mxu0
    %v1823 = vpop.f32.mrb[0].mxu0
    %v1824 = vpop.f32.mrb[0].mxu0
    %1825 = vdwg.mxu0
    %1826 = vmatprep.subr.bf16.mxu0 0
    %1827 = vmatpush1.bf16.msra.mxu0 %v1402
    %1828 = vmatprep.subr.bf16.mxu0 0
    %1829 = vmatpush1.bf16.msra.mxu0 %v1403
    %1830 = vmatprep.subr.bf16.mxu0 0
    %1831 = vmatpush1.bf16.msra.mxu0 %v1404
    %1832 = vmatprep.subr.bf16.mxu0 0
    %1833 = vmatpush1.bf16.msra.mxu0 %v1405
    %1834 = vmatprep.subr.bf16.mxu0 0
    %1835 = vmatpush1.bf16.msra.mxu0 %v1406
    %1836 = vmatprep.subr.bf16.mxu0 0
    %1837 = vmatpush1.bf16.msra.mxu0 %v1407
    %1838 = vmatprep.subr.bf16.mxu0 0
    %1839 = vmatpush1.bf16.msra.mxu0 %v1408
    %1840 = vmatprep.subr.bf16.mxu0 0
    %1841 = vmatpush1.bf16.msra.mxu0 %v1409
    %1842 = vmatprep.subr.bf16.mxu0 0
    %1843 = vmatpush1.bf16.msra.mxu0 %v1410
    %1844 = vmatprep.subr.bf16.mxu0 0
    %1845 = vmatpush1.bf16.msra.mxu0 %v1411
    %1846 = vmatprep.subr.bf16.mxu0 0
    %1847 = vmatpush1.bf16.msra.mxu0 %v1412
    %1848 = vmatprep.subr.bf16.mxu0 0
    %1849 = vmatpush1.bf16.msra.mxu0 %v1413
    %1850 = vmatprep.subr.bf16.mxu0 0
    %1851 = vmatpush1.bf16.msra.mxu0 %v1414
    %1852 = vmatprep.subr.bf16.mxu0 0
    %1853 = vmatpush1.bf16.msra.mxu0 %v1415
    %1854 = vmatprep.subr.bf16.mxu0 0
    %1855 = vmatpush1.bf16.msra.mxu0 %v1416
    %1856 = vmatprep.subr.bf16.mxu0 0
    %1857 = vmatpush1.bf16.msra.mxu0 %v1417
    %1858 = vmatprep.mubr.bf16.mxu0 %v164
    %1859 = vmatmul.mubr.bf16.gmra.mrb[0].mxu0 %v163
    %v1860 = vpop.f32.mrb[0].mxu0
    %v1861 = vadd.f32 %v1821, %v1860
    %v1862 = vpop.f32.mrb[0].mxu0
    %v1863 = vpop.f32.mrb[0].mxu0
    %v1864 = vpop.f32.mrb[0].mxu0
    %1865 = vdwg.mxu0
    %1866 = vmatprep.subr.bf16.mxu0 0
    %1867 = vmatpush1.bf16.msra.mxu0 %v1418
    %1868 = vmatprep.subr.bf16.mxu0 0
    %1869 = vmatpush1.bf16.msra.mxu0 %v1419
    %1870 = vmatprep.subr.bf16.mxu0 0
    %1871 = vmatpush1.bf16.msra.mxu0 %v1420
    %1872 = vmatprep.subr.bf16.mxu0 0
    %1873 = vmatpush1.bf16.msra.mxu0 %v1421
    %1874 = vmatprep.subr.bf16.mxu0 0
    %1875 = vmatpush1.bf16.msra.mxu0 %v1422
    %1876 = vmatprep.subr.bf16.mxu0 0
    %1877 = vmatpush1.bf16.msra.mxu0 %v1423
    %1878 = vmatprep.subr.bf16.mxu0 0
    %1879 = vmatpush1.bf16.msra.mxu0 %v1424
    %1880 = vmatprep.subr.bf16.mxu0 0
    %1881 = vmatpush1.bf16.msra.mxu0 %v1425
    %1882 = vmatprep.subr.bf16.mxu0 0
    %1883 = vmatpush1.bf16.msra.mxu0 %v1426
    %1884 = vmatprep.subr.bf16.mxu0 0
    %1885 = vmatpush1.bf16.msra.mxu0 %v1427
    %1886 = vmatprep.subr.bf16.mxu0 0
    %1887 = vmatpush1.bf16.msra.mxu0 %v1428
    %1888 = vmatprep.subr.bf16.mxu0 0
    %1889 = vmatpush1.bf16.msra.mxu0 %v1429
    %1890 = vmatprep.subr.bf16.mxu0 0
    %1891 = vmatpush1.bf16.msra.mxu0 %v1430
    %1892 = vmatprep.subr.bf16.mxu0 0
    %1893 = vmatpush1.bf16.msra.mxu0 %v1431
    %1894 = vmatprep.subr.bf16.mxu0 0
    %1895 = vmatpush1.bf16.msra.mxu0 %v1432
    %1896 = vmatprep.subr.bf16.mxu0 0
    %1897 = vmatpush1.bf16.msra.mxu0 %v1433
    %1898 = vmatprep.mubr.bf16.mxu0 %v166
    %1899 = vmatmul.mubr.bf16.gmra.mrb[0].mxu0 %v165
    %v1900 = vpop.f32.mrb[0].mxu0
    %v1901 = vadd.f32 %v1861, %v1900
    %v1902 = vpop.f32.mrb[0].mxu0
    %v1903 = vpop.f32.mrb[0].mxu0
    %v1904 = vpop.f32.mrb[0].mxu0
    %1905 = vdwg.mxu0
    %1906 = vmatprep.subr.bf16.mxu0 0
    %1907 = vmatpush1.bf16.msra.mxu0 %v1434
    %1908 = vmatprep.subr.bf16.mxu0 0
    %1909 = vmatpush1.bf16.msra.mxu0 %v1435
    %1910 = vmatprep.subr.bf16.mxu0 0
    %1911 = vmatpush1.bf16.msra.mxu0 %v1436
    %1912 = vmatprep.subr.bf16.mxu0 0
    %1913 = vmatpush1.bf16.msra.mxu0 %v1437
    %1914 = vmatprep.subr.bf16.mxu0 0
    %1915 = vmatpush1.bf16.msra.mxu0 %v1438
    %1916 = vmatprep.subr.bf16.mxu0 0
    %1917 = vmatpush1.bf16.msra.mxu0 %v1439
    %1918 = vmatprep.subr.bf16.mxu0 0
    %1919 = vmatpush1.bf16.msra.mxu0 %v1440
    %1920 = vmatprep.subr.bf16.mxu0 0
    %1921 = vmatpush1.bf16.msra.mxu0 %v1441
    %1922 = vmatprep.subr.bf16.mxu0 0
    %1923 = vmatpush1.bf16.msra.mxu0 %v1442
    %1924 = vmatprep.subr.bf16.mxu0 0
    %1925 = vmatpush1.bf16.msra.mxu0 %v1443
    %1926 = vmatprep.subr.bf16.mxu0 0
    %1927 = vmatpush1.bf16.msra.mxu0 %v1444
    %1928 = vmatprep.subr.bf16.mxu0 0
    %1929 = vmatpush1.bf16.msra.mxu0 %v1445
    %1930 = vmatprep.subr.bf16.mxu0 0
    %1931 = vmatpush1.bf16.msra.mxu0 %v1446
    %1932 = vmatprep.subr.bf16.mxu0 0
    %1933 = vmatpush1.bf16.msra.mxu0 %v1447
    %1934 = vmatprep.subr.bf16.mxu0 0
    %1935 = vmatpush1.bf16.msra.mxu0 %v1448
    %1936 = vmatprep.subr.bf16.mxu0 0
    %1937 = vmatpush1.bf16.msra.mxu0 %v1449
    %1938 = vmatprep.mubr.bf16.mxu0 %v168
    %1939 = vmatmul.mubr.bf16.gmra.mrb[0].mxu0 %v167
    %v1940 = vpop.f32.mrb[0].mxu0
    %v1941 = vadd.f32 %v1901, %v1940
    %v1942 = vpop.f32.mrb[0].mxu0
    %v1943 = vpop.f32.mrb[0].mxu0
    %v1944 = vpop.f32.mrb[0].mxu0
    %1945 = vdwg.mxu0
    %1946 = vmatprep.subr.bf16.mxu0 0
    %1947 = vmatpush1.bf16.msra.mxu0 %v1450
    %1948 = vmatprep.subr.bf16.mxu0 0
    %1949 = vmatpush1.bf16.msra.mxu0 %v1451
    %1950 = vmatprep.subr.bf16.mxu0 0
    %1951 = vmatpush1.bf16.msra.mxu0 %v1452
    %1952 = vmatprep.subr.bf16.mxu0 0
    %1953 = vmatpush1.bf16.msra.mxu0 %v1453
    %1954 = vmatprep.subr.bf16.mxu0 0
    %1955 = vmatpush1.bf16.msra.mxu0 %v1454
    %1956 = vmatprep.subr.bf16.mxu0 0
    %1957 = vmatpush1.bf16.msra.mxu0 %v1455
    %1958 = vmatprep.subr.bf16.mxu0 0
    %1959 = vmatpush1.bf16.msra.mxu0 %v1456
    %1960 = vmatprep.subr.bf16.mxu0 0
    %1961 = vmatpush1.bf16.msra.mxu0 %v1457
    %1962 = vmatprep.subr.bf16.mxu0 0
    %1963 = vmatpush1.bf16.msra.mxu0 %v1458
    %1964 = vmatprep.subr.bf16.mxu0 0
    %1965 = vmatpush1.bf16.msra.mxu0 %v1459
    %1966 = vmatprep.subr.bf16.mxu0 0
    %1967 = vmatpush1.bf16.msra.mxu0 %v1460
    %1968 = vmatprep.subr.bf16.mxu0 0
    %1969 = vmatpush1.bf16.msra.mxu0 %v1461
    %1970 = vmatprep.subr.bf16.mxu0 0
    %1971 = vmatpush1.bf16.msra.mxu0 %v1462
    %1972 = vmatprep.subr.bf16.mxu0 0
    %1973 = vmatpush1.bf16.msra.mxu0 %v1463
    %1974 = vmatprep.subr.bf16.mxu0 0
    %1975 = vmatpush1.bf16.msra.mxu0 %v1464
    %1976 = vmatprep.subr.bf16.mxu0 0
    %1977 = vmatpush1.bf16.msra.mxu0 %v1465
    %1978 = vmatprep.mubr.bf16.mxu0 %v170
    %1979 = vmatmul.mubr.bf16.gmra.mrb[0].mxu0 %v169
    %v1980 = vpop.f32.mrb[0].mxu0
    %v1981 = vadd.f32 %v1941, %v1980
    %v1982 = vpop.f32.mrb[0].mxu0
    %v1983 = vpop.f32.mrb[0].mxu0
    %v1984 = vpop.f32.mrb[0].mxu0
    %1985 = vdwg.mxu0
    %1986 = vmatprep.subr.bf16.mxu0 0
    %1987 = vmatpush1.bf16.msra.mxu0 %v1466
    %1988 = vmatprep.subr.bf16.mxu0 0
    %1989 = vmatpush1.bf16.msra.mxu0 %v1467
    %1990 = vmatprep.subr.bf16.mxu0 0
    %1991 = vmatpush1.bf16.msra.mxu0 %v1468
    %1992 = vmatprep.subr.bf16.mxu0 0
    %1993 = vmatpush1.bf16.msra.mxu0 %v1469
    %1994 = vmatprep.subr.bf16.mxu0 0
    %1995 = vmatpush1.bf16.msra.mxu0 %v1470
    %1996 = vmatprep.subr.bf16.mxu0 0
    %1997 = vmatpush1.bf16.msra.mxu0 %v1471
    %1998 = vmatprep.subr.bf16.mxu0 0
    %1999 = vmatpush1.bf16.msra.mxu0 %v1472
    %2000 = vmatprep.subr.bf16.mxu0 0
    %2001 = vmatpush1.bf16.msra.mxu0 %v1473
    %2002 = vmatprep.subr.bf16.mxu0 0
    %2003 = vmatpush1.bf16.msra.mxu0 %v1474
    %2004 = vmatprep.subr.bf16.mxu0 0
    %2005 = vmatpush1.bf16.msra.mxu0 %v1475
    %2006 = vmatprep.subr.bf16.mxu0 0
    %2007 = vmatpush1.bf16.msra.mxu0 %v1476
    %2008 = vmatprep.subr.bf16.mxu0 0
    %2009 = vmatpush1.bf16.msra.mxu0 %v1477
    %2010 = vmatprep.subr.bf16.mxu0 0
    %2011 = vmatpush1.bf16.msra.mxu0 %v1478
    %2012 = vmatprep.subr.bf16.mxu0 0
    %2013 = vmatpush1.bf16.msra.mxu0 %v1479
    %2014 = vmatprep.subr.bf16.mxu0 0
    %2015 = vmatpush1.bf16.msra.mxu0 %v1480
    %2016 = vmatprep.subr.bf16.mxu0 0
    %2017 = vmatpush1.bf16.msra.mxu0 %v1481
    %2018 = vmatprep.mubr.bf16.mxu0 %v172
    %2019 = vmatmul.mubr.bf16.gmra.mrb[0].mxu0 %v171
    %v2020 = vpop.f32.mrb[0].mxu0
    %v2021 = vadd.f32 %v1981, %v2020
    %v2022 = vpop.f32.mrb[0].mxu0
    %v2023 = vpop.f32.mrb[0].mxu0
    %v2024 = vpop.f32.mrb[0].mxu0
    %2025 = vdwg.mxu0
    %2026 = vmatprep.subr.bf16.mxu0 0
    %2027 = vmatpush1.bf16.msra.mxu0 %v1482
    %2028 = vmatprep.subr.bf16.mxu0 0
    %2029 = vmatpush1.bf16.msra.mxu0 %v1483
    %2030 = vmatprep.subr.bf16.mxu0 0
    %2031 = vmatpush1.bf16.msra.mxu0 %v1484
    %2032 = vmatprep.subr.bf16.mxu0 0
    %2033 = vmatpush1.bf16.msra.mxu0 %v1485
    %2034 = vmatprep.subr.bf16.mxu0 0
    %2035 = vmatpush1.bf16.msra.mxu0 %v1486
    %2036 = vmatprep.subr.bf16.mxu0 0
    %2037 = vmatpush1.bf16.msra.mxu0 %v1487
    %2038 = vmatprep.subr.bf16.mxu0 0
    %2039 = vmatpush1.bf16.msra.mxu0 %v1488
    %2040 = vmatprep.subr.bf16.mxu0 0
    %2041 = vmatpush1.bf16.msra.mxu0 %v1489
    %2042 = vmatprep.subr.bf16.mxu0 0
    %2043 = vmatpush1.bf16.msra.mxu0 %v1490
    %2044 = vmatprep.subr.bf16.mxu0 0
    %2045 = vmatpush1.bf16.msra.mxu0 %v1491
    %2046 = vmatprep.subr.bf16.mxu0 0
    %2047 = vmatpush1.bf16.msra.mxu0 %v1492
    %2048 = vmatprep.subr.bf16.mxu0 0
    %2049 = vmatpush1.bf16.msra.mxu0 %v1493
    %2050 = vmatprep.subr.bf16.mxu0 0
    %2051 = vmatpush1.bf16.msra.mxu0 %v1494
    %2052 = vmatprep.subr.bf16.mxu0 0
    %2053 = vmatpush1.bf16.msra.mxu0 %v1495
    %2054 = vmatprep.subr.bf16.mxu0 0
    %2055 = vmatpush1.bf16.msra.mxu0 %v1496
    %2056 = vmatprep.subr.bf16.mxu0 0
    %2057 = vmatpush1.bf16.msra.mxu0 %v1497
    %2058 = vmatprep.mubr.bf16.mxu0 %v174
    %2059 = vmatmul.mubr.bf16.gmra.mrb[0].mxu0 %v173
    %v2060 = vpop.f32.mrb[0].mxu0
    %v2061 = vadd.f32 %v2021, %v2060
    %v2062 = vpop.f32.mrb[0].mxu0
    %v2063 = vpop.f32.mrb[0].mxu0
    %v2064 = vpop.f32.mrb[0].mxu0
    %2065 = vdwg.mxu0
    %2066 = vmatprep.subr.bf16.mxu0 0
    %2067 = vmatpush1.bf16.msra.mxu0 %v1498
    %2068 = vmatprep.subr.bf16.mxu0 0
    %2069 = vmatpush1.bf16.msra.mxu0 %v1499
    %2070 = vmatprep.subr.bf16.mxu0 0
    %2071 = vmatpush1.bf16.msra.mxu0 %v1500
    %2072 = vmatprep.subr.bf16.mxu0 0
    %2073 = vmatpush1.bf16.msra.mxu0 %v1501
    %2074 = vmatprep.subr.bf16.mxu0 0
    %2075 = vmatpush1.bf16.msra.mxu0 %v1502
    %2076 = vmatprep.subr.bf16.mxu0 0
    %2077 = vmatpush1.bf16.msra.mxu0 %v1503
    %2078 = vmatprep.subr.bf16.mxu0 0
    %2079 = vmatpush1.bf16.msra.mxu0 %v1504
    %2080 = vmatprep.subr.bf16.mxu0 0
    %2081 = vmatpush1.bf16.msra.mxu0 %v1505
    %2082 = vmatprep.subr.bf16.mxu0 0
    %2083 = vmatpush1.bf16.msra.mxu0 %v1506
    %2084 = vmatprep.subr.bf16.mxu0 0
    %2085 = vmatpush1.bf16.msra.mxu0 %v1507
    %2086 = vmatprep.subr.bf16.mxu0 0
    %2087 = vmatpush1.bf16.msra.mxu0 %v1508
    %2088 = vmatprep.subr.bf16.mxu0 0
    %2089 = vmatpush1.bf16.msra.mxu0 %v1509
    %2090 = vmatprep.subr.bf16.mxu0 0
    %2091 = vmatpush1.bf16.msra.mxu0 %v1510
    %2092 = vmatprep.subr.bf16.mxu0 0
    %2093 = vmatpush1.bf16.msra.mxu0 %v1511
    %2094 = vmatprep.subr.bf16.mxu0 0
    %2095 = vmatpush1.bf16.msra.mxu0 %v1512
    %2096 = vmatprep.subr.bf16.mxu0 0
    %2097 = vmatpush1.bf16.msra.mxu0 %v1513
    %2098 = vmatprep.mubr.bf16.mxu0 %v176
    %2099 = vmatmul.mubr.bf16.gmra.mrb[0].mxu0 %v175
    %v2100 = vpop.f32.mrb[0].mxu0
    %v2101 = vadd.f32 %v2061, %v2100
    %v2102 = vpop.f32.mrb[0].mxu0
    %v2103 = vpop.f32.mrb[0].mxu0
    %v2104 = vpop.f32.mrb[0].mxu0
    %2105 = vdwg.mxu0
    %2106 = vmatprep.subr.bf16.mxu0 0
    %2107 = vmatpush1.bf16.msra.mxu0 %v1514
    %2108 = vmatprep.subr.bf16.mxu0 0
    %2109 = vmatpush1.bf16.msra.mxu0 %v1515
    %2110 = vmatprep.subr.bf16.mxu0 0
    %2111 = vmatpush1.bf16.msra.mxu0 %v1516
    %2112 = vmatprep.subr.bf16.mxu0 0
    %2113 = vmatpush1.bf16.msra.mxu0 %v1517
    %2114 = vmatprep.subr.bf16.mxu0 0
    %2115 = vmatpush1.bf16.msra.mxu0 %v1518
    %2116 = vmatprep.subr.bf16.mxu0 0
    %2117 = vmatpush1.bf16.msra.mxu0 %v1519
    %2118 = vmatprep.subr.bf16.mxu0 0
    %2119 = vmatpush1.bf16.msra.mxu0 %v1520
    %2120 = vmatprep.subr.bf16.mxu0 0
    %2121 = vmatpush1.bf16.msra.mxu0 %v1521
    %2122 = vmatprep.subr.bf16.mxu0 0
    %2123 = vmatpush1.bf16.msra.mxu0 %v1522
    %2124 = vmatprep.subr.bf16.mxu0 0
    %2125 = vmatpush1.bf16.msra.mxu0 %v1523
    %2126 = vmatprep.subr.bf16.mxu0 0
    %2127 = vmatpush1.bf16.msra.mxu0 %v1524
    %2128 = vmatprep.subr.bf16.mxu0 0
    %2129 = vmatpush1.bf16.msra.mxu0 %v1525
    %2130 = vmatprep.subr.bf16.mxu0 0
    %2131 = vmatpush1.bf16.msra.mxu0 %v1526
    %2132 = vmatprep.subr.bf16.mxu0 0
    %2133 = vmatpush1.bf16.msra.mxu0 %v1527
    %2134 = vmatprep.subr.bf16.mxu0 0
    %2135 = vmatpush1.bf16.msra.mxu0 %v1528
    %2136 = vmatprep.subr.bf16.mxu0 0
    %2137 = vmatpush1.bf16.msra.mxu0 %v1529
    %2138 = vmatprep.mubr.bf16.mxu0 %v178
    %2139 = vmatmul.mubr.bf16.gmra.mrb[0].mxu0 %v177
    %v2140 = vpop.f32.mrb[0].mxu0
    %v2141 = vadd.f32 %v2101, %v2140
    %v2142 = vpop.f32.mrb[0].mxu0
    %v2143 = vpop.f32.mrb[0].mxu0
    %v2144 = vpop.f32.mrb[0].mxu0
    %2145 = vdwg.mxu0
    %2146 = vmatprep.subr.bf16.mxu0 0
    %2147 = vmatpush1.bf16.msra.mxu0 %v1530
    %2148 = vmatprep.subr.bf16.mxu0 0
    %2149 = vmatpush1.bf16.msra.mxu0 %v1531
    %2150 = vmatprep.subr.bf16.mxu0 0
    %2151 = vmatpush1.bf16.msra.mxu0 %v1532
    %2152 = vmatprep.subr.bf16.mxu0 0
    %2153 = vmatpush1.bf16.msra.mxu0 %v1533
    %2154 = vmatprep.subr.bf16.mxu0 0
    %2155 = vmatpush1.bf16.msra.mxu0 %v1534
    %2156 = vmatprep.subr.bf16.mxu0 0
    %2157 = vmatpush1.bf16.msra.mxu0 %v1535
    %2158 = vmatprep.subr.bf16.mxu0 0
    %2159 = vmatpush1.bf16.msra.mxu0 %v1536
    %2160 = vmatprep.subr.bf16.mxu0 0
    %2161 = vmatpush1.bf16.msra.mxu0 %v1537
    %2162 = vmatprep.subr.bf16.mxu0 0
    %2163 = vmatpush1.bf16.msra.mxu0 %v1538
    %2164 = vmatprep.subr.bf16.mxu0 0
    %2165 = vmatpush1.bf16.msra.mxu0 %v1539
    %2166 = vmatprep.subr.bf16.mxu0 0
    %2167 = vmatpush1.bf16.msra.mxu0 %v1540
    %2168 = vmatprep.subr.bf16.mxu0 0
    %2169 = vmatpush1.bf16.msra.mxu0 %v1541
    %2170 = vmatprep.subr.bf16.mxu0 0
    %2171 = vmatpush1.bf16.msra.mxu0 %v1542
    %2172 = vmatprep.subr.bf16.mxu0 0
    %2173 = vmatpush1.bf16.msra.mxu0 %v1543
    %2174 = vmatprep.subr.bf16.mxu0 0
    %2175 = vmatpush1.bf16.msra.mxu0 %v1544
    %2176 = vmatprep.subr.bf16.mxu0 0
    %2177 = vmatpush1.bf16.msra.mxu0 %v1545
    %2178 = vmatprep.mubr.bf16.mxu0 %v180
    %2179 = vmatmul.mubr.bf16.gmra.mrb[0].mxu0 %v179
    %v2180 = vpop.f32.mrb[0].mxu0
    %v2181 = vadd.f32 %v2141, %v2180
    %v2182 = vpop.f32.mrb[0].mxu0
    %v2183 = vpop.f32.mrb[0].mxu0
    %v2184 = vpop.f32.mrb[0].mxu0
    %2185 = vdwg.mxu0
    %2186 = vmatprep.subr.bf16.mxu0 0
    %2187 = vmatpush1.bf16.msra.mxu0 %v1546
    %2188 = vmatprep.subr.bf16.mxu0 0
    %2189 = vmatpush1.bf16.msra.mxu0 %v1547
    %2190 = vmatprep.subr.bf16.mxu0 0
    %2191 = vmatpush1.bf16.msra.mxu0 %v1548
    %2192 = vmatprep.subr.bf16.mxu0 0
    %2193 = vmatpush1.bf16.msra.mxu0 %v1549
    %2194 = vmatprep.subr.bf16.mxu0 0
    %2195 = vmatpush1.bf16.msra.mxu0 %v1550
    %2196 = vmatprep.subr.bf16.mxu0 0
    %2197 = vmatpush1.bf16.msra.mxu0 %v1551
    %2198 = vmatprep.subr.bf16.mxu0 0
    %2199 = vmatpush1.bf16.msra.mxu0 %v1552
    %2200 = vmatprep.subr.bf16.mxu0 0
    %2201 = vmatpush1.bf16.msra.mxu0 %v1553
    %2202 = vmatprep.subr.bf16.mxu0 0
    %2203 = vmatpush1.bf16.msra.mxu0 %v1554
    %2204 = vmatprep.subr.bf16.mxu0 0
    %2205 = vmatpush1.bf16.msra.mxu0 %v1555
    %2206 = vmatprep.subr.bf16.mxu0 0
    %2207 = vmatpush1.bf16.msra.mxu0 %v1556
    %2208 = vmatprep.subr.bf16.mxu0 0
    %2209 = vmatpush1.bf16.msra.mxu0 %v1557
    %2210 = vmatprep.subr.bf16.mxu0 0
    %2211 = vmatpush1.bf16.msra.mxu0 %v1558
    %2212 = vmatprep.subr.bf16.mxu0 0
    %2213 = vmatpush1.bf16.msra.mxu0 %v1559
    %2214 = vmatprep.subr.bf16.mxu0 0
    %2215 = vmatpush1.bf16.msra.mxu0 %v1560
    %2216 = vmatprep.subr.bf16.mxu0 0
    %2217 = vmatpush1.bf16.msra.mxu0 %v1561
    %2218 = vmatprep.mubr.bf16.mxu0 %v182
    %2219 = vmatmul.mubr.bf16.gmra.mrb[0].mxu0 %v181
    %v2220 = vpop.f32.mrb[0].mxu0
    %v2221 = vadd.f32 %v2181, %v2220
    %v2222 = vpop.f32.mrb[0].mxu0
    %v2223 = vpop.f32.mrb[0].mxu0
    %v2224 = vpop.f32.mrb[0].mxu0
    %2225 = vdwg.mxu0
    %2226 = vmatprep.subr.bf16.mxu0 0
    %2227 = vmatpush1.bf16.msra.mxu0 %v1562
    %2228 = vmatprep.subr.bf16.mxu0 0
    %2229 = vmatpush1.bf16.msra.mxu0 %v1563
    %2230 = vmatprep.subr.bf16.mxu0 0
    %2231 = vmatpush1.bf16.msra.mxu0 %v1564
    %2232 = vmatprep.subr.bf16.mxu0 0
    %2233 = vmatpush1.bf16.msra.mxu0 %v1565
    %2234 = vmatprep.subr.bf16.mxu0 0
    %2235 = vmatpush1.bf16.msra.mxu0 %v1566
    %2236 = vmatprep.subr.bf16.mxu0 0
    %2237 = vmatpush1.bf16.msra.mxu0 %v1567
    %2238 = vmatprep.subr.bf16.mxu0 0
    %2239 = vmatpush1.bf16.msra.mxu0 %v1568
    %2240 = vmatprep.subr.bf16.mxu0 0
    %2241 = vmatpush1.bf16.msra.mxu0 %v1569
    %2242 = vmatprep.subr.bf16.mxu0 0
    %2243 = vmatpush1.bf16.msra.mxu0 %v1570
    %2244 = vmatprep.subr.bf16.mxu0 0
    %2245 = vmatpush1.bf16.msra.mxu0 %v1571
    %2246 = vmatprep.subr.bf16.mxu0 0
    %2247 = vmatpush1.bf16.msra.mxu0 %v1572
    %2248 = vmatprep.subr.bf16.mxu0 0
    %2249 = vmatpush1.bf16.msra.mxu0 %v1573
    %2250 = vmatprep.subr.bf16.mxu0 0
    %2251 = vmatpush1.bf16.msra.mxu0 %v1574
    %2252 = vmatprep.subr.bf16.mxu0 0
    %2253 = vmatpush1.bf16.msra.mxu0 %v1575
    %2254 = vmatprep.subr.bf16.mxu0 0
    %2255 = vmatpush1.bf16.msra.mxu0 %v1576
    %2256 = vmatprep.subr.bf16.mxu0 0
    %2257 = vmatpush1.bf16.msra.mxu0 %v1577
    %2258 = vmatprep.mubr.bf16.mxu0 %v184
    %2259 = vmatmul.mubr.bf16.gmra.mrb[0].mxu0 %v183
    %v2260 = vpop.f32.mrb[0].mxu0
    %v2261 = vadd.f32 %v2221, %v2260
    %v2262 = vpop.f32.mrb[0].mxu0
    %v2263 = vpop.f32.mrb[0].mxu0
    %v2264 = vpop.f32.mrb[0].mxu0
    %2265 = vdwg.mxu0
    %2266 = vmatprep.subr.bf16.mxu0 0
    %2267 = vmatpush1.bf16.msra.mxu0 %v1578
    %2268 = vmatprep.subr.bf16.mxu0 0
    %2269 = vmatpush1.bf16.msra.mxu0 %v1579
    %2270 = vmatprep.subr.bf16.mxu0 0
    %2271 = vmatpush1.bf16.msra.mxu0 %v1580
    %2272 = vmatprep.subr.bf16.mxu0 0
    %2273 = vmatpush1.bf16.msra.mxu0 %v1581
    %2274 = vmatprep.subr.bf16.mxu0 0
    %2275 = vmatpush1.bf16.msra.mxu0 %v1582
    %2276 = vmatprep.subr.bf16.mxu0 0
    %2277 = vmatpush1.bf16.msra.mxu0 %v1583
    %2278 = vmatprep.subr.bf16.mxu0 0
    %2279 = vmatpush1.bf16.msra.mxu0 %v1584
    %2280 = vmatprep.subr.bf16.mxu0 0
    %2281 = vmatpush1.bf16.msra.mxu0 %v1585
    %2282 = vmatprep.subr.bf16.mxu0 0
    %2283 = vmatpush1.bf16.msra.mxu0 0
    %2284 = vmatprep.subr.bf16.mxu0 0
    %2285 = vmatpush1.bf16.msra.mxu0 0
    %2286 = vmatprep.subr.bf16.mxu0 0
    %2287 = vmatpush1.bf16.msra.mxu0 0
    %2288 = vmatprep.subr.bf16.mxu0 0
    %2289 = vmatpush1.bf16.msra.mxu0 0
    %2290 = vmatprep.subr.bf16.mxu0 0
    %2291 = vmatpush1.bf16.msra.mxu0 0
    %2292 = vmatprep.subr.bf16.mxu0 0
    %2293 = vmatpush1.bf16.msra.mxu0 0
    %2294 = vmatprep.subr.bf16.mxu0 0
    %2295 = vmatpush1.bf16.msra.mxu0 0
    %2296 = vmatprep.subr.bf16.mxu0 0
    %2297 = vmatpush1.bf16.msra.mxu0 0
    %2298 = vmatprep.mubr.bf16.mxu0 0
    %2299 = vmatmul.mubr.bf16.gmra.mrb[0].mxu0 %v185
    %v2300 = vpop.f32.mrb[0].mxu0
    %v2301 = vadd.f32 %v2261, %v2300
    %v2302 = vpop.f32.mrb[0].mxu0
    %v2303 = vpop.f32.mrb[0].mxu0
    %v2304 = vpop.f32.mrb[0].mxu0
    %2305 = vdwg.mxu0
    %2306 = vst [vmem:[#allocation2] sm:$0x3] %v2301
    // Predicated region
    $region10: #{cnn_2layer_fc_forward.5} parent=1 // pred_check
      _
    $region11: #{cnn_2layer_fc_forward.5} parent=1 // pred_check_branch
      %2308 = sbr.rel (0) target = $region13
    $region12: #{cnn_2layer_fc_forward.5} parent=1 // pred_region
      %s2310 = ssub.s32 32, 32
      %2311 = vsyncadd [#allocation3], %s2310
      %s2313 = sshll.u32 [#allocation2], 4
      %s2314 = int_to_ptr.vmem [resolvable:$true] %s2313
      %2316 = dma.vmem_to_hbm [thread:$0]  %s2314, 32, %s2, [#allocation3]
    $region13: #{cnn_2layer_fc_forward.5} parent=1 // pred_fallthru
      _
    // Predicated region
    $region14: #{cnn_2layer_fc_forward.5} parent=1 // pred_check
      _
    $region15: #{cnn_2layer_fc_forward.5} parent=1 // pred_check_branch
      %2318 = sbr.rel (0) target = $region17
    $region16: #{cnn_2layer_fc_forward.5} parent=1 // pred_region
      %2319 = dma.done [#allocation3], 32
    $region17: #{cnn_2layer_fc_forward.5} parent=1 // pred_fallthru
      _
    %2320 = vsyncpa [#allocation3], 1

</llo_original>
